<compile_context>
chip_gen: v6e
topology: v6e:2x2x1
jax: 0.10.0
libtpu: 0.0.40
codegen_flags: <defaults>
</compile_context>

<pallas_src>
import functools
import math

import jax
import jax.numpy as jnp
from jax.experimental import pallas as pl
from jax.experimental.pallas import tpu as pltpu

# ----------------------------- config (small) --------------------------------
B = 2                 # batch
C = 3                 # image channels
IMG = 16              # spatial size
PATCH = 4             # patch size
GRID_HW = IMG // PATCH
NP = GRID_HW * GRID_HW          # 16 patches
S = NP + 1                      # 17 tokens (cls + patches)
S_PAD = 24                      # token axis padded to a multiple of 8
D = 32                          # embed dim
H = 4                           # attention heads
HD = D // H                     # head dim
MLP = 4 * D                     # MLP hidden
DEPTH = 2                       # transformer blocks
NUM_CLASSES = 10
HEAD_PAD = 128                  # lane-dense logits width
ATTN_PAD = 128                  # lane-dense attention-row width
PD = C * PATCH * PATCH          # flattened patch dim
BS = B * S_PAD                  # activation slab rows
LN_EPS = 1e-6
NEG_INF = -1e30

_VMEM = pl.BlockSpec(memory_space=pltpu.MemorySpace.VMEM)


# ------------------------------ kernel ---------------------------------------
def _layer_norm(v, w, b):
    mu = jnp.mean(v, axis=-1, keepdims=True)
    var = jnp.mean((v - mu) ** 2, axis=-1, keepdims=True)
    return (v - mu) * jax.lax.rsqrt(var + LN_EPS) * w + b


def _vit_kernel(with_attn,
                patches_ref, patch_w_ref, row_bias_ref, mask_ref,
                ln1_w_ref, ln1_b_ref, qkv_w_ref, qkv_b_ref,
                proj_w_ref, proj_b_ref, ln2_w_ref, ln2_b_ref,
                fc1_w_ref, fc1_b_ref, fc2_w_ref, fc2_b_ref,
                norm_w_ref, norm_b_ref, head_w_ref, head_b_ref,
                logits_ref, attn_ref=None):
    """Fused ViT forward: patch-embed + DEPTH transformer blocks + final LN/head."""
    # ---- patch embedding: one whole-slab matmul [B*S_PAD, PD] @ [PD, D] ----
    # patches already carry a zero row for the cls slot and zero padding rows;
    # row_bias holds cls_token+pos[0] / pos+patch_bias / 0 per row.
    x = jnp.dot(patches_ref[...], patch_w_ref[...],
                preferred_element_type=jnp.float32) + row_bias_ref[...]       # [BS, D]

    mask = mask_ref[...]                                   # [BS, BS] additive attn mask
    attn_rows = [None] * (B * H)                           # last-block cls rows

    # ---- transformer blocks (static unroll, weights indexed along DEPTH axis) ----
    for d in range(DEPTH):
        # --- attention branch ---
        xn = _layer_norm(x, ln1_w_ref[d], ln1_b_ref[d])
        qkv = jnp.dot(xn, qkv_w_ref[d],
                      preferred_element_type=jnp.float32) + qkv_b_ref[d]      # [BS, 3D]
        q = qkv[:, 0:D]              # 1/sqrt(HD) already folded into qkv_w at init
        k = qkv[:, D:2 * D]
        v = qkv[:, 2 * D:3 * D]

        head_outs = []
        for h in range(H):                                 # static unroll over heads
            qh = q[:, h * HD:(h + 1) * HD]                 # [BS, HD]
            kh = k[:, h * HD:(h + 1) * HD]
            vh = v[:, h * HD:(h + 1) * HD]
            # whole-slab scores; cross-batch and padded-key entries are masked out.
            s = jax.lax.dot_general(qh, kh, (((1,), (1,)), ((), ())),
                                    preferred_element_type=jnp.float32)       # [BS, BS]
            s = s + mask
            s = s - jnp.max(s, axis=-1, keepdims=True)
            e = jnp.exp(s)
            a = e * pl.reciprocal(jnp.sum(e, axis=-1, keepdims=True),
                                  approx=True)             # softmax (EUP reciprocal)
            if with_attn and d == DEPTH - 1:
                for b in range(B):
                    attn_rows[b * H + h] = a[b * S_PAD:b * S_PAD + 1,
                                             b * S_PAD:b * S_PAD + S_PAD]     # [1, S_PAD]
            head_outs.append(jnp.dot(a, vh,
                                     preferred_element_type=jnp.float32))     # [BS, HD]

        attn_out = jnp.concatenate(head_outs, axis=1)      # [BS, D] (one lane tile)
        y = x + jnp.dot(attn_out, proj_w_ref[d],
                        preferred_element_type=jnp.float32) + proj_b_ref[d]

        # --- MLP branch (whole-slab matmuls) ---
        yn = _layer_norm(y, ln2_w_ref[d], ln2_b_ref[d])
        hid = jnp.dot(yn, fc1_w_ref[d],
                      preferred_element_type=jnp.float32) + fc1_b_ref[d]
        # TODO(synk): timm default ViT uses exact erf-GELU; tanh approximation used here.
        hid = jax.nn.gelu(hid, approximate=True)
        x = y + jnp.dot(hid, fc2_w_ref[d],
                        preferred_element_type=jnp.float32) + fc2_b_ref[d]

    # ---- final LayerNorm on cls tokens + classification head (lane-padded) ----
    cls_tokens = jnp.concatenate(
        [x[b * S_PAD:b * S_PAD + 1, :] for b in range(B)], axis=0)            # [B, D]
    cn = _layer_norm(cls_tokens, norm_w_ref[...], norm_b_ref[...])
    logits_ref[...] = jnp.dot(cn, head_w_ref[...],
                              preferred_element_type=jnp.float32) + head_b_ref[...]

    if with_attn:
        rows = jnp.concatenate(attn_rows, axis=0)                             # [B*H, S_PAD]
        pad = jnp.zeros((B * H, ATTN_PAD - S_PAD), jnp.float32)
        attn_ref[...] = jnp.concatenate([rows, pad], axis=1)                  # one dense store


# ------------------------------ wrappers --------------------------------------
def patchify(x):
    """NCHW image -> [B, NP, C*P*P] patch vectors (matches Conv2d(stride=patch))."""
    b, c, h, w = x.shape
    p = x.reshape(b, c, h // PATCH, PATCH, w // PATCH, PATCH)
    p = p.transpose(0, 2, 4, 1, 3, 5)                 # [B, gh, gw, C, P, P]
    return p.reshape(b, (h // PATCH) * (w // PATCH), c * PATCH * PATCH)


def vit_forward(x, params, extract_attention=False):
    """Equivalent of VitModel.forward (extract_attention selects the tuple path)."""
    bsz = x.shape[0]
    assert bsz == B, "kernel is specialized for the configured batch size"

    # [B, NP, PD] -> zero cls-slot row + zero padding rows -> [B*S_PAD, PD]
    patches = patchify(x)
    patches = jnp.pad(patches, ((0, 0), (1, S_PAD - NP - 1), (0, 0)))
    patches = patches.reshape(B * S_PAD, PD)

    blk = params["blocks"]
    args = (patches, params["patch_w"], params["row_bias"], params["attn_mask"],
            blk["ln1_w"], blk["ln1_b"], blk["qkv_w"], blk["qkv_b"],
            blk["proj_w"], blk["proj_b"], blk["ln2_w"], blk["ln2_b"],
            blk["fc1_w"], blk["fc1_b"], blk["fc2_w"], blk["fc2_b"],
            params["norm_w"], params["norm_b"], params["head_w"], params["head_b"])

    if extract_attention:
        logits_p, attn = pl.pallas_call(
            functools.partial(_vit_kernel, True),
            out_shape=(jax.ShapeDtypeStruct((B, HEAD_PAD), jnp.float32),
                       jax.ShapeDtypeStruct((B * H, ATTN_PAD), jnp.float32)),
            in_specs=[_VMEM] * 20,
            out_specs=(_VMEM, _VMEM),
        )(*args)
        logits = logits_p[:, :NUM_CLASSES]
        # cls_attn_map: cls->patch attention of the LAST block, mean over heads.
        cls_weight = jnp.mean(attn.reshape(bsz, H, ATTN_PAD), axis=1)[:, 1:1 + NP]
        # TODO(synk): original code concatenates column 165 and views to (14,14,1)
        # (ViT-base/224 geometry, batch==1 only); at this reduced size we reshape the
        # patch-attention grid directly.
        cls_map = cls_weight.reshape(-1, GRID_HW, GRID_HW, 1)
        return logits, cls_map

    logits_p = pl.pallas_call(
        functools.partial(_vit_kernel, False),
        out_shape=jax.ShapeDtypeStruct((B, HEAD_PAD), jnp.float32),
        in_specs=[_VMEM] * 20,
        out_specs=_VMEM,
    )(*args)
    return logits_p[:, :NUM_CLASSES]


# ------------------------------ params ----------------------------------------
def init_params(key):
    """Pre-stacked / pre-derived parameter layout (no per-call preparation)."""
    ks = iter(jax.random.split(key, 4 + DEPTH * 4))
    std = 0.02

    def rnd(shape):
        return (std * jax.random.normal(next(ks), shape)).astype(jnp.float32)

    patch_w = rnd((PD, D))
    patch_b = jnp.zeros((1, D), jnp.float32)
    cls_token = rnd((1, D))
    pos_embed = rnd((S, D))

    # per-row additive bias: cls+pos[0] | pos[1:]+patch_bias | zeros, tiled over batch.
    rb = jnp.concatenate([cls_token + pos_embed[0:1, :],
                          pos_embed[1:, :] + patch_b,
                          jnp.zeros((S_PAD - S, D), jnp.float32)], axis=0)     # [S_PAD, D]
    row_bias = jnp.tile(rb, (B, 1))                                            # [BS, D]

    # additive attention mask: 0 for same-batch & valid key, -1e30 otherwise.
    attn_mask = jnp.full((BS, BS), NEG_INF, jnp.float32)
    for b in range(B):
        attn_mask = attn_mask.at[b * S_PAD:(b + 1) * S_PAD,
                                 b * S_PAD:b * S_PAD + S].set(0.0)

    # fold 1/sqrt(HD) into the Q columns of the QKV projection.
    scale = 1.0 / math.sqrt(HD)
    col_scale = jnp.concatenate([jnp.full((D,), scale, jnp.float32),
                                 jnp.ones((2 * D,), jnp.float32)])[None, :]

    qkv_w, proj_w, fc1_w, fc2_w = [], [], [], []
    for _ in range(DEPTH):
        qkv_w.append(rnd((D, 3 * D)) * col_scale)
        proj_w.append(rnd((D, D)))
        fc1_w.append(rnd((D, MLP)))
        fc2_w.append(rnd((MLP, D)))

    blocks = {
        "ln1_w": jnp.ones((DEPTH, 1, D), jnp.float32),
        "ln1_b": jnp.zeros((DEPTH, 1, D), jnp.float32),
        "qkv_w": jnp.stack(qkv_w, axis=0),
        "qkv_b": jnp.zeros((DEPTH, 1, 3 * D), jnp.float32),
        "proj_w": jnp.stack(proj_w, axis=0),
        "proj_b": jnp.zeros((DEPTH, 1, D), jnp.float32),
        "ln2_w": jnp.ones((DEPTH, 1, D), jnp.float32),
        "ln2_b": jnp.zeros((DEPTH, 1, D), jnp.float32),
        "fc1_w": jnp.stack(fc1_w, axis=0),
        "fc1_b": jnp.zeros((DEPTH, 1, MLP), jnp.float32),
        "fc2_w": jnp.stack(fc2_w, axis=0),
        "fc2_b": jnp.zeros((DEPTH, 1, D), jnp.float32),
    }

    # lane-dense classification head (zeros beyond NUM_CLASSES).
    head_w = jnp.zeros((D, HEAD_PAD), jnp.float32).at[:, :NUM_CLASSES].set(
        rnd((D, NUM_CLASSES)))
    head_b = jnp.zeros((1, HEAD_PAD), jnp.float32)

    return {
        "patch_w": patch_w,
        "row_bias": row_bias,
        "attn_mask": attn_mask,
        "norm_w": jnp.ones((1, D), jnp.float32),
        "norm_b": jnp.zeros((1, D), jnp.float32),
        "head_w": head_w,
        "head_b": head_b,
        "blocks": blocks,
    }


# ------------------------------ main ------------------------------------------
if __name__ == "__main__":
    key = jax.random.PRNGKey(0)
    k_x, k_p = jax.random.split(key)
    x = jax.random.normal(k_x, (B, C, IMG, IMG), dtype=jnp.float32)   # NCHW like PyTorch
    params = init_params(k_p)

    fwd = jax.jit(functools.partial(vit_forward, extract_attention=False))
    logits = fwd(x, params)
    jax.block_until_ready(logits)
    assert logits.shape == (B, NUM_CLASSES)

    # also exercise the extract_attention branch (cls attention map from last block)
    fwd_attn = jax.jit(functools.partial(vit_forward, extract_attention=True))
    logits2, cls_map = fwd_attn(x, params)
    jax.block_until_ready((logits2, cls_map))
    assert logits2.shape == (B, NUM_CLASSES)
    assert cls_map.shape == (B, GRID_HW, GRID_HW, 1)

    print("KERNEL_OK")
</pallas_src>

<mosaic_0001>
module attributes {stable_mosaic.version = 11 : i64} {
  func.func @_vit_kernel(%arg0: memref<48x48xf32, #tpu.memory_space<vmem>>, %arg1: memref<48x32xf32, #tpu.memory_space<vmem>>, %arg2: memref<48x32xf32, #tpu.memory_space<vmem>>, %arg3: memref<48x48xf32, #tpu.memory_space<vmem>>, %arg4: memref<2x1x32xf32, #tpu.memory_space<vmem>>, %arg5: memref<2x1x32xf32, #tpu.memory_space<vmem>>, %arg6: memref<2x32x96xf32, #tpu.memory_space<vmem>>, %arg7: memref<2x1x96xf32, #tpu.memory_space<vmem>>, %arg8: memref<2x32x32xf32, #tpu.memory_space<vmem>>, %arg9: memref<2x1x32xf32, #tpu.memory_space<vmem>>, %arg10: memref<2x1x32xf32, #tpu.memory_space<vmem>>, %arg11: memref<2x1x32xf32, #tpu.memory_space<vmem>>, %arg12: memref<2x32x128xf32, #tpu.memory_space<vmem>>, %arg13: memref<2x1x128xf32, #tpu.memory_space<vmem>>, %arg14: memref<2x128x32xf32, #tpu.memory_space<vmem>>, %arg15: memref<2x1x32xf32, #tpu.memory_space<vmem>>, %arg16: memref<1x32xf32, #tpu.memory_space<vmem>>, %arg17: memref<1x32xf32, #tpu.memory_space<vmem>>, %arg18: memref<32x128xf32, #tpu.memory_space<vmem>>, %arg19: memref<1x128xf32, #tpu.memory_space<vmem>>, %arg20: memref<2x128xf32, #tpu.memory_space<vmem>>) attributes {dimension_semantics = [], scalar_prefetch = 0 : i64, scratch_operands = 0 : i64, tpu.core_type = #tpu.core_type<tc>} {
    %c0 = arith.constant 0 : index
    %c0_0 = arith.constant 0 : index
    %0 = vector.load %arg0[%c0, %c0_0] : memref<48x48xf32, #tpu.memory_space<vmem>>, vector<48x48xf32>
    %c0_1 = arith.constant 0 : index
    %c0_2 = arith.constant 0 : index
    %1 = vector.load %arg1[%c0_1, %c0_2] : memref<48x32xf32, #tpu.memory_space<vmem>>, vector<48x32xf32>
    %cst = arith.constant dense<0.000000e+00> : vector<48x32xf32>
    %2 = tpu.matmul %0, %1, %cst {dimension_numbers = #tpu.dot_dimension_numbers<[1], [0], [0], [1], [0, 0, 1, 1], [], []>} : vector<48x48xf32>, vector<48x32xf32>, vector<48x32xf32> -> vector<48x32xf32>
    %c0_3 = arith.constant 0 : index
    %c0_4 = arith.constant 0 : index
    %3 = vector.load %arg2[%c0_3, %c0_4] : memref<48x32xf32, #tpu.memory_space<vmem>>, vector<48x32xf32>
    %4 = arith.addf %2, %3 : vector<48x32xf32>
    %c0_5 = arith.constant 0 : index
    %c0_6 = arith.constant 0 : index
    %5 = vector.load %arg3[%c0_5, %c0_6] : memref<48x48xf32, #tpu.memory_space<vmem>>, vector<48x48xf32>
    %c0_7 = arith.constant 0 : index
    %c0_8 = arith.constant 0 : index
    %c0_9 = arith.constant 0 : index
    %6 = vector.load %arg4[%c0_7, %c0_8, %c0_9] : memref<2x1x32xf32, #tpu.memory_space<vmem>>, vector<1x1x32xf32>
    %7 = vector.shape_cast %6 : vector<1x1x32xf32> to vector<1x32xf32>
    %c0_10 = arith.constant 0 : index
    %c0_11 = arith.constant 0 : index
    %c0_12 = arith.constant 0 : index
    %8 = vector.load %arg5[%c0_10, %c0_11, %c0_12] : memref<2x1x32xf32, #tpu.memory_space<vmem>>, vector<1x1x32xf32>
    %9 = vector.shape_cast %8 : vector<1x1x32xf32> to vector<1x32xf32>
    %cst_13 = arith.constant dense<0.000000e+00> : vector<48xf32>
    %10 = vector.multi_reduction <add>, %4, %cst_13 [1] : vector<48x32xf32> to vector<48xf32>
    %11 = vector.shape_cast %10 : vector<48xf32> to vector<48x1xf32>
    %cst_14 = arith.constant 3.200000e+01 : f32
    %12 = vector.broadcast %cst_14 : f32 to vector<48x1xf32>
    %13 = arith.divf %11, %12 : vector<48x1xf32>
    %14 = vector.broadcast %13 : vector<48x1xf32> to vector<48x32xf32>
    %15 = arith.subf %4, %14 : vector<48x32xf32>
    %16 = arith.mulf %15, %15 : vector<48x32xf32>
    %cst_15 = arith.constant dense<0.000000e+00> : vector<48xf32>
    %17 = vector.multi_reduction <add>, %16, %cst_15 [1] : vector<48x32xf32> to vector<48xf32>
    %18 = vector.shape_cast %17 : vector<48xf32> to vector<48x1xf32>
    %cst_16 = arith.constant 3.200000e+01 : f32
    %19 = vector.broadcast %cst_16 : f32 to vector<48x1xf32>
    %20 = arith.divf %18, %19 : vector<48x1xf32>
    %21 = vector.broadcast %13 : vector<48x1xf32> to vector<48x32xf32>
    %22 = arith.subf %4, %21 : vector<48x32xf32>
    %cst_17 = arith.constant 9.99999997E-7 : f32
    %23 = vector.broadcast %cst_17 : f32 to vector<48x1xf32>
    %24 = arith.addf %20, %23 : vector<48x1xf32>
    %25 = math.rsqrt %24 : vector<48x1xf32>
    %26 = vector.broadcast %25 : vector<48x1xf32> to vector<48x32xf32>
    %27 = arith.mulf %22, %26 : vector<48x32xf32>
    %28 = vector.broadcast %7 : vector<1x32xf32> to vector<48x32xf32>
    %29 = arith.mulf %27, %28 : vector<48x32xf32>
    %30 = vector.broadcast %9 : vector<1x32xf32> to vector<48x32xf32>
    %31 = arith.addf %29, %30 : vector<48x32xf32>
    %c0_18 = arith.constant 0 : index
    %c0_19 = arith.constant 0 : index
    %c0_20 = arith.constant 0 : index
    %32 = vector.load %arg6[%c0_18, %c0_19, %c0_20] : memref<2x32x96xf32, #tpu.memory_space<vmem>>, vector<1x32x96xf32>
    %33 = vector.shape_cast %32 : vector<1x32x96xf32> to vector<32x96xf32>
    %cst_21 = arith.constant dense<0.000000e+00> : vector<48x96xf32>
    %34 = tpu.matmul %31, %33, %cst_21 {dimension_numbers = #tpu.dot_dimension_numbers<[1], [0], [0], [1], [0, 0, 1, 1], [], []>} : vector<48x32xf32>, vector<32x96xf32>, vector<48x96xf32> -> vector<48x96xf32>
    %c0_22 = arith.constant 0 : index
    %c0_23 = arith.constant 0 : index
    %c0_24 = arith.constant 0 : index
    %35 = vector.load %arg7[%c0_22, %c0_23, %c0_24] : memref<2x1x96xf32, #tpu.memory_space<vmem>>, vector<1x1x96xf32>
    %36 = vector.shape_cast %35 : vector<1x1x96xf32> to vector<1x96xf32>
    %37 = vector.broadcast %36 : vector<1x96xf32> to vector<48x96xf32>
    %38 = arith.addf %34, %37 : vector<48x96xf32>
    %39 = vector.extract_strided_slice %38 {offsets = [0, 0], sizes = [48, 32], strides = [1, 1]} : vector<48x96xf32> to vector<48x32xf32>
    %40 = vector.extract_strided_slice %38 {offsets = [0, 32], sizes = [48, 32], strides = [1, 1]} : vector<48x96xf32> to vector<48x32xf32>
    %41 = vector.extract_strided_slice %38 {offsets = [0, 64], sizes = [48, 32], strides = [1, 1]} : vector<48x96xf32> to vector<48x32xf32>
    %42 = vector.extract_strided_slice %39 {offsets = [0, 0], sizes = [48, 8], strides = [1, 1]} : vector<48x32xf32> to vector<48x8xf32>
    %43 = vector.extract_strided_slice %40 {offsets = [0, 0], sizes = [48, 8], strides = [1, 1]} : vector<48x32xf32> to vector<48x8xf32>
    %44 = vector.extract_strided_slice %41 {offsets = [0, 0], sizes = [48, 8], strides = [1, 1]} : vector<48x32xf32> to vector<48x8xf32>
    %cst_25 = arith.constant dense<0.000000e+00> : vector<48x48xf32>
    %45 = tpu.matmul %42, %43, %cst_25 {dimension_numbers = #tpu.dot_dimension_numbers<[1], [1], [0], [0], [0, 0, 1, 0], [], []>} : vector<48x8xf32>, vector<48x8xf32>, vector<48x48xf32> -> vector<48x48xf32>
    %46 = arith.addf %45, %5 : vector<48x48xf32>
    %cst_26 = arith.constant dense<0xFF800000> : vector<48xf32>
    %47 = vector.multi_reduction <maximumf>, %46, %cst_26 [1] : vector<48x48xf32> to vector<48xf32>
    %48 = vector.shape_cast %47 : vector<48xf32> to vector<48x1xf32>
    %49 = vector.broadcast %48 : vector<48x1xf32> to vector<48x48xf32>
    %50 = arith.subf %46, %49 : vector<48x48xf32>
    %51 = math.exp %50 : vector<48x48xf32>
    %cst_27 = arith.constant dense<0.000000e+00> : vector<48xf32>
    %52 = vector.multi_reduction <add>, %51, %cst_27 [1] : vector<48x48xf32> to vector<48xf32>
    %53 = vector.shape_cast %52 : vector<48xf32> to vector<48x1xf32>
    %54 = tpu.reciprocal %53 {approx = true} : vector<48x1xf32> -> vector<48x1xf32>
    %55 = vector.broadcast %54 : vector<48x1xf32> to vector<48x48xf32>
    %56 = arith.mulf %51, %55 : vector<48x48xf32>
    %cst_28 = arith.constant dense<0.000000e+00> : vector<48x8xf32>
    %57 = tpu.matmul %56, %44, %cst_28 {dimension_numbers = #tpu.dot_dimension_numbers<[1], [0], [0], [1], [0, 0, 1, 1], [], []>} : vector<48x48xf32>, vector<48x8xf32>, vector<48x8xf32> -> vector<48x8xf32>
    %58 = vector.extract_strided_slice %39 {offsets = [0, 8], sizes = [48, 8], strides = [1, 1]} : vector<48x32xf32> to vector<48x8xf32>
    %59 = vector.extract_strided_slice %40 {offsets = [0, 8], sizes = [48, 8], strides = [1, 1]} : vector<48x32xf32> to vector<48x8xf32>
    %60 = vector.extract_strided_slice %41 {offsets = [0, 8], sizes = [48, 8], strides = [1, 1]} : vector<48x32xf32> to vector<48x8xf32>
    %cst_29 = arith.constant dense<0.000000e+00> : vector<48x48xf32>
    %61 = tpu.matmul %58, %59, %cst_29 {dimension_numbers = #tpu.dot_dimension_numbers<[1], [1], [0], [0], [0, 0, 1, 0], [], []>} : vector<48x8xf32>, vector<48x8xf32>, vector<48x48xf32> -> vector<48x48xf32>
    %62 = arith.addf %61, %5 : vector<48x48xf32>
    %cst_30 = arith.constant dense<0xFF800000> : vector<48xf32>
    %63 = vector.multi_reduction <maximumf>, %62, %cst_30 [1] : vector<48x48xf32> to vector<48xf32>
    %64 = vector.shape_cast %63 : vector<48xf32> to vector<48x1xf32>
    %65 = vector.broadcast %64 : vector<48x1xf32> to vector<48x48xf32>
    %66 = arith.subf %62, %65 : vector<48x48xf32>
    %67 = math.exp %66 : vector<48x48xf32>
    %cst_31 = arith.constant dense<0.000000e+00> : vector<48xf32>
    %68 = vector.multi_reduction <add>, %67, %cst_31 [1] : vector<48x48xf32> to vector<48xf32>
    %69 = vector.shape_cast %68 : vector<48xf32> to vector<48x1xf32>
    %70 = tpu.reciprocal %69 {approx = true} : vector<48x1xf32> -> vector<48x1xf32>
    %71 = vector.broadcast %70 : vector<48x1xf32> to vector<48x48xf32>
    %72 = arith.mulf %67, %71 : vector<48x48xf32>
    %cst_32 = arith.constant dense<0.000000e+00> : vector<48x8xf32>
    %73 = tpu.matmul %72, %60, %cst_32 {dimension_numbers = #tpu.dot_dimension_numbers<[1], [0], [0], [1], [0, 0, 1, 1], [], []>} : vector<48x48xf32>, vector<48x8xf32>, vector<48x8xf32> -> vector<48x8xf32>
    %74 = vector.extract_strided_slice %39 {offsets = [0, 16], sizes = [48, 8], strides = [1, 1]} : vector<48x32xf32> to vector<48x8xf32>
    %75 = vector.extract_strided_slice %40 {offsets = [0, 16], sizes = [48, 8], strides = [1, 1]} : vector<48x32xf32> to vector<48x8xf32>
    %76 = vector.extract_strided_slice %41 {offsets = [0, 16], sizes = [48, 8], strides = [1, 1]} : vector<48x32xf32> to vector<48x8xf32>
    %cst_33 = arith.constant dense<0.000000e+00> : vector<48x48xf32>
    %77 = tpu.matmul %74, %75, %cst_33 {dimension_numbers = #tpu.dot_dimension_numbers<[1], [1], [0], [0], [0, 0, 1, 0], [], []>} : vector<48x8xf32>, vector<48x8xf32>, vector<48x48xf32> -> vector<48x48xf32>
    %78 = arith.addf %77, %5 : vector<48x48xf32>
    %cst_34 = arith.constant dense<0xFF800000> : vector<48xf32>
    %79 = vector.multi_reduction <maximumf>, %78, %cst_34 [1] : vector<48x48xf32> to vector<48xf32>
    %80 = vector.shape_cast %79 : vector<48xf32> to vector<48x1xf32>
    %81 = vector.broadcast %80 : vector<48x1xf32> to vector<48x48xf32>
    %82 = arith.subf %78, %81 : vector<48x48xf32>
    %83 = math.exp %82 : vector<48x48xf32>
    %cst_35 = arith.constant dense<0.000000e+00> : vector<48xf32>
    %84 = vector.multi_reduction <add>, %83, %cst_35 [1] : vector<48x48xf32> to vector<48xf32>
    %85 = vector.shape_cast %84 : vector<48xf32> to vector<48x1xf32>
    %86 = tpu.reciprocal %85 {approx = true} : vector<48x1xf32> -> vector<48x1xf32>
    %87 = vector.broadcast %86 : vector<48x1xf32> to vector<48x48xf32>
    %88 = arith.mulf %83, %87 : vector<48x48xf32>
    %cst_36 = arith.constant dense<0.000000e+00> : vector<48x8xf32>
    %89 = tpu.matmul %88, %76, %cst_36 {dimension_numbers = #tpu.dot_dimension_numbers<[1], [0], [0], [1], [0, 0, 1, 1], [], []>} : vector<48x48xf32>, vector<48x8xf32>, vector<48x8xf32> -> vector<48x8xf32>
    %90 = vector.extract_strided_slice %39 {offsets = [0, 24], sizes = [48, 8], strides = [1, 1]} : vector<48x32xf32> to vector<48x8xf32>
    %91 = vector.extract_strided_slice %40 {offsets = [0, 24], sizes = [48, 8], strides = [1, 1]} : vector<48x32xf32> to vector<48x8xf32>
    %92 = vector.extract_strided_slice %41 {offsets = [0, 24], sizes = [48, 8], strides = [1, 1]} : vector<48x32xf32> to vector<48x8xf32>
    %cst_37 = arith.constant dense<0.000000e+00> : vector<48x48xf32>
    %93 = tpu.matmul %90, %91, %cst_37 {dimension_numbers = #tpu.dot_dimension_numbers<[1], [1], [0], [0], [0, 0, 1, 0], [], []>} : vector<48x8xf32>, vector<48x8xf32>, vector<48x48xf32> -> vector<48x48xf32>
    %94 = arith.addf %93, %5 : vector<48x48xf32>
    %cst_38 = arith.constant dense<0xFF800000> : vector<48xf32>
    %95 = vector.multi_reduction <maximumf>, %94, %cst_38 [1] : vector<48x48xf32> to vector<48xf32>
    %96 = vector.shape_cast %95 : vector<48xf32> to vector<48x1xf32>
    %97 = vector.broadcast %96 : vector<48x1xf32> to vector<48x48xf32>
    %98 = arith.subf %94, %97 : vector<48x48xf32>
    %99 = math.exp %98 : vector<48x48xf32>
    %cst_39 = arith.constant dense<0.000000e+00> : vector<48xf32>
    %100 = vector.multi_reduction <add>, %99, %cst_39 [1] : vector<48x48xf32> to vector<48xf32>
    %101 = vector.shape_cast %100 : vector<48xf32> to vector<48x1xf32>
    %102 = tpu.reciprocal %101 {approx = true} : vector<48x1xf32> -> vector<48x1xf32>
    %103 = vector.broadcast %102 : vector<48x1xf32> to vector<48x48xf32>
    %104 = arith.mulf %99, %103 : vector<48x48xf32>
    %cst_40 = arith.constant dense<0.000000e+00> : vector<48x8xf32>
    %105 = tpu.matmul %104, %92, %cst_40 {dimension_numbers = #tpu.dot_dimension_numbers<[1], [0], [0], [1], [0, 0, 1, 1], [], []>} : vector<48x48xf32>, vector<48x8xf32>, vector<48x8xf32> -> vector<48x8xf32>
    %106 = tpu.concatenate %57, %73, %89, %105 in 1 : vector<48x8xf32>, vector<48x8xf32>, vector<48x8xf32>, vector<48x8xf32> -> vector<48x32xf32>
    %c0_41 = arith.constant 0 : index
    %c0_42 = arith.constant 0 : index
    %c0_43 = arith.constant 0 : index
    %107 = vector.load %arg8[%c0_41, %c0_42, %c0_43] : memref<2x32x32xf32, #tpu.memory_space<vmem>>, vector<1x32x32xf32>
    %108 = vector.shape_cast %107 : vector<1x32x32xf32> to vector<32x32xf32>
    %cst_44 = arith.constant dense<0.000000e+00> : vector<48x32xf32>
    %109 = tpu.matmul %106, %108, %cst_44 {dimension_numbers = #tpu.dot_dimension_numbers<[1], [0], [0], [1], [0, 0, 1, 1], [], []>} : vector<48x32xf32>, vector<32x32xf32>, vector<48x32xf32> -> vector<48x32xf32>
    %110 = arith.addf %4, %109 : vector<48x32xf32>
    %c0_45 = arith.constant 0 : index
    %c0_46 = arith.constant 0 : index
    %c0_47 = arith.constant 0 : index
    %111 = vector.load %arg9[%c0_45, %c0_46, %c0_47] : memref<2x1x32xf32, #tpu.memory_space<vmem>>, vector<1x1x32xf32>
    %112 = vector.shape_cast %111 : vector<1x1x32xf32> to vector<1x32xf32>
    %113 = vector.broadcast %112 : vector<1x32xf32> to vector<48x32xf32>
    %114 = arith.addf %110, %113 : vector<48x32xf32>
    %c0_48 = arith.constant 0 : index
    %c0_49 = arith.constant 0 : index
    %c0_50 = arith.constant 0 : index
    %115 = vector.load %arg10[%c0_48, %c0_49, %c0_50] : memref<2x1x32xf32, #tpu.memory_space<vmem>>, vector<1x1x32xf32>
    %116 = vector.shape_cast %115 : vector<1x1x32xf32> to vector<1x32xf32>
    %c0_51 = arith.constant 0 : index
    %c0_52 = arith.constant 0 : index
    %c0_53 = arith.constant 0 : index
    %117 = vector.load %arg11[%c0_51, %c0_52, %c0_53] : memref<2x1x32xf32, #tpu.memory_space<vmem>>, vector<1x1x32xf32>
    %118 = vector.shape_cast %117 : vector<1x1x32xf32> to vector<1x32xf32>
    %cst_54 = arith.constant dense<0.000000e+00> : vector<48xf32>
    %119 = vector.multi_reduction <add>, %114, %cst_54 [1] : vector<48x32xf32> to vector<48xf32>
    %120 = vector.shape_cast %119 : vector<48xf32> to vector<48x1xf32>
    %cst_55 = arith.constant 3.200000e+01 : f32
    %121 = vector.broadcast %cst_55 : f32 to vector<48x1xf32>
    %122 = arith.divf %120, %121 : vector<48x1xf32>
    %123 = vector.broadcast %122 : vector<48x1xf32> to vector<48x32xf32>
    %124 = arith.subf %114, %123 : vector<48x32xf32>
    %125 = arith.mulf %124, %124 : vector<48x32xf32>
    %cst_56 = arith.constant dense<0.000000e+00> : vector<48xf32>
    %126 = vector.multi_reduction <add>, %125, %cst_56 [1] : vector<48x32xf32> to vector<48xf32>
    %127 = vector.shape_cast %126 : vector<48xf32> to vector<48x1xf32>
    %cst_57 = arith.constant 3.200000e+01 : f32
    %128 = vector.broadcast %cst_57 : f32 to vector<48x1xf32>
    %129 = arith.divf %127, %128 : vector<48x1xf32>
    %130 = vector.broadcast %122 : vector<48x1xf32> to vector<48x32xf32>
    %131 = arith.subf %114, %130 : vector<48x32xf32>
    %cst_58 = arith.constant 9.99999997E-7 : f32
    %132 = vector.broadcast %cst_58 : f32 to vector<48x1xf32>
    %133 = arith.addf %129, %132 : vector<48x1xf32>
    %134 = math.rsqrt %133 : vector<48x1xf32>
    %135 = vector.broadcast %134 : vector<48x1xf32> to vector<48x32xf32>
    %136 = arith.mulf %131, %135 : vector<48x32xf32>
    %137 = vector.broadcast %116 : vector<1x32xf32> to vector<48x32xf32>
    %138 = arith.mulf %136, %137 : vector<48x32xf32>
    %139 = vector.broadcast %118 : vector<1x32xf32> to vector<48x32xf32>
    %140 = arith.addf %138, %139 : vector<48x32xf32>
    %c0_59 = arith.constant 0 : index
    %c0_60 = arith.constant 0 : index
    %c0_61 = arith.constant 0 : index
    %141 = vector.load %arg12[%c0_59, %c0_60, %c0_61] : memref<2x32x128xf32, #tpu.memory_space<vmem>>, vector<1x32x128xf32>
    %142 = vector.shape_cast %141 : vector<1x32x128xf32> to vector<32x128xf32>
    %cst_62 = arith.constant dense<0.000000e+00> : vector<48x128xf32>
    %143 = tpu.matmul %140, %142, %cst_62 {dimension_numbers = #tpu.dot_dimension_numbers<[1], [0], [0], [1], [0, 0, 1, 1], [], []>} : vector<48x32xf32>, vector<32x128xf32>, vector<48x128xf32> -> vector<48x128xf32>
    %c0_63 = arith.constant 0 : index
    %c0_64 = arith.constant 0 : index
    %c0_65 = arith.constant 0 : index
    %144 = vector.load %arg13[%c0_63, %c0_64, %c0_65] : memref<2x1x128xf32, #tpu.memory_space<vmem>>, vector<1x1x128xf32>
    %145 = vector.shape_cast %144 : vector<1x1x128xf32> to vector<1x128xf32>
    %146 = vector.broadcast %145 : vector<1x128xf32> to vector<48x128xf32>
    %147 = arith.addf %143, %146 : vector<48x128xf32>
    %148 = arith.mulf %147, %147 : vector<48x128xf32>
    %149 = arith.mulf %147, %148 : vector<48x128xf32>
    %cst_66 = arith.constant 4.471500e-02 : f32
    %150 = vector.broadcast %cst_66 : f32 to vector<48x128xf32>
    %151 = arith.mulf %150, %149 : vector<48x128xf32>
    %152 = arith.addf %147, %151 : vector<48x128xf32>
    %cst_67 = arith.constant 0.797884583 : f32
    %153 = vector.broadcast %cst_67 : f32 to vector<48x128xf32>
    %154 = arith.mulf %153, %152 : vector<48x128xf32>
    %155 = math.tanh %154 : vector<48x128xf32>
    %cst_68 = arith.constant 1.000000e+00 : f32
    %156 = vector.broadcast %cst_68 : f32 to vector<48x128xf32>
    %157 = arith.addf %156, %155 : vector<48x128xf32>
    %cst_69 = arith.constant 5.000000e-01 : f32
    %158 = vector.broadcast %cst_69 : f32 to vector<48x128xf32>
    %159 = arith.mulf %158, %157 : vector<48x128xf32>
    %160 = arith.mulf %147, %159 : vector<48x128xf32>
    %c0_70 = arith.constant 0 : index
    %c0_71 = arith.constant 0 : index
    %c0_72 = arith.constant 0 : index
    %161 = vector.load %arg14[%c0_70, %c0_71, %c0_72] : memref<2x128x32xf32, #tpu.memory_space<vmem>>, vector<1x128x32xf32>
    %162 = vector.shape_cast %161 : vector<1x128x32xf32> to vector<128x32xf32>
    %cst_73 = arith.constant dense<0.000000e+00> : vector<48x32xf32>
    %163 = tpu.matmul %160, %162, %cst_73 {dimension_numbers = #tpu.dot_dimension_numbers<[1], [0], [0], [1], [0, 0, 1, 1], [], []>} : vector<48x128xf32>, vector<128x32xf32>, vector<48x32xf32> -> vector<48x32xf32>
    %164 = arith.addf %114, %163 : vector<48x32xf32>
    %c0_74 = arith.constant 0 : index
    %c0_75 = arith.constant 0 : index
    %c0_76 = arith.constant 0 : index
    %165 = vector.load %arg15[%c0_74, %c0_75, %c0_76] : memref<2x1x32xf32, #tpu.memory_space<vmem>>, vector<1x1x32xf32>
    %166 = vector.shape_cast %165 : vector<1x1x32xf32> to vector<1x32xf32>
    %167 = vector.broadcast %166 : vector<1x32xf32> to vector<48x32xf32>
    %168 = arith.addf %164, %167 : vector<48x32xf32>
    %c1 = arith.constant 1 : index
    %c0_77 = arith.constant 0 : index
    %c0_78 = arith.constant 0 : index
    %169 = vector.load %arg4[%c1, %c0_77, %c0_78] : memref<2x1x32xf32, #tpu.memory_space<vmem>>, vector<1x1x32xf32>
    %170 = vector.shape_cast %169 : vector<1x1x32xf32> to vector<1x32xf32>
    %c1_79 = arith.constant 1 : index
    %c0_80 = arith.constant 0 : index
    %c0_81 = arith.constant 0 : index
    %171 = vector.load %arg5[%c1_79, %c0_80, %c0_81] : memref<2x1x32xf32, #tpu.memory_space<vmem>>, vector<1x1x32xf32>
    %172 = vector.shape_cast %171 : vector<1x1x32xf32> to vector<1x32xf32>
    %cst_82 = arith.constant dense<0.000000e+00> : vector<48xf32>
    %173 = vector.multi_reduction <add>, %168, %cst_82 [1] : vector<48x32xf32> to vector<48xf32>
    %174 = vector.shape_cast %173 : vector<48xf32> to vector<48x1xf32>
    %cst_83 = arith.constant 3.200000e+01 : f32
    %175 = vector.broadcast %cst_83 : f32 to vector<48x1xf32>
    %176 = arith.divf %174, %175 : vector<48x1xf32>
    %177 = vector.broadcast %176 : vector<48x1xf32> to vector<48x32xf32>
    %178 = arith.subf %168, %177 : vector<48x32xf32>
    %179 = arith.mulf %178, %178 : vector<48x32xf32>
    %cst_84 = arith.constant dense<0.000000e+00> : vector<48xf32>
    %180 = vector.multi_reduction <add>, %179, %cst_84 [1] : vector<48x32xf32> to vector<48xf32>
    %181 = vector.shape_cast %180 : vector<48xf32> to vector<48x1xf32>
    %cst_85 = arith.constant 3.200000e+01 : f32
    %182 = vector.broadcast %cst_85 : f32 to vector<48x1xf32>
    %183 = arith.divf %181, %182 : vector<48x1xf32>
    %184 = vector.broadcast %176 : vector<48x1xf32> to vector<48x32xf32>
    %185 = arith.subf %168, %184 : vector<48x32xf32>
    %cst_86 = arith.constant 9.99999997E-7 : f32
    %186 = vector.broadcast %cst_86 : f32 to vector<48x1xf32>
    %187 = arith.addf %183, %186 : vector<48x1xf32>
    %188 = math.rsqrt %187 : vector<48x1xf32>
    %189 = vector.broadcast %188 : vector<48x1xf32> to vector<48x32xf32>
    %190 = arith.mulf %185, %189 : vector<48x32xf32>
    %191 = vector.broadcast %170 : vector<1x32xf32> to vector<48x32xf32>
    %192 = arith.mulf %190, %191 : vector<48x32xf32>
    %193 = vector.broadcast %172 : vector<1x32xf32> to vector<48x32xf32>
    %194 = arith.addf %192, %193 : vector<48x32xf32>
    %c1_87 = arith.constant 1 : index
    %c0_88 = arith.constant 0 : index
    %c0_89 = arith.constant 0 : index
    %195 = vector.load %arg6[%c1_87, %c0_88, %c0_89] : memref<2x32x96xf32, #tpu.memory_space<vmem>>, vector<1x32x96xf32>
    %196 = vector.shape_cast %195 : vector<1x32x96xf32> to vector<32x96xf32>
    %cst_90 = arith.constant dense<0.000000e+00> : vector<48x96xf32>
    %197 = tpu.matmul %194, %196, %cst_90 {dimension_numbers = #tpu.dot_dimension_numbers<[1], [0], [0], [1], [0, 0, 1, 1], [], []>} : vector<48x32xf32>, vector<32x96xf32>, vector<48x96xf32> -> vector<48x96xf32>
    %c1_91 = arith.constant 1 : index
    %c0_92 = arith.constant 0 : index
    %c0_93 = arith.constant 0 : index
    %198 = vector.load %arg7[%c1_91, %c0_92, %c0_93] : memref<2x1x96xf32, #tpu.memory_space<vmem>>, vector<1x1x96xf32>
    %199 = vector.shape_cast %198 : vector<1x1x96xf32> to vector<1x96xf32>
    %200 = vector.broadcast %199 : vector<1x96xf32> to vector<48x96xf32>
    %201 = arith.addf %197, %200 : vector<48x96xf32>
    %202 = vector.extract_strided_slice %201 {offsets = [0, 0], sizes = [48, 32], strides = [1, 1]} : vector<48x96xf32> to vector<48x32xf32>
    %203 = vector.extract_strided_slice %201 {offsets = [0, 32], sizes = [48, 32], strides = [1, 1]} : vector<48x96xf32> to vector<48x32xf32>
    %204 = vector.extract_strided_slice %201 {offsets = [0, 64], sizes = [48, 32], strides = [1, 1]} : vector<48x96xf32> to vector<48x32xf32>
    %205 = vector.extract_strided_slice %202 {offsets = [0, 0], sizes = [48, 8], strides = [1, 1]} : vector<48x32xf32> to vector<48x8xf32>
    %206 = vector.extract_strided_slice %203 {offsets = [0, 0], sizes = [48, 8], strides = [1, 1]} : vector<48x32xf32> to vector<48x8xf32>
    %207 = vector.extract_strided_slice %204 {offsets = [0, 0], sizes = [48, 8], strides = [1, 1]} : vector<48x32xf32> to vector<48x8xf32>
    %cst_94 = arith.constant dense<0.000000e+00> : vector<48x48xf32>
    %208 = tpu.matmul %205, %206, %cst_94 {dimension_numbers = #tpu.dot_dimension_numbers<[1], [1], [0], [0], [0, 0, 1, 0], [], []>} : vector<48x8xf32>, vector<48x8xf32>, vector<48x48xf32> -> vector<48x48xf32>
    %209 = arith.addf %208, %5 : vector<48x48xf32>
    %cst_95 = arith.constant dense<0xFF800000> : vector<48xf32>
    %210 = vector.multi_reduction <maximumf>, %209, %cst_95 [1] : vector<48x48xf32> to vector<48xf32>
    %211 = vector.shape_cast %210 : vector<48xf32> to vector<48x1xf32>
    %212 = vector.broadcast %211 : vector<48x1xf32> to vector<48x48xf32>
    %213 = arith.subf %209, %212 : vector<48x48xf32>
    %214 = math.exp %213 : vector<48x48xf32>
    %cst_96 = arith.constant dense<0.000000e+00> : vector<48xf32>
    %215 = vector.multi_reduction <add>, %214, %cst_96 [1] : vector<48x48xf32> to vector<48xf32>
    %216 = vector.shape_cast %215 : vector<48xf32> to vector<48x1xf32>
    %217 = tpu.reciprocal %216 {approx = true} : vector<48x1xf32> -> vector<48x1xf32>
    %218 = vector.broadcast %217 : vector<48x1xf32> to vector<48x48xf32>
    %219 = arith.mulf %214, %218 : vector<48x48xf32>
    %cst_97 = arith.constant dense<0.000000e+00> : vector<48x8xf32>
    %220 = tpu.matmul %219, %207, %cst_97 {dimension_numbers = #tpu.dot_dimension_numbers<[1], [0], [0], [1], [0, 0, 1, 1], [], []>} : vector<48x48xf32>, vector<48x8xf32>, vector<48x8xf32> -> vector<48x8xf32>
    %221 = vector.extract_strided_slice %202 {offsets = [0, 8], sizes = [48, 8], strides = [1, 1]} : vector<48x32xf32> to vector<48x8xf32>
    %222 = vector.extract_strided_slice %203 {offsets = [0, 8], sizes = [48, 8], strides = [1, 1]} : vector<48x32xf32> to vector<48x8xf32>
    %223 = vector.extract_strided_slice %204 {offsets = [0, 8], sizes = [48, 8], strides = [1, 1]} : vector<48x32xf32> to vector<48x8xf32>
    %cst_98 = arith.constant dense<0.000000e+00> : vector<48x48xf32>
    %224 = tpu.matmul %221, %222, %cst_98 {dimension_numbers = #tpu.dot_dimension_numbers<[1], [1], [0], [0], [0, 0, 1, 0], [], []>} : vector<48x8xf32>, vector<48x8xf32>, vector<48x48xf32> -> vector<48x48xf32>
    %225 = arith.addf %224, %5 : vector<48x48xf32>
    %cst_99 = arith.constant dense<0xFF800000> : vector<48xf32>
    %226 = vector.multi_reduction <maximumf>, %225, %cst_99 [1] : vector<48x48xf32> to vector<48xf32>
    %227 = vector.shape_cast %226 : vector<48xf32> to vector<48x1xf32>
    %228 = vector.broadcast %227 : vector<48x1xf32> to vector<48x48xf32>
    %229 = arith.subf %225, %228 : vector<48x48xf32>
    %230 = math.exp %229 : vector<48x48xf32>
    %cst_100 = arith.constant dense<0.000000e+00> : vector<48xf32>
    %231 = vector.multi_reduction <add>, %230, %cst_100 [1] : vector<48x48xf32> to vector<48xf32>
    %232 = vector.shape_cast %231 : vector<48xf32> to vector<48x1xf32>
    %233 = tpu.reciprocal %232 {approx = true} : vector<48x1xf32> -> vector<48x1xf32>
    %234 = vector.broadcast %233 : vector<48x1xf32> to vector<48x48xf32>
    %235 = arith.mulf %230, %234 : vector<48x48xf32>
    %cst_101 = arith.constant dense<0.000000e+00> : vector<48x8xf32>
    %236 = tpu.matmul %235, %223, %cst_101 {dimension_numbers = #tpu.dot_dimension_numbers<[1], [0], [0], [1], [0, 0, 1, 1], [], []>} : vector<48x48xf32>, vector<48x8xf32>, vector<48x8xf32> -> vector<48x8xf32>
    %237 = vector.extract_strided_slice %202 {offsets = [0, 16], sizes = [48, 8], strides = [1, 1]} : vector<48x32xf32> to vector<48x8xf32>
    %238 = vector.extract_strided_slice %203 {offsets = [0, 16], sizes = [48, 8], strides = [1, 1]} : vector<48x32xf32> to vector<48x8xf32>
    %239 = vector.extract_strided_slice %204 {offsets = [0, 16], sizes = [48, 8], strides = [1, 1]} : vector<48x32xf32> to vector<48x8xf32>
    %cst_102 = arith.constant dense<0.000000e+00> : vector<48x48xf32>
    %240 = tpu.matmul %237, %238, %cst_102 {dimension_numbers = #tpu.dot_dimension_numbers<[1], [1], [0], [0], [0, 0, 1, 0], [], []>} : vector<48x8xf32>, vector<48x8xf32>, vector<48x48xf32> -> vector<48x48xf32>
    %241 = arith.addf %240, %5 : vector<48x48xf32>
    %cst_103 = arith.constant dense<0xFF800000> : vector<48xf32>
    %242 = vector.multi_reduction <maximumf>, %241, %cst_103 [1] : vector<48x48xf32> to vector<48xf32>
    %243 = vector.shape_cast %242 : vector<48xf32> to vector<48x1xf32>
    %244 = vector.broadcast %243 : vector<48x1xf32> to vector<48x48xf32>
    %245 = arith.subf %241, %244 : vector<48x48xf32>
    %246 = math.exp %245 : vector<48x48xf32>
    %cst_104 = arith.constant dense<0.000000e+00> : vector<48xf32>
    %247 = vector.multi_reduction <add>, %246, %cst_104 [1] : vector<48x48xf32> to vector<48xf32>
    %248 = vector.shape_cast %247 : vector<48xf32> to vector<48x1xf32>
    %249 = tpu.reciprocal %248 {approx = true} : vector<48x1xf32> -> vector<48x1xf32>
    %250 = vector.broadcast %249 : vector<48x1xf32> to vector<48x48xf32>
    %251 = arith.mulf %246, %250 : vector<48x48xf32>
    %cst_105 = arith.constant dense<0.000000e+00> : vector<48x8xf32>
    %252 = tpu.matmul %251, %239, %cst_105 {dimension_numbers = #tpu.dot_dimension_numbers<[1], [0], [0], [1], [0, 0, 1, 1], [], []>} : vector<48x48xf32>, vector<48x8xf32>, vector<48x8xf32> -> vector<48x8xf32>
    %253 = vector.extract_strided_slice %202 {offsets = [0, 24], sizes = [48, 8], strides = [1, 1]} : vector<48x32xf32> to vector<48x8xf32>
    %254 = vector.extract_strided_slice %203 {offsets = [0, 24], sizes = [48, 8], strides = [1, 1]} : vector<48x32xf32> to vector<48x8xf32>
    %255 = vector.extract_strided_slice %204 {offsets = [0, 24], sizes = [48, 8], strides = [1, 1]} : vector<48x32xf32> to vector<48x8xf32>
    %cst_106 = arith.constant dense<0.000000e+00> : vector<48x48xf32>
    %256 = tpu.matmul %253, %254, %cst_106 {dimension_numbers = #tpu.dot_dimension_numbers<[1], [1], [0], [0], [0, 0, 1, 0], [], []>} : vector<48x8xf32>, vector<48x8xf32>, vector<48x48xf32> -> vector<48x48xf32>
    %257 = arith.addf %256, %5 : vector<48x48xf32>
    %cst_107 = arith.constant dense<0xFF800000> : vector<48xf32>
    %258 = vector.multi_reduction <maximumf>, %257, %cst_107 [1] : vector<48x48xf32> to vector<48xf32>
    %259 = vector.shape_cast %258 : vector<48xf32> to vector<48x1xf32>
    %260 = vector.broadcast %259 : vector<48x1xf32> to vector<48x48xf32>
    %261 = arith.subf %257, %260 : vector<48x48xf32>
    %262 = math.exp %261 : vector<48x48xf32>
    %cst_108 = arith.constant dense<0.000000e+00> : vector<48xf32>
    %263 = vector.multi_reduction <add>, %262, %cst_108 [1] : vector<48x48xf32> to vector<48xf32>
    %264 = vector.shape_cast %263 : vector<48xf32> to vector<48x1xf32>
    %265 = tpu.reciprocal %264 {approx = true} : vector<48x1xf32> -> vector<48x1xf32>
    %266 = vector.broadcast %265 : vector<48x1xf32> to vector<48x48xf32>
    %267 = arith.mulf %262, %266 : vector<48x48xf32>
    %cst_109 = arith.constant dense<0.000000e+00> : vector<48x8xf32>
    %268 = tpu.matmul %267, %255, %cst_109 {dimension_numbers = #tpu.dot_dimension_numbers<[1], [0], [0], [1], [0, 0, 1, 1], [], []>} : vector<48x48xf32>, vector<48x8xf32>, vector<48x8xf32> -> vector<48x8xf32>
    %269 = tpu.concatenate %220, %236, %252, %268 in 1 : vector<48x8xf32>, vector<48x8xf32>, vector<48x8xf32>, vector<48x8xf32> -> vector<48x32xf32>
    %c1_110 = arith.constant 1 : index
    %c0_111 = arith.constant 0 : index
    %c0_112 = arith.constant 0 : index
    %270 = vector.load %arg8[%c1_110, %c0_111, %c0_112] : memref<2x32x32xf32, #tpu.memory_space<vmem>>, vector<1x32x32xf32>
    %271 = vector.shape_cast %270 : vector<1x32x32xf32> to vector<32x32xf32>
    %cst_113 = arith.constant dense<0.000000e+00> : vector<48x32xf32>
    %272 = tpu.matmul %269, %271, %cst_113 {dimension_numbers = #tpu.dot_dimension_numbers<[1], [0], [0], [1], [0, 0, 1, 1], [], []>} : vector<48x32xf32>, vector<32x32xf32>, vector<48x32xf32> -> vector<48x32xf32>
    %273 = arith.addf %168, %272 : vector<48x32xf32>
    %c1_114 = arith.constant 1 : index
    %c0_115 = arith.constant 0 : index
    %c0_116 = arith.constant 0 : index
    %274 = vector.load %arg9[%c1_114, %c0_115, %c0_116] : memref<2x1x32xf32, #tpu.memory_space<vmem>>, vector<1x1x32xf32>
    %275 = vector.shape_cast %274 : vector<1x1x32xf32> to vector<1x32xf32>
    %276 = vector.broadcast %275 : vector<1x32xf32> to vector<48x32xf32>
    %277 = arith.addf %273, %276 : vector<48x32xf32>
    %c1_117 = arith.constant 1 : index
    %c0_118 = arith.constant 0 : index
    %c0_119 = arith.constant 0 : index
    %278 = vector.load %arg10[%c1_117, %c0_118, %c0_119] : memref<2x1x32xf32, #tpu.memory_space<vmem>>, vector<1x1x32xf32>
    %279 = vector.shape_cast %278 : vector<1x1x32xf32> to vector<1x32xf32>
    %c1_120 = arith.constant 1 : index
    %c0_121 = arith.constant 0 : index
    %c0_122 = arith.constant 0 : index
    %280 = vector.load %arg11[%c1_120, %c0_121, %c0_122] : memref<2x1x32xf32, #tpu.memory_space<vmem>>, vector<1x1x32xf32>
    %281 = vector.shape_cast %280 : vector<1x1x32xf32> to vector<1x32xf32>
    %cst_123 = arith.constant dense<0.000000e+00> : vector<48xf32>
    %282 = vector.multi_reduction <add>, %277, %cst_123 [1] : vector<48x32xf32> to vector<48xf32>
    %283 = vector.shape_cast %282 : vector<48xf32> to vector<48x1xf32>
    %cst_124 = arith.constant 3.200000e+01 : f32
    %284 = vector.broadcast %cst_124 : f32 to vector<48x1xf32>
    %285 = arith.divf %283, %284 : vector<48x1xf32>
    %286 = vector.broadcast %285 : vector<48x1xf32> to vector<48x32xf32>
    %287 = arith.subf %277, %286 : vector<48x32xf32>
    %288 = arith.mulf %287, %287 : vector<48x32xf32>
    %cst_125 = arith.constant dense<0.000000e+00> : vector<48xf32>
    %289 = vector.multi_reduction <add>, %288, %cst_125 [1] : vector<48x32xf32> to vector<48xf32>
    %290 = vector.shape_cast %289 : vector<48xf32> to vector<48x1xf32>
    %cst_126 = arith.constant 3.200000e+01 : f32
    %291 = vector.broadcast %cst_126 : f32 to vector<48x1xf32>
    %292 = arith.divf %290, %291 : vector<48x1xf32>
    %293 = vector.broadcast %285 : vector<48x1xf32> to vector<48x32xf32>
    %294 = arith.subf %277, %293 : vector<48x32xf32>
    %cst_127 = arith.constant 9.99999997E-7 : f32
    %295 = vector.broadcast %cst_127 : f32 to vector<48x1xf32>
    %296 = arith.addf %292, %295 : vector<48x1xf32>
    %297 = math.rsqrt %296 : vector<48x1xf32>
    %298 = vector.broadcast %297 : vector<48x1xf32> to vector<48x32xf32>
    %299 = arith.mulf %294, %298 : vector<48x32xf32>
    %300 = vector.broadcast %279 : vector<1x32xf32> to vector<48x32xf32>
    %301 = arith.mulf %299, %300 : vector<48x32xf32>
    %302 = vector.broadcast %281 : vector<1x32xf32> to vector<48x32xf32>
    %303 = arith.addf %301, %302 : vector<48x32xf32>
    %c1_128 = arith.constant 1 : index
    %c0_129 = arith.constant 0 : index
    %c0_130 = arith.constant 0 : index
    %304 = vector.load %arg12[%c1_128, %c0_129, %c0_130] : memref<2x32x128xf32, #tpu.memory_space<vmem>>, vector<1x32x128xf32>
    %305 = vector.shape_cast %304 : vector<1x32x128xf32> to vector<32x128xf32>
    %cst_131 = arith.constant dense<0.000000e+00> : vector<48x128xf32>
    %306 = tpu.matmul %303, %305, %cst_131 {dimension_numbers = #tpu.dot_dimension_numbers<[1], [0], [0], [1], [0, 0, 1, 1], [], []>} : vector<48x32xf32>, vector<32x128xf32>, vector<48x128xf32> -> vector<48x128xf32>
    %c1_132 = arith.constant 1 : index
    %c0_133 = arith.constant 0 : index
    %c0_134 = arith.constant 0 : index
    %307 = vector.load %arg13[%c1_132, %c0_133, %c0_134] : memref<2x1x128xf32, #tpu.memory_space<vmem>>, vector<1x1x128xf32>
    %308 = vector.shape_cast %307 : vector<1x1x128xf32> to vector<1x128xf32>
    %309 = vector.broadcast %308 : vector<1x128xf32> to vector<48x128xf32>
    %310 = arith.addf %306, %309 : vector<48x128xf32>
    %311 = arith.mulf %310, %310 : vector<48x128xf32>
    %312 = arith.mulf %310, %311 : vector<48x128xf32>
    %cst_135 = arith.constant 4.471500e-02 : f32
    %313 = vector.broadcast %cst_135 : f32 to vector<48x128xf32>
    %314 = arith.mulf %313, %312 : vector<48x128xf32>
    %315 = arith.addf %310, %314 : vector<48x128xf32>
    %cst_136 = arith.constant 0.797884583 : f32
    %316 = vector.broadcast %cst_136 : f32 to vector<48x128xf32>
    %317 = arith.mulf %316, %315 : vector<48x128xf32>
    %318 = math.tanh %317 : vector<48x128xf32>
    %cst_137 = arith.constant 1.000000e+00 : f32
    %319 = vector.broadcast %cst_137 : f32 to vector<48x128xf32>
    %320 = arith.addf %319, %318 : vector<48x128xf32>
    %cst_138 = arith.constant 5.000000e-01 : f32
    %321 = vector.broadcast %cst_138 : f32 to vector<48x128xf32>
    %322 = arith.mulf %321, %320 : vector<48x128xf32>
    %323 = arith.mulf %310, %322 : vector<48x128xf32>
    %c1_139 = arith.constant 1 : index
    %c0_140 = arith.constant 0 : index
    %c0_141 = arith.constant 0 : index
    %324 = vector.load %arg14[%c1_139, %c0_140, %c0_141] : memref<2x128x32xf32, #tpu.memory_space<vmem>>, vector<1x128x32xf32>
    %325 = vector.shape_cast %324 : vector<1x128x32xf32> to vector<128x32xf32>
    %cst_142 = arith.constant dense<0.000000e+00> : vector<48x32xf32>
    %326 = tpu.matmul %323, %325, %cst_142 {dimension_numbers = #tpu.dot_dimension_numbers<[1], [0], [0], [1], [0, 0, 1, 1], [], []>} : vector<48x128xf32>, vector<128x32xf32>, vector<48x32xf32> -> vector<48x32xf32>
    %327 = arith.addf %277, %326 : vector<48x32xf32>
    %c1_143 = arith.constant 1 : index
    %c0_144 = arith.constant 0 : index
    %c0_145 = arith.constant 0 : index
    %328 = vector.load %arg15[%c1_143, %c0_144, %c0_145] : memref<2x1x32xf32, #tpu.memory_space<vmem>>, vector<1x1x32xf32>
    %329 = vector.shape_cast %328 : vector<1x1x32xf32> to vector<1x32xf32>
    %330 = vector.broadcast %329 : vector<1x32xf32> to vector<48x32xf32>
    %331 = arith.addf %327, %330 : vector<48x32xf32>
    %332 = vector.extract_strided_slice %331 {offsets = [0, 0], sizes = [1, 32], strides = [1, 1]} : vector<48x32xf32> to vector<1x32xf32>
    %333 = vector.extract_strided_slice %331 {offsets = [24, 0], sizes = [1, 32], strides = [1, 1]} : vector<48x32xf32> to vector<1x32xf32>
    %334 = tpu.concatenate %332, %333 in 0 : vector<1x32xf32>, vector<1x32xf32> -> vector<2x32xf32>
    %c0_146 = arith.constant 0 : index
    %c0_147 = arith.constant 0 : index
    %335 = vector.load %arg16[%c0_146, %c0_147] : memref<1x32xf32, #tpu.memory_space<vmem>>, vector<1x32xf32>
    %c0_148 = arith.constant 0 : index
    %c0_149 = arith.constant 0 : index
    %336 = vector.load %arg17[%c0_148, %c0_149] : memref<1x32xf32, #tpu.memory_space<vmem>>, vector<1x32xf32>
    %cst_150 = arith.constant dense<0.000000e+00> : vector<2xf32>
    %337 = vector.multi_reduction <add>, %334, %cst_150 [1] : vector<2x32xf32> to vector<2xf32>
    %338 = vector.shape_cast %337 : vector<2xf32> to vector<2x1xf32>
    %cst_151 = arith.constant 3.200000e+01 : f32
    %339 = vector.broadcast %cst_151 : f32 to vector<2x1xf32>
    %340 = arith.divf %338, %339 : vector<2x1xf32>
    %341 = vector.broadcast %340 : vector<2x1xf32> to vector<2x32xf32>
    %342 = arith.subf %334, %341 : vector<2x32xf32>
    %343 = arith.mulf %342, %342 : vector<2x32xf32>
    %cst_152 = arith.constant dense<0.000000e+00> : vector<2xf32>
    %344 = vector.multi_reduction <add>, %343, %cst_152 [1] : vector<2x32xf32> to vector<2xf32>
    %345 = vector.shape_cast %344 : vector<2xf32> to vector<2x1xf32>
    %cst_153 = arith.constant 3.200000e+01 : f32
    %346 = vector.broadcast %cst_153 : f32 to vector<2x1xf32>
    %347 = arith.divf %345, %346 : vector<2x1xf32>
    %348 = vector.broadcast %340 : vector<2x1xf32> to vector<2x32xf32>
    %349 = arith.subf %334, %348 : vector<2x32xf32>
    %cst_154 = arith.constant 9.99999997E-7 : f32
    %350 = vector.broadcast %cst_154 : f32 to vector<2x1xf32>
    %351 = arith.addf %347, %350 : vector<2x1xf32>
    %352 = math.rsqrt %351 : vector<2x1xf32>
    %353 = vector.broadcast %352 : vector<2x1xf32> to vector<2x32xf32>
    %354 = arith.mulf %349, %353 : vector<2x32xf32>
    %355 = vector.broadcast %335 : vector<1x32xf32> to vector<2x32xf32>
    %356 = arith.mulf %354, %355 : vector<2x32xf32>
    %357 = vector.broadcast %336 : vector<1x32xf32> to vector<2x32xf32>
    %358 = arith.addf %356, %357 : vector<2x32xf32>
    %c0_155 = arith.constant 0 : index
    %c0_156 = arith.constant 0 : index
    %359 = vector.load %arg18[%c0_155, %c0_156] : memref<32x128xf32, #tpu.memory_space<vmem>>, vector<32x128xf32>
    %cst_157 = arith.constant dense<0.000000e+00> : vector<2x128xf32>
    %360 = tpu.matmul %358, %359, %cst_157 {dimension_numbers = #tpu.dot_dimension_numbers<[1], [0], [0], [1], [0, 0, 1, 1], [], []>} : vector<2x32xf32>, vector<32x128xf32>, vector<2x128xf32> -> vector<2x128xf32>
    %c0_158 = arith.constant 0 : index
    %c0_159 = arith.constant 0 : index
    %361 = vector.load %arg19[%c0_158, %c0_159] : memref<1x128xf32, #tpu.memory_space<vmem>>, vector<1x128xf32>
    %362 = vector.broadcast %361 : vector<1x128xf32> to vector<2x128xf32>
    %363 = arith.addf %360, %362 : vector<2x128xf32>
    %c0_160 = arith.constant 0 : index
    %c0_161 = arith.constant 0 : index
    %364 = vector.load %arg20[%c0_160, %c0_161] : memref<2x128xf32, #tpu.memory_space<vmem>>, vector<2x128xf32>
    tpu.vector_store %arg20[%c0_160, %c0_161], %363 {strides = array<i32>} : memref<2x128xf32, #tpu.memory_space<vmem>>, vector<2x128xf32>,
    return
  }
}

</mosaic_0001>

<llo_original>
// kernel: vit_forward.1
$region0: #{vit_forward.1}
  #allocation0 [shape = 'u32[]', space=smem, size = 0x4, offset = 0x4, fixed_abs, tag = 'smem constant byte address 0x4 - core index']
  #allocation1 [shape = 'u32[144,128]{1,0:T(1,128)}', space=vmem, size = 0x12000, scoped, tag = 'internal scratch']
  %s0 = inlined_call_operand.vmem [shape: f32[48,48], index: 0, kind: input, shape index: {}]
  %s1 = inlined_call_operand.vmem [shape: f32[48,32], index: 1, kind: input, shape index: {}]
  %s2 = inlined_call_operand.vmem [shape: f32[48,32], index: 2, kind: input, shape index: {}]
  %s3 = inlined_call_operand.vmem [shape: f32[48,48], index: 3, kind: input, shape index: {}]
  %s4 = inlined_call_operand.vmem [shape: f32[2,1,32], index: 4, kind: input, shape index: {}]
  %s5 = inlined_call_operand.vmem [shape: f32[2,1,32], index: 5, kind: input, shape index: {}]
  %s6 = inlined_call_operand.vmem [shape: f32[2,32,96], index: 6, kind: input, shape index: {}]
  %s7 = inlined_call_operand.vmem [shape: f32[2,1,96], index: 7, kind: input, shape index: {}]
  %s8 = inlined_call_operand.vmem [shape: f32[2,32,32], index: 8, kind: input, shape index: {}]
  %s9 = inlined_call_operand.vmem [shape: f32[2,1,32], index: 9, kind: input, shape index: {}]
  %s10 = inlined_call_operand.vmem [shape: f32[2,1,32], index: 10, kind: input, shape index: {}]
  %s11 = inlined_call_operand.vmem [shape: f32[2,1,32], index: 11, kind: input, shape index: {}]
  %s12 = inlined_call_operand.vmem [shape: f32[2,32,128], index: 12, kind: input, shape index: {}]
  %s13 = inlined_call_operand.vmem [shape: f32[2,1,128], index: 13, kind: input, shape index: {}]
  %s14 = inlined_call_operand.vmem [shape: f32[2,128,32], index: 14, kind: input, shape index: {}]
  %s15 = inlined_call_operand.vmem [shape: f32[2,1,32], index: 15, kind: input, shape index: {}]
  %s16 = inlined_call_operand.vmem [shape: f32[1,32], index: 16, kind: input, shape index: {}]
  %s17 = inlined_call_operand.vmem [shape: f32[1,32], index: 17, kind: input, shape index: {}]
  %s18 = inlined_call_operand.vmem [shape: f32[32,128], index: 18, kind: input, shape index: {}]
  %s19 = inlined_call_operand.vmem [shape: f32[1,128], index: 19, kind: input, shape index: {}]
  %s20 = inlined_call_operand.hbm [shape: f32[2,128], index: 20, kind: output, shape index: {}]
  %s21 = sld [smem:[#allocation0]]
  $region90: #{vit_forward.1} parent=0
    _
  %s23 = ssub.s32 1, %s21
  %s24 = scalar_select 0, %s23, %s21
  $region1: #{vit_forward.1} parent=0
    #allocation2 [shape = 'u8[1024]{0}', space=vmem, size = 0x400, scoped, tag = 'output window, operand 0, single buffered']
    #allocation3 [shape = 's32[1]{0}', space=sflag, size = 0x4, scoped, tag = 'scoped memory for vit_forward.1']
    %25 = vsyncpa [#allocation3], 0
    // Predicated region
    $region2: #{vit_forward.1} parent=1 // pred_check
      _
    $region3: #{vit_forward.1} parent=1 // pred_check_branch
      %27 = sbr.rel (0) target = $region5
    $region4: #{vit_forward.1} parent=1 // pred_region
      _
    $region5: #{vit_forward.1} parent=1 // pred_fallthru
      _
    // Predicated region
    $region6: #{vit_forward.1} parent=1 // pred_check
      _
    $region7: #{vit_forward.1} parent=1 // pred_check_branch
      %29 = sbr.rel (0) target = $region9
    $region8: #{vit_forward.1} parent=1 // pred_region
      _
    $region9: #{vit_forward.1} parent=1 // pred_fallthru
      _
    // Predicated region
    $region10: #{vit_forward.1} parent=1 // pred_check
      _
    $region11: #{vit_forward.1} parent=1 // pred_check_branch
      %31 = sbr.rel (0) target = $region13
    $region12: #{vit_forward.1} parent=1 // pred_region
      _
    $region13: #{vit_forward.1} parent=1 // pred_fallthru
      _
    // Predicated region
    $region14: #{vit_forward.1} parent=1 // pred_check
      _
    $region15: #{vit_forward.1} parent=1 // pred_check_branch
      %33 = sbr.rel (0) target = $region17
    $region16: #{vit_forward.1} parent=1 // pred_region
      _
    $region17: #{vit_forward.1} parent=1 // pred_fallthru
      _
    // Predicated region
    $region18: #{vit_forward.1} parent=1 // pred_check
      _
    $region19: #{vit_forward.1} parent=1 // pred_check_branch
      %35 = sbr.rel (0) target = $region21
    $region20: #{vit_forward.1} parent=1 // pred_region
      _
    $region21: #{vit_forward.1} parent=1 // pred_fallthru
      _
    // Predicated region
    $region22: #{vit_forward.1} parent=1 // pred_check
      _
    $region23: #{vit_forward.1} parent=1 // pred_check_branch
      %37 = sbr.rel (0) target = $region25
    $region24: #{vit_forward.1} parent=1 // pred_region
      _
    $region25: #{vit_forward.1} parent=1 // pred_fallthru
      _
    // Predicated region
    $region26: #{vit_forward.1} parent=1 // pred_check
      _
    $region27: #{vit_forward.1} parent=1 // pred_check_branch
      %39 = sbr.rel (0) target = $region29
    $region28: #{vit_forward.1} parent=1 // pred_region
      _
    $region29: #{vit_forward.1} parent=1 // pred_fallthru
      _
    // Predicated region
    $region30: #{vit_forward.1} parent=1 // pred_check
      _
    $region31: #{vit_forward.1} parent=1 // pred_check_branch
      %41 = sbr.rel (0) target = $region33
    $region32: #{vit_forward.1} parent=1 // pred_region
      _
    $region33: #{vit_forward.1} parent=1 // pred_fallthru
      _
    // Predicated region
    $region34: #{vit_forward.1} parent=1 // pred_check
      _
    $region35: #{vit_forward.1} parent=1 // pred_check_branch
      %43 = sbr.rel (0) target = $region37
    $region36: #{vit_forward.1} parent=1 // pred_region
      _
    $region37: #{vit_forward.1} parent=1 // pred_fallthru
      _
    // Predicated region
    $region38: #{vit_forward.1} parent=1 // pred_check
      _
    $region39: #{vit_forward.1} parent=1 // pred_check_branch
      %45 = sbr.rel (0) target = $region41
    $region40: #{vit_forward.1} parent=1 // pred_region
      _
    $region41: #{vit_forward.1} parent=1 // pred_fallthru
      _
    // Predicated region
    $region42: #{vit_forward.1} parent=1 // pred_check
      _
    $region43: #{vit_forward.1} parent=1 // pred_check_branch
      %47 = sbr.rel (0) target = $region45
    $region44: #{vit_forward.1} parent=1 // pred_region
      _
    $region45: #{vit_forward.1} parent=1 // pred_fallthru
      _
    // Predicated region
    $region46: #{vit_forward.1} parent=1 // pred_check
      _
    $region47: #{vit_forward.1} parent=1 // pred_check_branch
      %49 = sbr.rel (0) target = $region49
    $region48: #{vit_forward.1} parent=1 // pred_region
      _
    $region49: #{vit_forward.1} parent=1 // pred_fallthru
      _
    // Predicated region
    $region50: #{vit_forward.1} parent=1 // pred_check
      _
    $region51: #{vit_forward.1} parent=1 // pred_check_branch
      %51 = sbr.rel (0) target = $region53
    $region52: #{vit_forward.1} parent=1 // pred_region
      _
    $region53: #{vit_forward.1} parent=1 // pred_fallthru
      _
    // Predicated region
    $region54: #{vit_forward.1} parent=1 // pred_check
      _
    $region55: #{vit_forward.1} parent=1 // pred_check_branch
      %53 = sbr.rel (0) target = $region57
    $region56: #{vit_forward.1} parent=1 // pred_region
      _
    $region57: #{vit_forward.1} parent=1 // pred_fallthru
      _
    // Predicated region
    $region58: #{vit_forward.1} parent=1 // pred_check
      _
    $region59: #{vit_forward.1} parent=1 // pred_check_branch
      %55 = sbr.rel (0) target = $region61
    $region60: #{vit_forward.1} parent=1 // pred_region
      _
    $region61: #{vit_forward.1} parent=1 // pred_fallthru
      _
    // Predicated region
    $region62: #{vit_forward.1} parent=1 // pred_check
      _
    $region63: #{vit_forward.1} parent=1 // pred_check_branch
      %57 = sbr.rel (0) target = $region65
    $region64: #{vit_forward.1} parent=1 // pred_region
      _
    $region65: #{vit_forward.1} parent=1 // pred_fallthru
      _
    // Predicated region
    $region66: #{vit_forward.1} parent=1 // pred_check
      _
    $region67: #{vit_forward.1} parent=1 // pred_check_branch
      %59 = sbr.rel (0) target = $region69
    $region68: #{vit_forward.1} parent=1 // pred_region
      _
    $region69: #{vit_forward.1} parent=1 // pred_fallthru
      _
    // Predicated region
    $region70: #{vit_forward.1} parent=1 // pred_check
      _
    $region71: #{vit_forward.1} parent=1 // pred_check_branch
      %61 = sbr.rel (0) target = $region73
    $region72: #{vit_forward.1} parent=1 // pred_region
      _
    $region73: #{vit_forward.1} parent=1 // pred_fallthru
      _
    // Predicated region
    $region74: #{vit_forward.1} parent=1 // pred_check
      _
    $region75: #{vit_forward.1} parent=1 // pred_check_branch
      %63 = sbr.rel (0) target = $region77
    $region76: #{vit_forward.1} parent=1 // pred_region
      _
    $region77: #{vit_forward.1} parent=1 // pred_fallthru
      _
    // Predicated region
    $region78: #{vit_forward.1} parent=1 // pred_check
      _
    $region79: #{vit_forward.1} parent=1 // pred_check_branch
      %65 = sbr.rel (0) target = $region81
    $region80: #{vit_forward.1} parent=1 // pred_region
      _
    $region81: #{vit_forward.1} parent=1 // pred_fallthru
      _
    %v66 = vld [vmem:[%s0] sm:$0xff]
    %v67 = vld [vmem:[%s0 + $0x8] sm:$0xff]
    %v68 = vld [vmem:[%s0 + $0x10] sm:$0xff]
    %v69 = vld [vmem:[%s0 + $0x18] sm:$0xff]
    %v70 = vld [vmem:[%s0 + $0x20] sm:$0xff]
    %v71 = vld [vmem:[%s0 + $0x28] sm:$0xff]
    %v72 = vld [vmem:[%s1] sm:$0xff]
    %v73 = vld [vmem:[%s1 + $0x8] sm:$0xff]
    %v74 = vld [vmem:[%s1 + $0x10] sm:$0xff]
    %v75 = vld [vmem:[%s1 + $0x18] sm:$0xff]
    %v76 = vld [vmem:[%s1 + $0x20] sm:$0xff]
    %v77 = vld [vmem:[%s1 + $0x28] sm:$0xff]
    %v78 = vld [vmem:[%s2] sm:$0xff]
    %v79 = vld [vmem:[%s2 + $0x8] sm:$0xff]
    %v80 = vld [vmem:[%s2 + $0x10] sm:$0xff]
    %v81 = vld [vmem:[%s2 + $0x18] sm:$0xff]
    %v82 = vld [vmem:[%s2 + $0x20] sm:$0xff]
    %v83 = vld [vmem:[%s2 + $0x28] sm:$0xff]
    %vm84 = vcmask 392192
    %v86 = vsel %vm84, %v66, 0
    %v89 = vsel %vm84, %v67, 0
    %v92 = vsel %vm84, %v68, 0
    %v95 = vsel %vm84, %v69, 0
    %v98 = vsel %vm84, %v70, 0
    %v101 = vsel %vm84, %v71, 0
    %103 = vmatprep.subr.mxu0 0.0
    %104 = vmatpush1.msra.mxu0 0.0
    %105 = vmatprep.subr.mxu0 0.0
    %106 = vmatpush1.msra.mxu0 0.0
    %107 = vmatprep.subr.mxu0 0.0
    %108 = vmatpush1.msra.mxu0 0.0
    %109 = vmatprep.subr.mxu0 0.0
    %110 = vmatpush1.msra.mxu0 0.0
    %111 = vmatprep.subr.mxu0 0.0
    %112 = vmatpush1.msra.mxu0 0.0
    %113 = vmatprep.subr.mxu0 0.0
    %114 = vmatpush1.msra.mxu0 0.0
    %115 = vmatprep.subr.mxu0 0.0
    %116 = vmatpush1.msra.mxu0 0.0
    %117 = vmatprep.subr.mxu0 0.0
    %118 = vmatpush1.msra.mxu0 0.0
    %119 = vmatprep.subr.mxu0 0.0
    %120 = vmatpush1.msra.mxu0 0.0
    %121 = vmatprep.subr.mxu0 0.0
    %122 = vmatpush1.msra.mxu0 0.0
    %123 = vmatprep.subr.mxu0 0.0
    %124 = vmatpush1.msra.mxu0 %v77
    %125 = vmatprep.subr.mxu0 0.0
    %126 = vmatpush1.msra.mxu0 %v76
    %127 = vmatprep.subr.mxu0 0.0
    %128 = vmatpush1.msra.mxu0 %v75
    %129 = vmatprep.subr.mxu0 0.0
    %130 = vmatpush1.msra.mxu0 %v74
    %131 = vmatprep.subr.mxu0 0.0
    %132 = vmatpush1.msra.mxu0 %v73
    %133 = vmatprep.subr.mxu0 0.0
    %134 = vmatpush1.msra.mxu0 %v72
    %135 = vmatprep.subr.mxu0 0.0
    %136 = vmatpush2.msra.mxu0 0.0
    %137 = vmatprep.subr.mxu0 0.0
    %138 = vmatpush2.msra.mxu0 0.0
    %139 = vmatprep.subr.mxu0 0.0
    %140 = vmatpush2.msra.mxu0 0.0
    %141 = vmatprep.subr.mxu0 0.0
    %142 = vmatpush2.msra.mxu0 0.0
    %143 = vmatprep.subr.mxu0 0.0
    %144 = vmatpush2.msra.mxu0 0.0
    %145 = vmatprep.subr.mxu0 0.0
    %146 = vmatpush2.msra.mxu0 0.0
    %147 = vmatprep.subr.mxu0 0.0
    %148 = vmatpush2.msra.mxu0 0.0
    %149 = vmatprep.subr.mxu0 0.0
    %150 = vmatpush2.msra.mxu0 0.0
    %151 = vmatprep.subr.mxu0 0.0
    %152 = vmatpush2.msra.mxu0 0.0
    %153 = vmatprep.subr.mxu0 0.0
    %154 = vmatpush2.msra.mxu0 0.0
    %155 = vmatprep.subr.mxu0 0.0
    %156 = vmatpush2.msra.mxu0 0.0
    %157 = vmatprep.subr.mxu0 0.0
    %158 = vmatpush2.msra.mxu0 0.0
    %159 = vmatprep.subr.mxu0 0.0
    %160 = vmatpush2.msra.mxu0 0.0
    %161 = vmatprep.subr.mxu0 0.0
    %162 = vmatpush2.msra.mxu0 0.0
    %163 = vmatprep.subr.mxu0 0.0
    %164 = vmatpush2.msra.mxu0 0.0
    %165 = vmatprep.subr.mxu0 0.0
    %166 = vmatpush2.msra.mxu0 0.0
    %167 = vmatprep.mubr.f32.mxu0 0.0
    %168 = vmatmul.mubr.f32.gmra.mxu0 %v86
    %v169 = vpop.f32.mrf.mxu0
    %v170 = vadd.f32 %v78, %v169
    %v171 = vpop.f32.mrf.mxu0
    %172 = vmatprep.mubr.f32.mxu0 0.0
    %173 = vmatmul.mubr.f32.gmra.mxu0 %v89
    %v174 = vpop.f32.mrf.mxu0
    %v175 = vadd.f32 %v79, %v174
    %v176 = vpop.f32.mrf.mxu0
    %177 = vmatprep.mubr.f32.mxu0 0.0
    %178 = vmatmul.mubr.f32.gmra.mxu0 %v92
    %v179 = vpop.f32.mrf.mxu0
    %v180 = vadd.f32 %v80, %v179
    %v181 = vpop.f32.mrf.mxu0
    %182 = vmatprep.mubr.f32.mxu0 0.0
    %183 = vmatmul.mubr.f32.gmra.mxu0 %v95
    %v184 = vpop.f32.mrf.mxu0
    %v185 = vadd.f32 %v81, %v184
    %v186 = vpop.f32.mrf.mxu0
    %187 = vmatprep.mubr.f32.mxu0 0.0
    %188 = vmatmul.mubr.f32.gmra.mxu0 %v98
    %v189 = vpop.f32.mrf.mxu0
    %v190 = vadd.f32 %v82, %v189
    %v191 = vpop.f32.mrf.mxu0
    %192 = vmatprep.mubr.f32.mxu0 0.0
    %193 = vmatmul.mubr.f32.gmra.mxu0 %v101
    %v194 = vpop.f32.mrf.mxu0
    %v195 = vadd.f32 %v83, %v194
    %v196 = vpop.f32.mrf.mxu0
    %197 = vdwg.mxu0
    %v198 = vld [vmem:[%s3] sm:$0xff]
    %v199 = vld [vmem:[%s3 + $0x8] sm:$0xff]
    %v200 = vld [vmem:[%s3 + $0x10] sm:$0xff]
    %v201 = vld [vmem:[%s3 + $0x18] sm:$0xff]
    %v202 = vld [vmem:[%s3 + $0x20] sm:$0xff]
    %v203 = vld [vmem:[%s3 + $0x28] sm:$0xff]
    %v204 = vld [vmem:[%s4] sm:$0x1]
    %v205 = vld [vmem:[%s5] sm:$0x1]
    %vm206 = vcmask 261120
    %v207 = vsel %vm206, %v170, 0.0
    %208 = vadd.xlane.f32.xlu0 %v207
    %v209 = vpop.xlane.xlu0 %208
    %v210 = vsel %vm206, %v175, 0.0
    %211 = vadd.xlane.f32.xlu0 %v210
    %v212 = vpop.xlane.xlu0 %211
    %v213 = vsel %vm206, %v180, 0.0
    %214 = vadd.xlane.f32.xlu0 %v213
    %v215 = vpop.xlane.xlu0 %214
    %v216 = vsel %vm206, %v185, 0.0
    %217 = vadd.xlane.f32.xlu0 %v216
    %v218 = vpop.xlane.xlu0 %217
    %v219 = vsel %vm206, %v190, 0.0
    %220 = vadd.xlane.f32.xlu0 %v219
    %v221 = vpop.xlane.xlu0 %220
    %v222 = vsel %vm206, %v195, 0.0
    %223 = vadd.xlane.f32.xlu0 %v222
    %v224 = vpop.xlane.xlu0 %223
    %v225 = vrcp.pop 32.0
    %v226 = vmul.f32 %v209, %v225
    %v227 = vmul.f32 %v212, %v225
    %v228 = vmul.f32 %v215, %v225
    %v229 = vmul.f32 %v218, %v225
    %v230 = vmul.f32 %v221, %v225
    %v231 = vmul.f32 %v224, %v225
    %v232 = vsub.f32 %v170, %v226
    %v233 = vsub.f32 %v175, %v227
    %v234 = vsub.f32 %v180, %v228
    %v235 = vsub.f32 %v185, %v229
    %v236 = vsub.f32 %v190, %v230
    %v237 = vsub.f32 %v195, %v231
    %v238 = vmul.f32 %v232, %v232
    %v239 = vmul.f32 %v233, %v233
    %v240 = vmul.f32 %v234, %v234
    %v241 = vmul.f32 %v235, %v235
    %v242 = vmul.f32 %v236, %v236
    %v243 = vmul.f32 %v237, %v237
    %v244 = vsel %vm206, %v238, 0.0
    %245 = vadd.xlane.f32.xlu0 %v244
    %v246 = vpop.xlane.xlu0 %245
    %v247 = vsel %vm206, %v239, 0.0
    %248 = vadd.xlane.f32.xlu0 %v247
    %v249 = vpop.xlane.xlu0 %248
    %v250 = vsel %vm206, %v240, 0.0
    %251 = vadd.xlane.f32.xlu0 %v250
    %v252 = vpop.xlane.xlu0 %251
    %v253 = vsel %vm206, %v241, 0.0
    %254 = vadd.xlane.f32.xlu0 %v253
    %v255 = vpop.xlane.xlu0 %254
    %v256 = vsel %vm206, %v242, 0.0
    %257 = vadd.xlane.f32.xlu0 %v256
    %v258 = vpop.xlane.xlu0 %257
    %v259 = vsel %vm206, %v243, 0.0
    %260 = vadd.xlane.f32.xlu0 %v259
    %v261 = vpop.xlane.xlu0 %260
    %v262 = vmul.f32 %v246, %v225
    %v263 = vmul.f32 %v249, %v225
    %v264 = vmul.f32 %v252, %v225
    %v265 = vmul.f32 %v255, %v225
    %v266 = vmul.f32 %v258, %v225
    %v267 = vmul.f32 %v261, %v225
    %v268 = vadd.f32 %v262, 1e-06
    %v269 = vadd.f32 %v263, 1e-06
    %v270 = vadd.f32 %v264, 1e-06
    %v271 = vadd.f32 %v265, 1e-06
    %v272 = vadd.f32 %v266, 1e-06
    %v273 = vadd.f32 %v267, 1e-06
    %v274 = vrsqrt.pop %v268
    %v275 = vrsqrt.pop %v269
    %v276 = vrsqrt.pop %v270
    %v277 = vrsqrt.pop %v271
    %v278 = vrsqrt.pop %v272
    %v279 = vrsqrt.pop %v273
    %v280 = vmul.f32 %v232, %v274
    %v281 = vmul.f32 %v233, %v275
    %v282 = vmul.f32 %v234, %v276
    %v283 = vmul.f32 %v235, %v277
    %v284 = vmul.f32 %v236, %v278
    %v285 = vmul.f32 %v237, %v279
    %v287 = vlaneseq
    %v288 = vshrl.u32 %v287, 7
    %v289 = vsub.s32 0, %v288
    %v290 = vrot.slane %v204, %v289
    %v292 = vmul.f32 %v280, %v290
    %v293 = vmul.f32 %v281, %v290
    %v294 = vmul.f32 %v282, %v290
    %v295 = vmul.f32 %v283, %v290
    %v296 = vmul.f32 %v284, %v290
    %v297 = vmul.f32 %v285, %v290
    %v299 = vlaneseq
    %v300 = vshrl.u32 %v299, 7
    %v301 = vsub.s32 0, %v300
    %v302 = vrot.slane %v205, %v301
    %v304 = vadd.f32 %v292, %v302
    %v305 = vadd.f32 %v293, %v302
    %v306 = vadd.f32 %v294, %v302
    %v307 = vadd.f32 %v295, %v302
    %v308 = vadd.f32 %v296, %v302
    %v309 = vadd.f32 %v297, %v302
    %v310 = vld [vmem:[%s6] sm:$0xff]
    %v311 = vld [vmem:[%s6 + $0x8] sm:$0xff]
    %v312 = vld [vmem:[%s6 + $0x10] sm:$0xff]
    %v313 = vld [vmem:[%s6 + $0x18] sm:$0xff]
    %v314 = vld [vmem:[%s7] sm:$0x1]
    %v316 = vlaneseq
    %v317 = vshrl.u32 %v316, 7
    %v318 = vsub.s32 0, %v317
    %v319 = vrot.slane %v314, %v318
    %v322 = vsel %vm206, %v304, 0
    %v325 = vsel %vm206, %v305, 0
    %v328 = vsel %vm206, %v306, 0
    %v331 = vsel %vm206, %v307, 0
    %v334 = vsel %vm206, %v308, 0
    %v337 = vsel %vm206, %v309, 0
    %339 = vmatprep.subr.mxu0 0.0
    %340 = vmatpush1.msra.mxu0 0.0
    %341 = vmatprep.subr.mxu0 0.0
    %342 = vmatpush1.msra.mxu0 0.0
    %343 = vmatprep.subr.mxu0 0.0
    %344 = vmatpush1.msra.mxu0 0.0
    %345 = vmatprep.subr.mxu0 0.0
    %346 = vmatpush1.msra.mxu0 0.0
    %347 = vmatprep.subr.mxu0 0.0
    %348 = vmatpush1.msra.mxu0 0.0
    %349 = vmatprep.subr.mxu0 0.0
    %350 = vmatpush1.msra.mxu0 0.0
    %351 = vmatprep.subr.mxu0 0.0
    %352 = vmatpush1.msra.mxu0 0.0
    %353 = vmatprep.subr.mxu0 0.0
    %354 = vmatpush1.msra.mxu0 0.0
    %355 = vmatprep.subr.mxu0 0.0
    %356 = vmatpush1.msra.mxu0 0.0
    %357 = vmatprep.subr.mxu0 0.0
    %358 = vmatpush1.msra.mxu0 0.0
    %359 = vmatprep.subr.mxu0 0.0
    %360 = vmatpush1.msra.mxu0 0.0
    %361 = vmatprep.subr.mxu0 0.0
    %362 = vmatpush1.msra.mxu0 0.0
    %363 = vmatprep.subr.mxu0 0.0
    %364 = vmatpush1.msra.mxu0 %v313
    %365 = vmatprep.subr.mxu0 0.0
    %366 = vmatpush1.msra.mxu0 %v312
    %367 = vmatprep.subr.mxu0 0.0
    %368 = vmatpush1.msra.mxu0 %v311
    %369 = vmatprep.subr.mxu0 0.0
    %370 = vmatpush1.msra.mxu0 %v310
    %371 = vmatprep.subr.mxu0 0.0
    %372 = vmatpush2.msra.mxu0 0.0
    %373 = vmatprep.subr.mxu0 0.0
    %374 = vmatpush2.msra.mxu0 0.0
    %375 = vmatprep.subr.mxu0 0.0
    %376 = vmatpush2.msra.mxu0 0.0
    %377 = vmatprep.subr.mxu0 0.0
    %378 = vmatpush2.msra.mxu0 0.0
    %379 = vmatprep.subr.mxu0 0.0
    %380 = vmatpush2.msra.mxu0 0.0
    %381 = vmatprep.subr.mxu0 0.0
    %382 = vmatpush2.msra.mxu0 0.0
    %383 = vmatprep.subr.mxu0 0.0
    %384 = vmatpush2.msra.mxu0 0.0
    %385 = vmatprep.subr.mxu0 0.0
    %386 = vmatpush2.msra.mxu0 0.0
    %387 = vmatprep.subr.mxu0 0.0
    %388 = vmatpush2.msra.mxu0 0.0
    %389 = vmatprep.subr.mxu0 0.0
    %390 = vmatpush2.msra.mxu0 0.0
    %391 = vmatprep.subr.mxu0 0.0
    %392 = vmatpush2.msra.mxu0 0.0
    %393 = vmatprep.subr.mxu0 0.0
    %394 = vmatpush2.msra.mxu0 0.0
    %395 = vmatprep.subr.mxu0 0.0
    %396 = vmatpush2.msra.mxu0 0.0
    %397 = vmatprep.subr.mxu0 0.0
    %398 = vmatpush2.msra.mxu0 0.0
    %399 = vmatprep.subr.mxu0 0.0
    %400 = vmatpush2.msra.mxu0 0.0
    %401 = vmatprep.subr.mxu0 0.0
    %402 = vmatpush2.msra.mxu0 0.0
    %403 = vmatprep.mubr.f32.mxu0 0.0
    %404 = vmatmul.mubr.f32.gmra.mxu0 %v322
    %v405 = vpop.f32.mrf.mxu0
    %v406 = vadd.f32 %v319, %v405
    %v407 = vpop.f32.mrf.mxu0
    %408 = vmatprep.mubr.f32.mxu0 0.0
    %409 = vmatmul.mubr.f32.gmra.mxu0 %v325
    %v410 = vpop.f32.mrf.mxu0
    %v411 = vadd.f32 %v319, %v410
    %v412 = vpop.f32.mrf.mxu0
    %413 = vmatprep.mubr.f32.mxu0 0.0
    %414 = vmatmul.mubr.f32.gmra.mxu0 %v328
    %v415 = vpop.f32.mrf.mxu0
    %v416 = vadd.f32 %v319, %v415
    %v417 = vpop.f32.mrf.mxu0
    %418 = vmatprep.mubr.f32.mxu0 0.0
    %419 = vmatmul.mubr.f32.gmra.mxu0 %v331
    %v420 = vpop.f32.mrf.mxu0
    %v421 = vadd.f32 %v319, %v420
    %v422 = vpop.f32.mrf.mxu0
    %423 = vmatprep.mubr.f32.mxu0 0.0
    %424 = vmatmul.mubr.f32.gmra.mxu0 %v334
    %v425 = vpop.f32.mrf.mxu0
    %v426 = vadd.f32 %v319, %v425
    %v427 = vpop.f32.mrf.mxu0
    %428 = vmatprep.mubr.f32.mxu0 0.0
    %429 = vmatmul.mubr.f32.gmra.mxu0 %v337
    %v430 = vpop.f32.mrf.mxu0
    %v431 = vadd.f32 %v319, %v430
    %v432 = vpop.f32.mrf.mxu0
    %433 = vdwg.mxu0
    %440 = vrot.lane.b32.xlu0 %v406, 96
    %v441 = vpop.permute.xlu0 %440
    %442 = vrot.lane.b32.xlu0 %v411, 96
    %v443 = vpop.permute.xlu0 %442
    %444 = vrot.lane.b32.xlu0 %v416, 96
    %v445 = vpop.permute.xlu0 %444
    %446 = vrot.lane.b32.xlu0 %v421, 96
    %v447 = vpop.permute.xlu0 %446
    %448 = vrot.lane.b32.xlu0 %v426, 96
    %v449 = vpop.permute.xlu0 %448
    %450 = vrot.lane.b32.xlu0 %v431, 96
    %v451 = vpop.permute.xlu0 %450
    %vm452 = vcmask 64512
    %v453 = vsel %vm452, %v406, 0
    %v455 = vsel %vm452, %v411, 0
    %v457 = vsel %vm452, %v416, 0
    %v459 = vsel %vm452, %v421, 0
    %v461 = vsel %vm452, %v426, 0
    %v463 = vsel %vm452, %v431, 0
    %v465 = vsel %vm452, %v441, 0
    %v467 = vsel %vm452, %v443, 0
    %v469 = vsel %vm452, %v445, 0
    %v471 = vsel %vm452, %v447, 0
    %v473 = vsel %vm452, %v449, 0
    %v475 = vsel %vm452, %v451, 0
    %477 = vmatprep.subr.mxu0 0.0
    %478 = vmatpush1.xpose.msra.mxu0 0.0
    %479 = vmatprep.subr.mxu0 0.0
    %480 = vmatpush1.xpose.msra.mxu0 0.0
    %481 = vmatprep.subr.mxu0 0.0
    %482 = vmatpush1.xpose.msra.mxu0 0.0
    %483 = vmatprep.subr.mxu0 0.0
    %484 = vmatpush1.xpose.msra.mxu0 0.0
    %485 = vmatprep.subr.mxu0 0.0
    %486 = vmatpush1.xpose.msra.mxu0 0.0
    %487 = vmatprep.subr.mxu0 0.0
    %488 = vmatpush1.xpose.msra.mxu0 0.0
    %489 = vmatprep.subr.mxu0 0.0
    %490 = vmatpush1.xpose.msra.mxu0 0.0
    %491 = vmatprep.subr.mxu0 0.0
    %492 = vmatpush1.xpose.msra.mxu0 0.0
    %493 = vmatprep.subr.mxu0 0.0
    %494 = vmatpush1.xpose.msra.mxu0 0.0
    %495 = vmatprep.subr.mxu0 0.0
    %496 = vmatpush1.xpose.msra.mxu0 0.0
    %497 = vmatprep.subr.mxu0 0.0
    %498 = vmatpush1.xpose.msra.mxu0 %v475
    %499 = vmatprep.subr.mxu0 0.0
    %500 = vmatpush1.xpose.msra.mxu0 %v473
    %501 = vmatprep.subr.mxu0 0.0
    %502 = vmatpush1.xpose.msra.mxu0 %v471
    %503 = vmatprep.subr.mxu0 0.0
    %504 = vmatpush1.xpose.msra.mxu0 %v469
    %505 = vmatprep.subr.mxu0 0.0
    %506 = vmatpush1.xpose.msra.mxu0 %v467
    %507 = vmatprep.subr.mxu0 0.0
    %508 = vmatpush1.xpose.msra.mxu0 %v465
    %509 = vmatprep.subr.mxu0 0.0
    %510 = vmatpush2.xpose.msra.mxu0 0.0
    %511 = vmatprep.subr.mxu0 0.0
    %512 = vmatpush2.xpose.msra.mxu0 0.0
    %513 = vmatprep.subr.mxu0 0.0
    %514 = vmatpush2.xpose.msra.mxu0 0.0
    %515 = vmatprep.subr.mxu0 0.0
    %516 = vmatpush2.xpose.msra.mxu0 0.0
    %517 = vmatprep.subr.mxu0 0.0
    %518 = vmatpush2.xpose.msra.mxu0 0.0
    %519 = vmatprep.subr.mxu0 0.0
    %520 = vmatpush2.xpose.msra.mxu0 0.0
    %521 = vmatprep.subr.mxu0 0.0
    %522 = vmatpush2.xpose.msra.mxu0 0.0
    %523 = vmatprep.subr.mxu0 0.0
    %524 = vmatpush2.xpose.msra.mxu0 0.0
    %525 = vmatprep.subr.mxu0 0.0
    %526 = vmatpush2.xpose.msra.mxu0 0.0
    %527 = vmatprep.subr.mxu0 0.0
    %528 = vmatpush2.xpose.msra.mxu0 0.0
    %529 = vmatprep.subr.mxu0 0.0
    %530 = vmatpush2.xpose.msra.mxu0 0.0
    %531 = vmatprep.subr.mxu0 0.0
    %532 = vmatpush2.xpose.msra.mxu0 0.0
    %533 = vmatprep.subr.mxu0 0.0
    %534 = vmatpush2.xpose.msra.mxu0 0.0
    %535 = vmatprep.subr.mxu0 0.0
    %536 = vmatpush2.xpose.msra.mxu0 0.0
    %537 = vmatprep.subr.mxu0 0.0
    %538 = vmatpush2.xpose.msra.mxu0 0.0
    %539 = vmatprep.subr.mxu0 0.0
    %540 = vmatpush2.xpose.msra.mxu0 0.0
    %541 = vmatprep.mubr.f32.mxu0 0.0
    %542 = vmatmul.mubr.f32.gmra.mxu0 %v453
    %v543 = vpop.f32.mrf.mxu0
    %v544 = vadd.f32 %v198, %v543
    %v545 = vpop.f32.mrf.mxu0
    %546 = vmatprep.mubr.f32.mxu0 0.0
    %547 = vmatmul.mubr.f32.gmra.mxu0 %v455
    %v548 = vpop.f32.mrf.mxu0
    %v549 = vadd.f32 %v199, %v548
    %v550 = vpop.f32.mrf.mxu0
    %551 = vmatprep.mubr.f32.mxu0 0.0
    %552 = vmatmul.mubr.f32.gmra.mxu0 %v457
    %v553 = vpop.f32.mrf.mxu0
    %v554 = vadd.f32 %v200, %v553
    %v555 = vpop.f32.mrf.mxu0
    %556 = vmatprep.mubr.f32.mxu0 0.0
    %557 = vmatmul.mubr.f32.gmra.mxu0 %v459
    %v558 = vpop.f32.mrf.mxu0
    %v559 = vadd.f32 %v201, %v558
    %v560 = vpop.f32.mrf.mxu0
    %561 = vmatprep.mubr.f32.mxu0 0.0
    %562 = vmatmul.mubr.f32.gmra.mxu0 %v461
    %v563 = vpop.f32.mrf.mxu0
    %v564 = vadd.f32 %v202, %v563
    %v565 = vpop.f32.mrf.mxu0
    %566 = vmatprep.mubr.f32.mxu0 0.0
    %567 = vmatmul.mubr.f32.gmra.mxu0 %v463
    %v568 = vpop.f32.mrf.mxu0
    %v569 = vadd.f32 %v203, %v568
    %v570 = vpop.f32.mrf.mxu0
    %571 = vdwg.mxu0
    %v572 = vsel %vm84, %v544, -inf
    %573 = vmax.xlane.f32.xlu0 %v572
    %v574 = vpop.xlane.xlu0 %573
    %v575 = vsel %vm84, %v549, -inf
    %576 = vmax.xlane.f32.xlu0 %v575
    %v577 = vpop.xlane.xlu0 %576
    %v578 = vsel %vm84, %v554, -inf
    %579 = vmax.xlane.f32.xlu0 %v578
    %v580 = vpop.xlane.xlu0 %579
    %v581 = vsel %vm84, %v559, -inf
    %582 = vmax.xlane.f32.xlu0 %v581
    %v583 = vpop.xlane.xlu0 %582
    %v584 = vsel %vm84, %v564, -inf
    %585 = vmax.xlane.f32.xlu0 %v584
    %v586 = vpop.xlane.xlu0 %585
    %v587 = vsel %vm84, %v569, -inf
    %588 = vmax.xlane.f32.xlu0 %v587
    %v589 = vpop.xlane.xlu0 %588
    %v590 = vsub.f32 %v544, %v574
    %v591 = vsub.f32 %v549, %v577
    %v592 = vsub.f32 %v554, %v580
    %v593 = vsub.f32 %v559, %v583
    %v594 = vsub.f32 %v564, %v586
    %v595 = vsub.f32 %v569, %v589
    %v596 = vmul.f32 %v590, 1.442695
    %v597 = vpow.pop %v596
    %v598 = vmul.f32 %v591, 1.442695
    %v599 = vpow.pop %v598
    %v600 = vmul.f32 %v592, 1.442695
    %v601 = vpow.pop %v600
    %v602 = vmul.f32 %v593, 1.442695
    %v603 = vpow.pop %v602
    %v604 = vmul.f32 %v594, 1.442695
    %v605 = vpow.pop %v604
    %v606 = vmul.f32 %v595, 1.442695
    %v607 = vpow.pop %v606
    %v608 = vsel %vm84, %v597, 0.0
    %609 = vadd.xlane.f32.xlu0 %v608
    %v610 = vpop.xlane.xlu0 %609
    %v611 = vsel %vm84, %v599, 0.0
    %612 = vadd.xlane.f32.xlu0 %v611
    %v613 = vpop.xlane.xlu0 %612
    %v614 = vsel %vm84, %v601, 0.0
    %615 = vadd.xlane.f32.xlu0 %v614
    %v616 = vpop.xlane.xlu0 %615
    %v617 = vsel %vm84, %v603, 0.0
    %618 = vadd.xlane.f32.xlu0 %v617
    %v619 = vpop.xlane.xlu0 %618
    %v620 = vsel %vm84, %v605, 0.0
    %621 = vadd.xlane.f32.xlu0 %v620
    %v622 = vpop.xlane.xlu0 %621
    %v623 = vsel %vm84, %v607, 0.0
    %624 = vadd.xlane.f32.xlu0 %v623
    %v625 = vpop.xlane.xlu0 %624
    %v626 = vrcp.pop %v610
    %v627 = vrcp.pop %v613
    %v628 = vrcp.pop %v616
    %v629 = vrcp.pop %v619
    %v630 = vrcp.pop %v622
    %v631 = vrcp.pop %v625
    %v632 = vmul.f32 %v597, %v626
    %v633 = vmul.f32 %v599, %v627
    %v634 = vmul.f32 %v601, %v628
    %v635 = vmul.f32 %v603, %v629
    %v636 = vmul.f32 %v605, %v630
    %v637 = vmul.f32 %v607, %v631
    %638 = vrot.lane.b32.xlu0 %v406, 64
    %v639 = vpop.permute.xlu0 %638
    %640 = vrot.lane.b32.xlu0 %v411, 64
    %v641 = vpop.permute.xlu0 %640
    %642 = vrot.lane.b32.xlu0 %v416, 64
    %v643 = vpop.permute.xlu0 %642
    %644 = vrot.lane.b32.xlu0 %v421, 64
    %v645 = vpop.permute.xlu0 %644
    %646 = vrot.lane.b32.xlu0 %v426, 64
    %v647 = vpop.permute.xlu0 %646
    %648 = vrot.lane.b32.xlu0 %v431, 64
    %v649 = vpop.permute.xlu0 %648
    %v657 = vsel %vm84, %v632, 0
    %v660 = vsel %vm84, %v633, 0
    %v663 = vsel %vm84, %v634, 0
    %v666 = vsel %vm84, %v635, 0
    %v669 = vsel %vm84, %v636, 0
    %v672 = vsel %vm84, %v637, 0
    %674 = vmatprep.subr.mxu0 0.0
    %675 = vmatpush1.msra.mxu0 0.0
    %676 = vmatprep.subr.mxu0 0.0
    %677 = vmatpush1.msra.mxu0 0.0
    %678 = vmatprep.subr.mxu0 0.0
    %679 = vmatpush1.msra.mxu0 0.0
    %680 = vmatprep.subr.mxu0 0.0
    %681 = vmatpush1.msra.mxu0 0.0
    %682 = vmatprep.subr.mxu0 0.0
    %683 = vmatpush1.msra.mxu0 0.0
    %684 = vmatprep.subr.mxu0 0.0
    %685 = vmatpush1.msra.mxu0 0.0
    %686 = vmatprep.subr.mxu0 0.0
    %687 = vmatpush1.msra.mxu0 0.0
    %688 = vmatprep.subr.mxu0 0.0
    %689 = vmatpush1.msra.mxu0 0.0
    %690 = vmatprep.subr.mxu0 0.0
    %691 = vmatpush1.msra.mxu0 0.0
    %692 = vmatprep.subr.mxu0 0.0
    %693 = vmatpush1.msra.mxu0 0.0
    %694 = vmatprep.subr.mxu0 0.0
    %695 = vmatpush1.msra.mxu0 %v649
    %696 = vmatprep.subr.mxu0 0.0
    %697 = vmatpush1.msra.mxu0 %v647
    %698 = vmatprep.subr.mxu0 0.0
    %699 = vmatpush1.msra.mxu0 %v645
    %700 = vmatprep.subr.mxu0 0.0
    %701 = vmatpush1.msra.mxu0 %v643
    %702 = vmatprep.subr.mxu0 0.0
    %703 = vmatpush1.msra.mxu0 %v641
    %704 = vmatprep.subr.mxu0 0.0
    %705 = vmatpush1.msra.mxu0 %v639
    %706 = vmatprep.subr.mxu0 0.0
    %707 = vmatpush2.msra.mxu0 0.0
    %708 = vmatprep.subr.mxu0 0.0
    %709 = vmatpush2.msra.mxu0 0.0
    %710 = vmatprep.subr.mxu0 0.0
    %711 = vmatpush2.msra.mxu0 0.0
    %712 = vmatprep.subr.mxu0 0.0
    %713 = vmatpush2.msra.mxu0 0.0
    %714 = vmatprep.subr.mxu0 0.0
    %715 = vmatpush2.msra.mxu0 0.0
    %716 = vmatprep.subr.mxu0 0.0
    %717 = vmatpush2.msra.mxu0 0.0
    %718 = vmatprep.subr.mxu0 0.0
    %719 = vmatpush2.msra.mxu0 0.0
    %720 = vmatprep.subr.mxu0 0.0
    %721 = vmatpush2.msra.mxu0 0.0
    %722 = vmatprep.subr.mxu0 0.0
    %723 = vmatpush2.msra.mxu0 0.0
    %724 = vmatprep.subr.mxu0 0.0
    %725 = vmatpush2.msra.mxu0 0.0
    %726 = vmatprep.subr.mxu0 0.0
    %727 = vmatpush2.msra.mxu0 0.0
    %728 = vmatprep.subr.mxu0 0.0
    %729 = vmatpush2.msra.mxu0 0.0
    %730 = vmatprep.subr.mxu0 0.0
    %731 = vmatpush2.msra.mxu0 0.0
    %732 = vmatprep.subr.mxu0 0.0
    %733 = vmatpush2.msra.mxu0 0.0
    %734 = vmatprep.subr.mxu0 0.0
    %735 = vmatpush2.msra.mxu0 0.0
    %736 = vmatprep.subr.mxu0 0.0
    %737 = vmatpush2.msra.mxu0 0.0
    %738 = vmatprep.mubr.f32.mxu0 0.0
    %739 = vmatmul.mubr.f32.gmra.mxu0 %v657
    %v740 = vpop.f32.mrf.mxu0
    %v741 = vadd.f32 0.0, %v740
    %v742 = vpop.f32.mrf.mxu0
    %743 = vmatprep.mubr.f32.mxu0 0.0
    %744 = vmatmul.mubr.f32.gmra.mxu0 %v660
    %v745 = vpop.f32.mrf.mxu0
    %v746 = vadd.f32 0.0, %v745
    %v747 = vpop.f32.mrf.mxu0
    %748 = vmatprep.mubr.f32.mxu0 0.0
    %749 = vmatmul.mubr.f32.gmra.mxu0 %v663
    %v750 = vpop.f32.mrf.mxu0
    %v751 = vadd.f32 0.0, %v750
    %v752 = vpop.f32.mrf.mxu0
    %753 = vmatprep.mubr.f32.mxu0 0.0
    %754 = vmatmul.mubr.f32.gmra.mxu0 %v666
    %v755 = vpop.f32.mrf.mxu0
    %v756 = vadd.f32 0.0, %v755
    %v757 = vpop.f32.mrf.mxu0
    %758 = vmatprep.mubr.f32.mxu0 0.0
    %759 = vmatmul.mubr.f32.gmra.mxu0 %v669
    %v760 = vpop.f32.mrf.mxu0
    %v761 = vadd.f32 0.0, %v760
    %v762 = vpop.f32.mrf.mxu0
    %763 = vmatprep.mubr.f32.mxu0 0.0
    %764 = vmatmul.mubr.f32.gmra.mxu0 %v672
    %v765 = vpop.f32.mrf.mxu0
    %v766 = vadd.f32 0.0, %v765
    %v767 = vpop.f32.mrf.mxu0
    %768 = vdwg.mxu0
    %769 = vrot.lane.b32.xlu0 %v406, 120
    %v770 = vpop.permute.xlu0 %769
    %771 = vrot.lane.b32.xlu0 %v411, 120
    %v772 = vpop.permute.xlu0 %771
    %773 = vrot.lane.b32.xlu0 %v416, 120
    %v774 = vpop.permute.xlu0 %773
    %775 = vrot.lane.b32.xlu0 %v421, 120
    %v776 = vpop.permute.xlu0 %775
    %777 = vrot.lane.b32.xlu0 %v426, 120
    %v778 = vpop.permute.xlu0 %777
    %779 = vrot.lane.b32.xlu0 %v431, 120
    %v780 = vpop.permute.xlu0 %779
    %781 = vrot.lane.b32.xlu0 %v406, 88
    %v782 = vpop.permute.xlu0 %781
    %783 = vrot.lane.b32.xlu0 %v411, 88
    %v784 = vpop.permute.xlu0 %783
    %785 = vrot.lane.b32.xlu0 %v416, 88
    %v786 = vpop.permute.xlu0 %785
    %787 = vrot.lane.b32.xlu0 %v421, 88
    %v788 = vpop.permute.xlu0 %787
    %789 = vrot.lane.b32.xlu0 %v426, 88
    %v790 = vpop.permute.xlu0 %789
    %791 = vrot.lane.b32.xlu0 %v431, 88
    %v792 = vpop.permute.xlu0 %791
    %v793 = vsel %vm452, %v770, 0
    %v795 = vsel %vm452, %v772, 0
    %v797 = vsel %vm452, %v774, 0
    %v799 = vsel %vm452, %v776, 0
    %v801 = vsel %vm452, %v778, 0
    %v803 = vsel %vm452, %v780, 0
    %v805 = vsel %vm452, %v782, 0
    %v807 = vsel %vm452, %v784, 0
    %v809 = vsel %vm452, %v786, 0
    %v811 = vsel %vm452, %v788, 0
    %v813 = vsel %vm452, %v790, 0
    %v815 = vsel %vm452, %v792, 0
    %817 = vmatprep.subr.mxu0 0.0
    %818 = vmatpush1.xpose.msra.mxu0 0.0
    %819 = vmatprep.subr.mxu0 0.0
    %820 = vmatpush1.xpose.msra.mxu0 0.0
    %821 = vmatprep.subr.mxu0 0.0
    %822 = vmatpush1.xpose.msra.mxu0 0.0
    %823 = vmatprep.subr.mxu0 0.0
    %824 = vmatpush1.xpose.msra.mxu0 0.0
    %825 = vmatprep.subr.mxu0 0.0
    %826 = vmatpush1.xpose.msra.mxu0 0.0
    %827 = vmatprep.subr.mxu0 0.0
    %828 = vmatpush1.xpose.msra.mxu0 0.0
    %829 = vmatprep.subr.mxu0 0.0
    %830 = vmatpush1.xpose.msra.mxu0 0.0
    %831 = vmatprep.subr.mxu0 0.0
    %832 = vmatpush1.xpose.msra.mxu0 0.0
    %833 = vmatprep.subr.mxu0 0.0
    %834 = vmatpush1.xpose.msra.mxu0 0.0
    %835 = vmatprep.subr.mxu0 0.0
    %836 = vmatpush1.xpose.msra.mxu0 0.0
    %837 = vmatprep.subr.mxu0 0.0
    %838 = vmatpush1.xpose.msra.mxu0 %v815
    %839 = vmatprep.subr.mxu0 0.0
    %840 = vmatpush1.xpose.msra.mxu0 %v813
    %841 = vmatprep.subr.mxu0 0.0
    %842 = vmatpush1.xpose.msra.mxu0 %v811
    %843 = vmatprep.subr.mxu0 0.0
    %844 = vmatpush1.xpose.msra.mxu0 %v809
    %845 = vmatprep.subr.mxu0 0.0
    %846 = vmatpush1.xpose.msra.mxu0 %v807
    %847 = vmatprep.subr.mxu0 0.0
    %848 = vmatpush1.xpose.msra.mxu0 %v805
    %849 = vmatprep.subr.mxu0 0.0
    %850 = vmatpush2.xpose.msra.mxu0 0.0
    %851 = vmatprep.subr.mxu0 0.0
    %852 = vmatpush2.xpose.msra.mxu0 0.0
    %853 = vmatprep.subr.mxu0 0.0
    %854 = vmatpush2.xpose.msra.mxu0 0.0
    %855 = vmatprep.subr.mxu0 0.0
    %856 = vmatpush2.xpose.msra.mxu0 0.0
    %857 = vmatprep.subr.mxu0 0.0
    %858 = vmatpush2.xpose.msra.mxu0 0.0
    %859 = vmatprep.subr.mxu0 0.0
    %860 = vmatpush2.xpose.msra.mxu0 0.0
    %861 = vmatprep.subr.mxu0 0.0
    %862 = vmatpush2.xpose.msra.mxu0 0.0
    %863 = vmatprep.subr.mxu0 0.0
    %864 = vmatpush2.xpose.msra.mxu0 0.0
    %865 = vmatprep.subr.mxu0 0.0
    %866 = vmatpush2.xpose.msra.mxu0 0.0
    %867 = vmatprep.subr.mxu0 0.0
    %868 = vmatpush2.xpose.msra.mxu0 0.0
    %869 = vmatprep.subr.mxu0 0.0
    %870 = vmatpush2.xpose.msra.mxu0 0.0
    %871 = vmatprep.subr.mxu0 0.0
    %872 = vmatpush2.xpose.msra.mxu0 0.0
    %873 = vmatprep.subr.mxu0 0.0
    %874 = vmatpush2.xpose.msra.mxu0 0.0
    %875 = vmatprep.subr.mxu0 0.0
    %876 = vmatpush2.xpose.msra.mxu0 0.0
    %877 = vmatprep.subr.mxu0 0.0
    %878 = vmatpush2.xpose.msra.mxu0 0.0
    %879 = vmatprep.subr.mxu0 0.0
    %880 = vmatpush2.xpose.msra.mxu0 0.0
    %881 = vmatprep.mubr.f32.mxu0 0.0
    %882 = vmatmul.mubr.f32.gmra.mxu0 %v793
    %v883 = vpop.f32.mrf.mxu0
    %v884 = vadd.f32 %v198, %v883
    %v885 = vpop.f32.mrf.mxu0
    %886 = vmatprep.mubr.f32.mxu0 0.0
    %887 = vmatmul.mubr.f32.gmra.mxu0 %v795
    %v888 = vpop.f32.mrf.mxu0
    %v889 = vadd.f32 %v199, %v888
    %v890 = vpop.f32.mrf.mxu0
    %891 = vmatprep.mubr.f32.mxu0 0.0
    %892 = vmatmul.mubr.f32.gmra.mxu0 %v797
    %v893 = vpop.f32.mrf.mxu0
    %v894 = vadd.f32 %v200, %v893
    %v895 = vpop.f32.mrf.mxu0
    %896 = vmatprep.mubr.f32.mxu0 0.0
    %897 = vmatmul.mubr.f32.gmra.mxu0 %v799
    %v898 = vpop.f32.mrf.mxu0
    %v899 = vadd.f32 %v201, %v898
    %v900 = vpop.f32.mrf.mxu0
    %901 = vmatprep.mubr.f32.mxu0 0.0
    %902 = vmatmul.mubr.f32.gmra.mxu0 %v801
    %v903 = vpop.f32.mrf.mxu0
    %v904 = vadd.f32 %v202, %v903
    %v905 = vpop.f32.mrf.mxu0
    %906 = vmatprep.mubr.f32.mxu0 0.0
    %907 = vmatmul.mubr.f32.gmra.mxu0 %v803
    %v908 = vpop.f32.mrf.mxu0
    %v909 = vadd.f32 %v203, %v908
    %v910 = vpop.f32.mrf.mxu0
    %911 = vdwg.mxu0
    %v912 = vsel %vm84, %v884, -inf
    %913 = vmax.xlane.f32.xlu0 %v912
    %v914 = vpop.xlane.xlu0 %913
    %v915 = vsel %vm84, %v889, -inf
    %916 = vmax.xlane.f32.xlu0 %v915
    %v917 = vpop.xlane.xlu0 %916
    %v918 = vsel %vm84, %v894, -inf
    %919 = vmax.xlane.f32.xlu0 %v918
    %v920 = vpop.xlane.xlu0 %919
    %v921 = vsel %vm84, %v899, -inf
    %922 = vmax.xlane.f32.xlu0 %v921
    %v923 = vpop.xlane.xlu0 %922
    %v924 = vsel %vm84, %v904, -inf
    %925 = vmax.xlane.f32.xlu0 %v924
    %v926 = vpop.xlane.xlu0 %925
    %v927 = vsel %vm84, %v909, -inf
    %928 = vmax.xlane.f32.xlu0 %v927
    %v929 = vpop.xlane.xlu0 %928
    %v930 = vsub.f32 %v884, %v914
    %v931 = vsub.f32 %v889, %v917
    %v932 = vsub.f32 %v894, %v920
    %v933 = vsub.f32 %v899, %v923
    %v934 = vsub.f32 %v904, %v926
    %v935 = vsub.f32 %v909, %v929
    %v936 = vmul.f32 %v930, 1.442695
    %v937 = vpow.pop %v936
    %v938 = vmul.f32 %v931, 1.442695
    %v939 = vpow.pop %v938
    %v940 = vmul.f32 %v932, 1.442695
    %v941 = vpow.pop %v940
    %v942 = vmul.f32 %v933, 1.442695
    %v943 = vpow.pop %v942
    %v944 = vmul.f32 %v934, 1.442695
    %v945 = vpow.pop %v944
    %v946 = vmul.f32 %v935, 1.442695
    %v947 = vpow.pop %v946
    %v948 = vsel %vm84, %v937, 0.0
    %949 = vadd.xlane.f32.xlu0 %v948
    %v950 = vpop.xlane.xlu0 %949
    %v951 = vsel %vm84, %v939, 0.0
    %952 = vadd.xlane.f32.xlu0 %v951
    %v953 = vpop.xlane.xlu0 %952
    %v954 = vsel %vm84, %v941, 0.0
    %955 = vadd.xlane.f32.xlu0 %v954
    %v956 = vpop.xlane.xlu0 %955
    %v957 = vsel %vm84, %v943, 0.0
    %958 = vadd.xlane.f32.xlu0 %v957
    %v959 = vpop.xlane.xlu0 %958
    %v960 = vsel %vm84, %v945, 0.0
    %961 = vadd.xlane.f32.xlu0 %v960
    %v962 = vpop.xlane.xlu0 %961
    %v963 = vsel %vm84, %v947, 0.0
    %964 = vadd.xlane.f32.xlu0 %v963
    %v965 = vpop.xlane.xlu0 %964
    %v966 = vrcp.pop %v950
    %v967 = vrcp.pop %v953
    %v968 = vrcp.pop %v956
    %v969 = vrcp.pop %v959
    %v970 = vrcp.pop %v962
    %v971 = vrcp.pop %v965
    %v972 = vmul.f32 %v937, %v966
    %v973 = vmul.f32 %v939, %v967
    %v974 = vmul.f32 %v941, %v968
    %v975 = vmul.f32 %v943, %v969
    %v976 = vmul.f32 %v945, %v970
    %v977 = vmul.f32 %v947, %v971
    %978 = vrot.lane.b32.xlu0 %v406, 56
    %v979 = vpop.permute.xlu0 %978
    %980 = vrot.lane.b32.xlu0 %v411, 56
    %v981 = vpop.permute.xlu0 %980
    %982 = vrot.lane.b32.xlu0 %v416, 56
    %v983 = vpop.permute.xlu0 %982
    %984 = vrot.lane.b32.xlu0 %v421, 56
    %v985 = vpop.permute.xlu0 %984
    %986 = vrot.lane.b32.xlu0 %v426, 56
    %v987 = vpop.permute.xlu0 %986
    %988 = vrot.lane.b32.xlu0 %v431, 56
    %v989 = vpop.permute.xlu0 %988
    %v997 = vsel %vm84, %v972, 0
    %v1000 = vsel %vm84, %v973, 0
    %v1003 = vsel %vm84, %v974, 0
    %v1006 = vsel %vm84, %v975, 0
    %v1009 = vsel %vm84, %v976, 0
    %v1012 = vsel %vm84, %v977, 0
    %1014 = vmatprep.subr.mxu0 0.0
    %1015 = vmatpush1.msra.mxu0 0.0
    %1016 = vmatprep.subr.mxu0 0.0
    %1017 = vmatpush1.msra.mxu0 0.0
    %1018 = vmatprep.subr.mxu0 0.0
    %1019 = vmatpush1.msra.mxu0 0.0
    %1020 = vmatprep.subr.mxu0 0.0
    %1021 = vmatpush1.msra.mxu0 0.0
    %1022 = vmatprep.subr.mxu0 0.0
    %1023 = vmatpush1.msra.mxu0 0.0
    %1024 = vmatprep.subr.mxu0 0.0
    %1025 = vmatpush1.msra.mxu0 0.0
    %1026 = vmatprep.subr.mxu0 0.0
    %1027 = vmatpush1.msra.mxu0 0.0
    %1028 = vmatprep.subr.mxu0 0.0
    %1029 = vmatpush1.msra.mxu0 0.0
    %1030 = vmatprep.subr.mxu0 0.0
    %1031 = vmatpush1.msra.mxu0 0.0
    %1032 = vmatprep.subr.mxu0 0.0
    %1033 = vmatpush1.msra.mxu0 0.0
    %1034 = vmatprep.subr.mxu0 0.0
    %1035 = vmatpush1.msra.mxu0 %v989
    %1036 = vmatprep.subr.mxu0 0.0
    %1037 = vmatpush1.msra.mxu0 %v987
    %1038 = vmatprep.subr.mxu0 0.0
    %1039 = vmatpush1.msra.mxu0 %v985
    %1040 = vmatprep.subr.mxu0 0.0
    %1041 = vmatpush1.msra.mxu0 %v983
    %1042 = vmatprep.subr.mxu0 0.0
    %1043 = vmatpush1.msra.mxu0 %v981
    %1044 = vmatprep.subr.mxu0 0.0
    %1045 = vmatpush1.msra.mxu0 %v979
    %1046 = vmatprep.subr.mxu0 0.0
    %1047 = vmatpush2.msra.mxu0 0.0
    %1048 = vmatprep.subr.mxu0 0.0
    %1049 = vmatpush2.msra.mxu0 0.0
    %1050 = vmatprep.subr.mxu0 0.0
    %1051 = vmatpush2.msra.mxu0 0.0
    %1052 = vmatprep.subr.mxu0 0.0
    %1053 = vmatpush2.msra.mxu0 0.0
    %1054 = vmatprep.subr.mxu0 0.0
    %1055 = vmatpush2.msra.mxu0 0.0
    %1056 = vmatprep.subr.mxu0 0.0
    %1057 = vmatpush2.msra.mxu0 0.0
    %1058 = vmatprep.subr.mxu0 0.0
    %1059 = vmatpush2.msra.mxu0 0.0
    %1060 = vmatprep.subr.mxu0 0.0
    %1061 = vmatpush2.msra.mxu0 0.0
    %1062 = vmatprep.subr.mxu0 0.0
    %1063 = vmatpush2.msra.mxu0 0.0
    %1064 = vmatprep.subr.mxu0 0.0
    %1065 = vmatpush2.msra.mxu0 0.0
    %1066 = vmatprep.subr.mxu0 0.0
    %1067 = vmatpush2.msra.mxu0 0.0
    %1068 = vmatprep.subr.mxu0 0.0
    %1069 = vmatpush2.msra.mxu0 0.0
    %1070 = vmatprep.subr.mxu0 0.0
    %1071 = vmatpush2.msra.mxu0 0.0
    %1072 = vmatprep.subr.mxu0 0.0
    %1073 = vmatpush2.msra.mxu0 0.0
    %1074 = vmatprep.subr.mxu0 0.0
    %1075 = vmatpush2.msra.mxu0 0.0
    %1076 = vmatprep.subr.mxu0 0.0
    %1077 = vmatpush2.msra.mxu0 0.0
    %1078 = vmatprep.mubr.f32.mxu0 0.0
    %1079 = vmatmul.mubr.f32.gmra.mxu0 %v997
    %v1080 = vpop.f32.mrf.mxu0
    %v1081 = vadd.f32 0.0, %v1080
    %v1082 = vpop.f32.mrf.mxu0
    %1083 = vmatprep.mubr.f32.mxu0 0.0
    %1084 = vmatmul.mubr.f32.gmra.mxu0 %v1000
    %v1085 = vpop.f32.mrf.mxu0
    %v1086 = vadd.f32 0.0, %v1085
    %v1087 = vpop.f32.mrf.mxu0
    %1088 = vmatprep.mubr.f32.mxu0 0.0
    %1089 = vmatmul.mubr.f32.gmra.mxu0 %v1003
    %v1090 = vpop.f32.mrf.mxu0
    %v1091 = vadd.f32 0.0, %v1090
    %v1092 = vpop.f32.mrf.mxu0
    %1093 = vmatprep.mubr.f32.mxu0 0.0
    %1094 = vmatmul.mubr.f32.gmra.mxu0 %v1006
    %v1095 = vpop.f32.mrf.mxu0
    %v1096 = vadd.f32 0.0, %v1095
    %v1097 = vpop.f32.mrf.mxu0
    %1098 = vmatprep.mubr.f32.mxu0 0.0
    %1099 = vmatmul.mubr.f32.gmra.mxu0 %v1009
    %v1100 = vpop.f32.mrf.mxu0
    %v1101 = vadd.f32 0.0, %v1100
    %v1102 = vpop.f32.mrf.mxu0
    %1103 = vmatprep.mubr.f32.mxu0 0.0
    %1104 = vmatmul.mubr.f32.gmra.mxu0 %v1012
    %v1105 = vpop.f32.mrf.mxu0
    %v1106 = vadd.f32 0.0, %v1105
    %v1107 = vpop.f32.mrf.mxu0
    %1108 = vdwg.mxu0
    %1109 = vrot.lane.b32.xlu0 %v406, 112
    %v1110 = vpop.permute.xlu0 %1109
    %1111 = vrot.lane.b32.xlu0 %v411, 112
    %v1112 = vpop.permute.xlu0 %1111
    %1113 = vrot.lane.b32.xlu0 %v416, 112
    %v1114 = vpop.permute.xlu0 %1113
    %1115 = vrot.lane.b32.xlu0 %v421, 112
    %v1116 = vpop.permute.xlu0 %1115
    %1117 = vrot.lane.b32.xlu0 %v426, 112
    %v1118 = vpop.permute.xlu0 %1117
    %1119 = vrot.lane.b32.xlu0 %v431, 112
    %v1120 = vpop.permute.xlu0 %1119
    %1121 = vrot.lane.b32.xlu0 %v406, 80
    %v1122 = vpop.permute.xlu0 %1121
    %1123 = vrot.lane.b32.xlu0 %v411, 80
    %v1124 = vpop.permute.xlu0 %1123
    %1125 = vrot.lane.b32.xlu0 %v416, 80
    %v1126 = vpop.permute.xlu0 %1125
    %1127 = vrot.lane.b32.xlu0 %v421, 80
    %v1128 = vpop.permute.xlu0 %1127
    %1129 = vrot.lane.b32.xlu0 %v426, 80
    %v1130 = vpop.permute.xlu0 %1129
    %1131 = vrot.lane.b32.xlu0 %v431, 80
    %v1132 = vpop.permute.xlu0 %1131
    %v1133 = vsel %vm452, %v1110, 0
    %v1135 = vsel %vm452, %v1112, 0
    %v1137 = vsel %vm452, %v1114, 0
    %v1139 = vsel %vm452, %v1116, 0
    %v1141 = vsel %vm452, %v1118, 0
    %v1143 = vsel %vm452, %v1120, 0
    %v1145 = vsel %vm452, %v1122, 0
    %v1147 = vsel %vm452, %v1124, 0
    %v1149 = vsel %vm452, %v1126, 0
    %v1151 = vsel %vm452, %v1128, 0
    %v1153 = vsel %vm452, %v1130, 0
    %v1155 = vsel %vm452, %v1132, 0
    %1157 = vmatprep.subr.mxu0 0.0
    %1158 = vmatpush1.xpose.msra.mxu0 0.0
    %1159 = vmatprep.subr.mxu0 0.0
    %1160 = vmatpush1.xpose.msra.mxu0 0.0
    %1161 = vmatprep.subr.mxu0 0.0
    %1162 = vmatpush1.xpose.msra.mxu0 0.0
    %1163 = vmatprep.subr.mxu0 0.0
    %1164 = vmatpush1.xpose.msra.mxu0 0.0
    %1165 = vmatprep.subr.mxu0 0.0
    %1166 = vmatpush1.xpose.msra.mxu0 0.0
    %1167 = vmatprep.subr.mxu0 0.0
    %1168 = vmatpush1.xpose.msra.mxu0 0.0
    %1169 = vmatprep.subr.mxu0 0.0
    %1170 = vmatpush1.xpose.msra.mxu0 0.0
    %1171 = vmatprep.subr.mxu0 0.0
    %1172 = vmatpush1.xpose.msra.mxu0 0.0
    %1173 = vmatprep.subr.mxu0 0.0
    %1174 = vmatpush1.xpose.msra.mxu0 0.0
    %1175 = vmatprep.subr.mxu0 0.0
    %1176 = vmatpush1.xpose.msra.mxu0 0.0
    %1177 = vmatprep.subr.mxu0 0.0
    %1178 = vmatpush1.xpose.msra.mxu0 %v1155
    %1179 = vmatprep.subr.mxu0 0.0
    %1180 = vmatpush1.xpose.msra.mxu0 %v1153
    %1181 = vmatprep.subr.mxu0 0.0
    %1182 = vmatpush1.xpose.msra.mxu0 %v1151
    %1183 = vmatprep.subr.mxu0 0.0
    %1184 = vmatpush1.xpose.msra.mxu0 %v1149
    %1185 = vmatprep.subr.mxu0 0.0
    %1186 = vmatpush1.xpose.msra.mxu0 %v1147
    %1187 = vmatprep.subr.mxu0 0.0
    %1188 = vmatpush1.xpose.msra.mxu0 %v1145
    %1189 = vmatprep.subr.mxu0 0.0
    %1190 = vmatpush2.xpose.msra.mxu0 0.0
    %1191 = vmatprep.subr.mxu0 0.0
    %1192 = vmatpush2.xpose.msra.mxu0 0.0
    %1193 = vmatprep.subr.mxu0 0.0
    %1194 = vmatpush2.xpose.msra.mxu0 0.0
    %1195 = vmatprep.subr.mxu0 0.0
    %1196 = vmatpush2.xpose.msra.mxu0 0.0
    %1197 = vmatprep.subr.mxu0 0.0
    %1198 = vmatpush2.xpose.msra.mxu0 0.0
    %1199 = vmatprep.subr.mxu0 0.0
    %1200 = vmatpush2.xpose.msra.mxu0 0.0
    %1201 = vmatprep.subr.mxu0 0.0
    %1202 = vmatpush2.xpose.msra.mxu0 0.0
    %1203 = vmatprep.subr.mxu0 0.0
    %1204 = vmatpush2.xpose.msra.mxu0 0.0
    %1205 = vmatprep.subr.mxu0 0.0
    %1206 = vmatpush2.xpose.msra.mxu0 0.0
    %1207 = vmatprep.subr.mxu0 0.0
    %1208 = vmatpush2.xpose.msra.mxu0 0.0
    %1209 = vmatprep.subr.mxu0 0.0
    %1210 = vmatpush2.xpose.msra.mxu0 0.0
    %1211 = vmatprep.subr.mxu0 0.0
    %1212 = vmatpush2.xpose.msra.mxu0 0.0
    %1213 = vmatprep.subr.mxu0 0.0
    %1214 = vmatpush2.xpose.msra.mxu0 0.0
    %1215 = vmatprep.subr.mxu0 0.0
    %1216 = vmatpush2.xpose.msra.mxu0 0.0
    %1217 = vmatprep.subr.mxu0 0.0
    %1218 = vmatpush2.xpose.msra.mxu0 0.0
    %1219 = vmatprep.subr.mxu0 0.0
    %1220 = vmatpush2.xpose.msra.mxu0 0.0
    %1221 = vmatprep.mubr.f32.mxu0 0.0
    %1222 = vmatmul.mubr.f32.gmra.mxu0 %v1133
    %v1223 = vpop.f32.mrf.mxu0
    %v1224 = vadd.f32 %v198, %v1223
    %v1225 = vpop.f32.mrf.mxu0
    %1226 = vmatprep.mubr.f32.mxu0 0.0
    %1227 = vmatmul.mubr.f32.gmra.mxu0 %v1135
    %v1228 = vpop.f32.mrf.mxu0
    %v1229 = vadd.f32 %v199, %v1228
    %v1230 = vpop.f32.mrf.mxu0
    %1231 = vmatprep.mubr.f32.mxu0 0.0
    %1232 = vmatmul.mubr.f32.gmra.mxu0 %v1137
    %v1233 = vpop.f32.mrf.mxu0
    %v1234 = vadd.f32 %v200, %v1233
    %v1235 = vpop.f32.mrf.mxu0
    %1236 = vmatprep.mubr.f32.mxu0 0.0
    %1237 = vmatmul.mubr.f32.gmra.mxu0 %v1139
    %v1238 = vpop.f32.mrf.mxu0
    %v1239 = vadd.f32 %v201, %v1238
    %v1240 = vpop.f32.mrf.mxu0
    %1241 = vmatprep.mubr.f32.mxu0 0.0
    %1242 = vmatmul.mubr.f32.gmra.mxu0 %v1141
    %v1243 = vpop.f32.mrf.mxu0
    %v1244 = vadd.f32 %v202, %v1243
    %v1245 = vpop.f32.mrf.mxu0
    %1246 = vmatprep.mubr.f32.mxu0 0.0
    %1247 = vmatmul.mubr.f32.gmra.mxu0 %v1143
    %v1248 = vpop.f32.mrf.mxu0
    %v1249 = vadd.f32 %v203, %v1248
    %v1250 = vpop.f32.mrf.mxu0
    %1251 = vdwg.mxu0
    %v1252 = vsel %vm84, %v1224, -inf
    %1253 = vmax.xlane.f32.xlu0 %v1252
    %v1254 = vpop.xlane.xlu0 %1253
    %v1255 = vsel %vm84, %v1229, -inf
    %1256 = vmax.xlane.f32.xlu0 %v1255
    %v1257 = vpop.xlane.xlu0 %1256
    %v1258 = vsel %vm84, %v1234, -inf
    %1259 = vmax.xlane.f32.xlu0 %v1258
    %v1260 = vpop.xlane.xlu0 %1259
    %v1261 = vsel %vm84, %v1239, -inf
    %1262 = vmax.xlane.f32.xlu0 %v1261
    %v1263 = vpop.xlane.xlu0 %1262
    %v1264 = vsel %vm84, %v1244, -inf
    %1265 = vmax.xlane.f32.xlu0 %v1264
    %v1266 = vpop.xlane.xlu0 %1265
    %v1267 = vsel %vm84, %v1249, -inf
    %1268 = vmax.xlane.f32.xlu0 %v1267
    %v1269 = vpop.xlane.xlu0 %1268
    %v1270 = vsub.f32 %v1224, %v1254
    %v1271 = vsub.f32 %v1229, %v1257
    %v1272 = vsub.f32 %v1234, %v1260
    %v1273 = vsub.f32 %v1239, %v1263
    %v1274 = vsub.f32 %v1244, %v1266
    %v1275 = vsub.f32 %v1249, %v1269
    %v1276 = vmul.f32 %v1270, 1.442695
    %v1277 = vpow.pop %v1276
    %v1278 = vmul.f32 %v1271, 1.442695
    %v1279 = vpow.pop %v1278
    %v1280 = vmul.f32 %v1272, 1.442695
    %v1281 = vpow.pop %v1280
    %v1282 = vmul.f32 %v1273, 1.442695
    %v1283 = vpow.pop %v1282
    %v1284 = vmul.f32 %v1274, 1.442695
    %v1285 = vpow.pop %v1284
    %v1286 = vmul.f32 %v1275, 1.442695
    %v1287 = vpow.pop %v1286
    %v1288 = vsel %vm84, %v1277, 0.0
    %1289 = vadd.xlane.f32.xlu0 %v1288
    %v1290 = vpop.xlane.xlu0 %1289
    %v1291 = vsel %vm84, %v1279, 0.0
    %1292 = vadd.xlane.f32.xlu0 %v1291
    %v1293 = vpop.xlane.xlu0 %1292
    %v1294 = vsel %vm84, %v1281, 0.0
    %1295 = vadd.xlane.f32.xlu0 %v1294
    %v1296 = vpop.xlane.xlu0 %1295
    %v1297 = vsel %vm84, %v1283, 0.0
    %1298 = vadd.xlane.f32.xlu0 %v1297
    %v1299 = vpop.xlane.xlu0 %1298
    %v1300 = vsel %vm84, %v1285, 0.0
    %1301 = vadd.xlane.f32.xlu0 %v1300
    %v1302 = vpop.xlane.xlu0 %1301
    %v1303 = vsel %vm84, %v1287, 0.0
    %1304 = vadd.xlane.f32.xlu0 %v1303
    %v1305 = vpop.xlane.xlu0 %1304
    %v1306 = vrcp.pop %v1290
    %v1307 = vrcp.pop %v1293
    %v1308 = vrcp.pop %v1296
    %v1309 = vrcp.pop %v1299
    %v1310 = vrcp.pop %v1302
    %v1311 = vrcp.pop %v1305
    %v1312 = vmul.f32 %v1277, %v1306
    %v1313 = vmul.f32 %v1279, %v1307
    %v1314 = vmul.f32 %v1281, %v1308
    %v1315 = vmul.f32 %v1283, %v1309
    %v1316 = vmul.f32 %v1285, %v1310
    %v1317 = vmul.f32 %v1287, %v1311
    %1318 = vrot.lane.b32.xlu0 %v406, 48
    %v1319 = vpop.permute.xlu0 %1318
    %1320 = vrot.lane.b32.xlu0 %v411, 48
    %v1321 = vpop.permute.xlu0 %1320
    %1322 = vrot.lane.b32.xlu0 %v416, 48
    %v1323 = vpop.permute.xlu0 %1322
    %1324 = vrot.lane.b32.xlu0 %v421, 48
    %v1325 = vpop.permute.xlu0 %1324
    %1326 = vrot.lane.b32.xlu0 %v426, 48
    %v1327 = vpop.permute.xlu0 %1326
    %1328 = vrot.lane.b32.xlu0 %v431, 48
    %v1329 = vpop.permute.xlu0 %1328
    %v1337 = vsel %vm84, %v1312, 0
    %v1340 = vsel %vm84, %v1313, 0
    %v1343 = vsel %vm84, %v1314, 0
    %v1346 = vsel %vm84, %v1315, 0
    %v1349 = vsel %vm84, %v1316, 0
    %v1352 = vsel %vm84, %v1317, 0
    %1354 = vmatprep.subr.mxu0 0.0
    %1355 = vmatpush1.msra.mxu0 0.0
    %1356 = vmatprep.subr.mxu0 0.0
    %1357 = vmatpush1.msra.mxu0 0.0
    %1358 = vmatprep.subr.mxu0 0.0
    %1359 = vmatpush1.msra.mxu0 0.0
    %1360 = vmatprep.subr.mxu0 0.0
    %1361 = vmatpush1.msra.mxu0 0.0
    %1362 = vmatprep.subr.mxu0 0.0
    %1363 = vmatpush1.msra.mxu0 0.0
    %1364 = vmatprep.subr.mxu0 0.0
    %1365 = vmatpush1.msra.mxu0 0.0
    %1366 = vmatprep.subr.mxu0 0.0
    %1367 = vmatpush1.msra.mxu0 0.0
    %1368 = vmatprep.subr.mxu0 0.0
    %1369 = vmatpush1.msra.mxu0 0.0
    %1370 = vmatprep.subr.mxu0 0.0
    %1371 = vmatpush1.msra.mxu0 0.0
    %1372 = vmatprep.subr.mxu0 0.0
    %1373 = vmatpush1.msra.mxu0 0.0
    %1374 = vmatprep.subr.mxu0 0.0
    %1375 = vmatpush1.msra.mxu0 %v1329
    %1376 = vmatprep.subr.mxu0 0.0
    %1377 = vmatpush1.msra.mxu0 %v1327
    %1378 = vmatprep.subr.mxu0 0.0
    %1379 = vmatpush1.msra.mxu0 %v1325
    %1380 = vmatprep.subr.mxu0 0.0
    %1381 = vmatpush1.msra.mxu0 %v1323
    %1382 = vmatprep.subr.mxu0 0.0
    %1383 = vmatpush1.msra.mxu0 %v1321
    %1384 = vmatprep.subr.mxu0 0.0
    %1385 = vmatpush1.msra.mxu0 %v1319
    %1386 = vmatprep.subr.mxu0 0.0
    %1387 = vmatpush2.msra.mxu0 0.0
    %1388 = vmatprep.subr.mxu0 0.0
    %1389 = vmatpush2.msra.mxu0 0.0
    %1390 = vmatprep.subr.mxu0 0.0
    %1391 = vmatpush2.msra.mxu0 0.0
    %1392 = vmatprep.subr.mxu0 0.0
    %1393 = vmatpush2.msra.mxu0 0.0
    %1394 = vmatprep.subr.mxu0 0.0
    %1395 = vmatpush2.msra.mxu0 0.0
    %1396 = vmatprep.subr.mxu0 0.0
    %1397 = vmatpush2.msra.mxu0 0.0
    %1398 = vmatprep.subr.mxu0 0.0
    %1399 = vmatpush2.msra.mxu0 0.0
    %1400 = vmatprep.subr.mxu0 0.0
    %1401 = vmatpush2.msra.mxu0 0.0
    %1402 = vmatprep.subr.mxu0 0.0
    %1403 = vmatpush2.msra.mxu0 0.0
    %1404 = vmatprep.subr.mxu0 0.0
    %1405 = vmatpush2.msra.mxu0 0.0
    %1406 = vmatprep.subr.mxu0 0.0
    %1407 = vmatpush2.msra.mxu0 0.0
    %1408 = vmatprep.subr.mxu0 0.0
    %1409 = vmatpush2.msra.mxu0 0.0
    %1410 = vmatprep.subr.mxu0 0.0
    %1411 = vmatpush2.msra.mxu0 0.0
    %1412 = vmatprep.subr.mxu0 0.0
    %1413 = vmatpush2.msra.mxu0 0.0
    %1414 = vmatprep.subr.mxu0 0.0
    %1415 = vmatpush2.msra.mxu0 0.0
    %1416 = vmatprep.subr.mxu0 0.0
    %1417 = vmatpush2.msra.mxu0 0.0
    %1418 = vmatprep.mubr.f32.mxu0 0.0
    %1419 = vmatmul.mubr.f32.gmra.mxu0 %v1337
    %v1420 = vpop.f32.mrf.mxu0
    %v1421 = vadd.f32 0.0, %v1420
    %v1422 = vpop.f32.mrf.mxu0
    %1423 = vmatprep.mubr.f32.mxu0 0.0
    %1424 = vmatmul.mubr.f32.gmra.mxu0 %v1340
    %v1425 = vpop.f32.mrf.mxu0
    %v1426 = vadd.f32 0.0, %v1425
    %v1427 = vpop.f32.mrf.mxu0
    %1428 = vmatprep.mubr.f32.mxu0 0.0
    %1429 = vmatmul.mubr.f32.gmra.mxu0 %v1343
    %v1430 = vpop.f32.mrf.mxu0
    %v1431 = vadd.f32 0.0, %v1430
    %v1432 = vpop.f32.mrf.mxu0
    %1433 = vmatprep.mubr.f32.mxu0 0.0
    %1434 = vmatmul.mubr.f32.gmra.mxu0 %v1346
    %v1435 = vpop.f32.mrf.mxu0
    %v1436 = vadd.f32 0.0, %v1435
    %v1437 = vpop.f32.mrf.mxu0
    %1438 = vmatprep.mubr.f32.mxu0 0.0
    %1439 = vmatmul.mubr.f32.gmra.mxu0 %v1349
    %v1440 = vpop.f32.mrf.mxu0
    %v1441 = vadd.f32 0.0, %v1440
    %v1442 = vpop.f32.mrf.mxu0
    %1443 = vmatprep.mubr.f32.mxu0 0.0
    %1444 = vmatmul.mubr.f32.gmra.mxu0 %v1352
    %v1445 = vpop.f32.mrf.mxu0
    %v1446 = vadd.f32 0.0, %v1445
    %v1447 = vpop.f32.mrf.mxu0
    %1448 = vdwg.mxu0
    %1449 = vrot.lane.b32.xlu0 %v406, 104
    %v1450 = vpop.permute.xlu0 %1449
    %1451 = vrot.lane.b32.xlu0 %v411, 104
    %v1452 = vpop.permute.xlu0 %1451
    %1453 = vrot.lane.b32.xlu0 %v416, 104
    %v1454 = vpop.permute.xlu0 %1453
    %1455 = vrot.lane.b32.xlu0 %v421, 104
    %v1456 = vpop.permute.xlu0 %1455
    %1457 = vrot.lane.b32.xlu0 %v426, 104
    %v1458 = vpop.permute.xlu0 %1457
    %1459 = vrot.lane.b32.xlu0 %v431, 104
    %v1460 = vpop.permute.xlu0 %1459
    %1461 = vrot.lane.b32.xlu0 %v406, 72
    %v1462 = vpop.permute.xlu0 %1461
    %1463 = vrot.lane.b32.xlu0 %v411, 72
    %v1464 = vpop.permute.xlu0 %1463
    %1465 = vrot.lane.b32.xlu0 %v416, 72
    %v1466 = vpop.permute.xlu0 %1465
    %1467 = vrot.lane.b32.xlu0 %v421, 72
    %v1468 = vpop.permute.xlu0 %1467
    %1469 = vrot.lane.b32.xlu0 %v426, 72
    %v1470 = vpop.permute.xlu0 %1469
    %1471 = vrot.lane.b32.xlu0 %v431, 72
    %v1472 = vpop.permute.xlu0 %1471
    %v1473 = vsel %vm452, %v1450, 0
    %v1475 = vsel %vm452, %v1452, 0
    %v1477 = vsel %vm452, %v1454, 0
    %v1479 = vsel %vm452, %v1456, 0
    %v1481 = vsel %vm452, %v1458, 0
    %v1483 = vsel %vm452, %v1460, 0
    %v1485 = vsel %vm452, %v1462, 0
    %v1487 = vsel %vm452, %v1464, 0
    %v1489 = vsel %vm452, %v1466, 0
    %v1491 = vsel %vm452, %v1468, 0
    %v1493 = vsel %vm452, %v1470, 0
    %v1495 = vsel %vm452, %v1472, 0
    %1497 = vmatprep.subr.mxu0 0.0
    %1498 = vmatpush1.xpose.msra.mxu0 0.0
    %1499 = vmatprep.subr.mxu0 0.0
    %1500 = vmatpush1.xpose.msra.mxu0 0.0
    %1501 = vmatprep.subr.mxu0 0.0
    %1502 = vmatpush1.xpose.msra.mxu0 0.0
    %1503 = vmatprep.subr.mxu0 0.0
    %1504 = vmatpush1.xpose.msra.mxu0 0.0
    %1505 = vmatprep.subr.mxu0 0.0
    %1506 = vmatpush1.xpose.msra.mxu0 0.0
    %1507 = vmatprep.subr.mxu0 0.0
    %1508 = vmatpush1.xpose.msra.mxu0 0.0
    %1509 = vmatprep.subr.mxu0 0.0
    %1510 = vmatpush1.xpose.msra.mxu0 0.0
    %1511 = vmatprep.subr.mxu0 0.0
    %1512 = vmatpush1.xpose.msra.mxu0 0.0
    %1513 = vmatprep.subr.mxu0 0.0
    %1514 = vmatpush1.xpose.msra.mxu0 0.0
    %1515 = vmatprep.subr.mxu0 0.0
    %1516 = vmatpush1.xpose.msra.mxu0 0.0
    %1517 = vmatprep.subr.mxu0 0.0
    %1518 = vmatpush1.xpose.msra.mxu0 %v1495
    %1519 = vmatprep.subr.mxu0 0.0
    %1520 = vmatpush1.xpose.msra.mxu0 %v1493
    %1521 = vmatprep.subr.mxu0 0.0
    %1522 = vmatpush1.xpose.msra.mxu0 %v1491
    %1523 = vmatprep.subr.mxu0 0.0
    %1524 = vmatpush1.xpose.msra.mxu0 %v1489
    %1525 = vmatprep.subr.mxu0 0.0
    %1526 = vmatpush1.xpose.msra.mxu0 %v1487
    %1527 = vmatprep.subr.mxu0 0.0
    %1528 = vmatpush1.xpose.msra.mxu0 %v1485
    %1529 = vmatprep.subr.mxu0 0.0
    %1530 = vmatpush2.xpose.msra.mxu0 0.0
    %1531 = vmatprep.subr.mxu0 0.0
    %1532 = vmatpush2.xpose.msra.mxu0 0.0
    %1533 = vmatprep.subr.mxu0 0.0
    %1534 = vmatpush2.xpose.msra.mxu0 0.0
    %1535 = vmatprep.subr.mxu0 0.0
    %1536 = vmatpush2.xpose.msra.mxu0 0.0
    %1537 = vmatprep.subr.mxu0 0.0
    %1538 = vmatpush2.xpose.msra.mxu0 0.0
    %1539 = vmatprep.subr.mxu0 0.0
    %1540 = vmatpush2.xpose.msra.mxu0 0.0
    %1541 = vmatprep.subr.mxu0 0.0
    %1542 = vmatpush2.xpose.msra.mxu0 0.0
    %1543 = vmatprep.subr.mxu0 0.0
    %1544 = vmatpush2.xpose.msra.mxu0 0.0
    %1545 = vmatprep.subr.mxu0 0.0
    %1546 = vmatpush2.xpose.msra.mxu0 0.0
    %1547 = vmatprep.subr.mxu0 0.0
    %1548 = vmatpush2.xpose.msra.mxu0 0.0
    %1549 = vmatprep.subr.mxu0 0.0
    %1550 = vmatpush2.xpose.msra.mxu0 0.0
    %1551 = vmatprep.subr.mxu0 0.0
    %1552 = vmatpush2.xpose.msra.mxu0 0.0
    %1553 = vmatprep.subr.mxu0 0.0
    %1554 = vmatpush2.xpose.msra.mxu0 0.0
    %1555 = vmatprep.subr.mxu0 0.0
    %1556 = vmatpush2.xpose.msra.mxu0 0.0
    %1557 = vmatprep.subr.mxu0 0.0
    %1558 = vmatpush2.xpose.msra.mxu0 0.0
    %1559 = vmatprep.subr.mxu0 0.0
    %1560 = vmatpush2.xpose.msra.mxu0 0.0
    %1561 = vmatprep.mubr.f32.mxu0 0.0
    %1562 = vmatmul.mubr.f32.gmra.mxu0 %v1473
    %v1563 = vpop.f32.mrf.mxu0
    %v1564 = vadd.f32 %v198, %v1563
    %v1565 = vpop.f32.mrf.mxu0
    %1566 = vmatprep.mubr.f32.mxu0 0.0
    %1567 = vmatmul.mubr.f32.gmra.mxu0 %v1475
    %v1568 = vpop.f32.mrf.mxu0
    %v1569 = vadd.f32 %v199, %v1568
    %v1570 = vpop.f32.mrf.mxu0
    %1571 = vmatprep.mubr.f32.mxu0 0.0
    %1572 = vmatmul.mubr.f32.gmra.mxu0 %v1477
    %v1573 = vpop.f32.mrf.mxu0
    %v1574 = vadd.f32 %v200, %v1573
    %v1575 = vpop.f32.mrf.mxu0
    %1576 = vmatprep.mubr.f32.mxu0 0.0
    %1577 = vmatmul.mubr.f32.gmra.mxu0 %v1479
    %v1578 = vpop.f32.mrf.mxu0
    %v1579 = vadd.f32 %v201, %v1578
    %v1580 = vpop.f32.mrf.mxu0
    %1581 = vmatprep.mubr.f32.mxu0 0.0
    %1582 = vmatmul.mubr.f32.gmra.mxu0 %v1481
    %v1583 = vpop.f32.mrf.mxu0
    %v1584 = vadd.f32 %v202, %v1583
    %v1585 = vpop.f32.mrf.mxu0
    %1586 = vmatprep.mubr.f32.mxu0 0.0
    %1587 = vmatmul.mubr.f32.gmra.mxu0 %v1483
    %v1588 = vpop.f32.mrf.mxu0
    %v1589 = vadd.f32 %v203, %v1588
    %v1590 = vpop.f32.mrf.mxu0
    %1591 = vdwg.mxu0
    %v1592 = vsel %vm84, %v1564, -inf
    %1593 = vmax.xlane.f32.xlu0 %v1592
    %v1594 = vpop.xlane.xlu0 %1593
    %v1595 = vsel %vm84, %v1569, -inf
    %1596 = vmax.xlane.f32.xlu0 %v1595
    %v1597 = vpop.xlane.xlu0 %1596
    %v1598 = vsel %vm84, %v1574, -inf
    %1599 = vmax.xlane.f32.xlu0 %v1598
    %v1600 = vpop.xlane.xlu0 %1599
    %v1601 = vsel %vm84, %v1579, -inf
    %1602 = vmax.xlane.f32.xlu0 %v1601
    %v1603 = vpop.xlane.xlu0 %1602
    %v1604 = vsel %vm84, %v1584, -inf
    %1605 = vmax.xlane.f32.xlu0 %v1604
    %v1606 = vpop.xlane.xlu0 %1605
    %v1607 = vsel %vm84, %v1589, -inf
    %1608 = vmax.xlane.f32.xlu0 %v1607
    %v1609 = vpop.xlane.xlu0 %1608
    %v1610 = vsub.f32 %v1564, %v1594
    %v1611 = vsub.f32 %v1569, %v1597
    %v1612 = vsub.f32 %v1574, %v1600
    %v1613 = vsub.f32 %v1579, %v1603
    %v1614 = vsub.f32 %v1584, %v1606
    %v1615 = vsub.f32 %v1589, %v1609
    %v1616 = vmul.f32 %v1610, 1.442695
    %v1617 = vpow.pop %v1616
    %v1618 = vmul.f32 %v1611, 1.442695
    %v1619 = vpow.pop %v1618
    %v1620 = vmul.f32 %v1612, 1.442695
    %v1621 = vpow.pop %v1620
    %v1622 = vmul.f32 %v1613, 1.442695
    %v1623 = vpow.pop %v1622
    %v1624 = vmul.f32 %v1614, 1.442695
    %v1625 = vpow.pop %v1624
    %v1626 = vmul.f32 %v1615, 1.442695
    %v1627 = vpow.pop %v1626
    %v1628 = vsel %vm84, %v1617, 0.0
    %1629 = vadd.xlane.f32.xlu0 %v1628
    %v1630 = vpop.xlane.xlu0 %1629
    %v1631 = vsel %vm84, %v1619, 0.0
    %1632 = vadd.xlane.f32.xlu0 %v1631
    %v1633 = vpop.xlane.xlu0 %1632
    %v1634 = vsel %vm84, %v1621, 0.0
    %1635 = vadd.xlane.f32.xlu0 %v1634
    %v1636 = vpop.xlane.xlu0 %1635
    %v1637 = vsel %vm84, %v1623, 0.0
    %1638 = vadd.xlane.f32.xlu0 %v1637
    %v1639 = vpop.xlane.xlu0 %1638
    %v1640 = vsel %vm84, %v1625, 0.0
    %1641 = vadd.xlane.f32.xlu0 %v1640
    %v1642 = vpop.xlane.xlu0 %1641
    %v1643 = vsel %vm84, %v1627, 0.0
    %1644 = vadd.xlane.f32.xlu0 %v1643
    %v1645 = vpop.xlane.xlu0 %1644
    %v1646 = vrcp.pop %v1630
    %v1647 = vrcp.pop %v1633
    %v1648 = vrcp.pop %v1636
    %v1649 = vrcp.pop %v1639
    %v1650 = vrcp.pop %v1642
    %v1651 = vrcp.pop %v1645
    %v1652 = vmul.f32 %v1617, %v1646
    %v1653 = vmul.f32 %v1619, %v1647
    %v1654 = vmul.f32 %v1621, %v1648
    %v1655 = vmul.f32 %v1623, %v1649
    %v1656 = vmul.f32 %v1625, %v1650
    %v1657 = vmul.f32 %v1627, %v1651
    %1658 = vrot.lane.b32.xlu0 %v406, 40
    %v1659 = vpop.permute.xlu0 %1658
    %1660 = vrot.lane.b32.xlu0 %v411, 40
    %v1661 = vpop.permute.xlu0 %1660
    %1662 = vrot.lane.b32.xlu0 %v416, 40
    %v1663 = vpop.permute.xlu0 %1662
    %1664 = vrot.lane.b32.xlu0 %v421, 40
    %v1665 = vpop.permute.xlu0 %1664
    %1666 = vrot.lane.b32.xlu0 %v426, 40
    %v1667 = vpop.permute.xlu0 %1666
    %1668 = vrot.lane.b32.xlu0 %v431, 40
    %v1669 = vpop.permute.xlu0 %1668
    %v1677 = vsel %vm84, %v1652, 0
    %v1680 = vsel %vm84, %v1653, 0
    %v1683 = vsel %vm84, %v1654, 0
    %v1686 = vsel %vm84, %v1655, 0
    %v1689 = vsel %vm84, %v1656, 0
    %v1692 = vsel %vm84, %v1657, 0
    %1694 = vmatprep.subr.mxu0 0.0
    %1695 = vmatpush1.msra.mxu0 0.0
    %1696 = vmatprep.subr.mxu0 0.0
    %1697 = vmatpush1.msra.mxu0 0.0
    %1698 = vmatprep.subr.mxu0 0.0
    %1699 = vmatpush1.msra.mxu0 0.0
    %1700 = vmatprep.subr.mxu0 0.0
    %1701 = vmatpush1.msra.mxu0 0.0
    %1702 = vmatprep.subr.mxu0 0.0
    %1703 = vmatpush1.msra.mxu0 0.0
    %1704 = vmatprep.subr.mxu0 0.0
    %1705 = vmatpush1.msra.mxu0 0.0
    %1706 = vmatprep.subr.mxu0 0.0
    %1707 = vmatpush1.msra.mxu0 0.0
    %1708 = vmatprep.subr.mxu0 0.0
    %1709 = vmatpush1.msra.mxu0 0.0
    %1710 = vmatprep.subr.mxu0 0.0
    %1711 = vmatpush1.msra.mxu0 0.0
    %1712 = vmatprep.subr.mxu0 0.0
    %1713 = vmatpush1.msra.mxu0 0.0
    %1714 = vmatprep.subr.mxu0 0.0
    %1715 = vmatpush1.msra.mxu0 %v1669
    %1716 = vmatprep.subr.mxu0 0.0
    %1717 = vmatpush1.msra.mxu0 %v1667
    %1718 = vmatprep.subr.mxu0 0.0
    %1719 = vmatpush1.msra.mxu0 %v1665
    %1720 = vmatprep.subr.mxu0 0.0
    %1721 = vmatpush1.msra.mxu0 %v1663
    %1722 = vmatprep.subr.mxu0 0.0
    %1723 = vmatpush1.msra.mxu0 %v1661
    %1724 = vmatprep.subr.mxu0 0.0
    %1725 = vmatpush1.msra.mxu0 %v1659
    %1726 = vmatprep.subr.mxu0 0.0
    %1727 = vmatpush2.msra.mxu0 0.0
    %1728 = vmatprep.subr.mxu0 0.0
    %1729 = vmatpush2.msra.mxu0 0.0
    %1730 = vmatprep.subr.mxu0 0.0
    %1731 = vmatpush2.msra.mxu0 0.0
    %1732 = vmatprep.subr.mxu0 0.0
    %1733 = vmatpush2.msra.mxu0 0.0
    %1734 = vmatprep.subr.mxu0 0.0
    %1735 = vmatpush2.msra.mxu0 0.0
    %1736 = vmatprep.subr.mxu0 0.0
    %1737 = vmatpush2.msra.mxu0 0.0
    %1738 = vmatprep.subr.mxu0 0.0
    %1739 = vmatpush2.msra.mxu0 0.0
    %1740 = vmatprep.subr.mxu0 0.0
    %1741 = vmatpush2.msra.mxu0 0.0
    %1742 = vmatprep.subr.mxu0 0.0
    %1743 = vmatpush2.msra.mxu0 0.0
    %1744 = vmatprep.subr.mxu0 0.0
    %1745 = vmatpush2.msra.mxu0 0.0
    %1746 = vmatprep.subr.mxu0 0.0
    %1747 = vmatpush2.msra.mxu0 0.0
    %1748 = vmatprep.subr.mxu0 0.0
    %1749 = vmatpush2.msra.mxu0 0.0
    %1750 = vmatprep.subr.mxu0 0.0
    %1751 = vmatpush2.msra.mxu0 0.0
    %1752 = vmatprep.subr.mxu0 0.0
    %1753 = vmatpush2.msra.mxu0 0.0
    %1754 = vmatprep.subr.mxu0 0.0
    %1755 = vmatpush2.msra.mxu0 0.0
    %1756 = vmatprep.subr.mxu0 0.0
    %1757 = vmatpush2.msra.mxu0 0.0
    %1758 = vmatprep.mubr.f32.mxu0 0.0
    %1759 = vmatmul.mubr.f32.gmra.mxu0 %v1677
    %v1760 = vpop.f32.mrf.mxu0
    %v1761 = vadd.f32 0.0, %v1760
    %v1762 = vpop.f32.mrf.mxu0
    %1763 = vmatprep.mubr.f32.mxu0 0.0
    %1764 = vmatmul.mubr.f32.gmra.mxu0 %v1680
    %v1765 = vpop.f32.mrf.mxu0
    %v1766 = vadd.f32 0.0, %v1765
    %v1767 = vpop.f32.mrf.mxu0
    %1768 = vmatprep.mubr.f32.mxu0 0.0
    %1769 = vmatmul.mubr.f32.gmra.mxu0 %v1683
    %v1770 = vpop.f32.mrf.mxu0
    %v1771 = vadd.f32 0.0, %v1770
    %v1772 = vpop.f32.mrf.mxu0
    %1773 = vmatprep.mubr.f32.mxu0 0.0
    %1774 = vmatmul.mubr.f32.gmra.mxu0 %v1686
    %v1775 = vpop.f32.mrf.mxu0
    %v1776 = vadd.f32 0.0, %v1775
    %v1777 = vpop.f32.mrf.mxu0
    %1778 = vmatprep.mubr.f32.mxu0 0.0
    %1779 = vmatmul.mubr.f32.gmra.mxu0 %v1689
    %v1780 = vpop.f32.mrf.mxu0
    %v1781 = vadd.f32 0.0, %v1780
    %v1782 = vpop.f32.mrf.mxu0
    %1783 = vmatprep.mubr.f32.mxu0 0.0
    %1784 = vmatmul.mubr.f32.gmra.mxu0 %v1692
    %v1785 = vpop.f32.mrf.mxu0
    %v1786 = vadd.f32 0.0, %v1785
    %v1787 = vpop.f32.mrf.mxu0
    %1788 = vdwg.mxu0
    %1795 = vrot.lane.b32.xlu0 %v1081, 8
    %v1796 = vpop.permute.xlu0 %1795
    %1797 = vrot.lane.b32.xlu0 %v1086, 8
    %v1798 = vpop.permute.xlu0 %1797
    %1799 = vrot.lane.b32.xlu0 %v1091, 8
    %v1800 = vpop.permute.xlu0 %1799
    %1801 = vrot.lane.b32.xlu0 %v1096, 8
    %v1802 = vpop.permute.xlu0 %1801
    %1803 = vrot.lane.b32.xlu0 %v1101, 8
    %v1804 = vpop.permute.xlu0 %1803
    %1805 = vrot.lane.b32.xlu0 %v1106, 8
    %v1806 = vpop.permute.xlu0 %1805
    %1819 = vrot.lane.b32.xlu0 %v1421, 16
    %v1820 = vpop.permute.xlu0 %1819
    %1821 = vrot.lane.b32.xlu0 %v1426, 16
    %v1822 = vpop.permute.xlu0 %1821
    %1823 = vrot.lane.b32.xlu0 %v1431, 16
    %v1824 = vpop.permute.xlu0 %1823
    %1825 = vrot.lane.b32.xlu0 %v1436, 16
    %v1826 = vpop.permute.xlu0 %1825
    %1827 = vrot.lane.b32.xlu0 %v1441, 16
    %v1828 = vpop.permute.xlu0 %1827
    %1829 = vrot.lane.b32.xlu0 %v1446, 16
    %v1830 = vpop.permute.xlu0 %1829
    %1843 = vrot.lane.b32.xlu0 %v1761, 24
    %v1844 = vpop.permute.xlu0 %1843
    %1845 = vrot.lane.b32.xlu0 %v1766, 24
    %v1846 = vpop.permute.xlu0 %1845
    %1847 = vrot.lane.b32.xlu0 %v1771, 24
    %v1848 = vpop.permute.xlu0 %1847
    %1849 = vrot.lane.b32.xlu0 %v1776, 24
    %v1850 = vpop.permute.xlu0 %1849
    %1851 = vrot.lane.b32.xlu0 %v1781, 24
    %v1852 = vpop.permute.xlu0 %1851
    %1853 = vrot.lane.b32.xlu0 %v1786, 24
    %v1854 = vpop.permute.xlu0 %1853
    %v1861 = vsel %vm452, %v741, %v1796
    %v1862 = vsel %vm452, %v746, %v1798
    %v1863 = vsel %vm452, %v751, %v1800
    %v1864 = vsel %vm452, %v756, %v1802
    %v1865 = vsel %vm452, %v761, %v1804
    %v1866 = vsel %vm452, %v766, %v1806
    %vm1867 = vcmask 130048
    %v1868 = vsel %vm1867, %v1861, %v1820
    %v1869 = vsel %vm1867, %v1862, %v1822
    %v1870 = vsel %vm1867, %v1863, %v1824
    %v1871 = vsel %vm1867, %v1864, %v1826
    %v1872 = vsel %vm1867, %v1865, %v1828
    %v1873 = vsel %vm1867, %v1866, %v1830
    %vm1874 = vcmask 195584
    %v1875 = vsel %vm1874, %v1868, %v1844
    %v1876 = vsel %vm1874, %v1869, %v1846
    %v1877 = vsel %vm1874, %v1870, %v1848
    %v1878 = vsel %vm1874, %v1871, %v1850
    %v1879 = vsel %vm1874, %v1872, %v1852
    %v1880 = vsel %vm1874, %v1873, %v1854
    %v1881 = vld [vmem:[%s8] sm:$0xff]
    %v1882 = vld [vmem:[%s8 + $0x8] sm:$0xff]
    %v1883 = vld [vmem:[%s8 + $0x10] sm:$0xff]
    %v1884 = vld [vmem:[%s8 + $0x18] sm:$0xff]
    %v1886 = vsel %vm206, %v1875, 0
    %v1889 = vsel %vm206, %v1876, 0
    %v1892 = vsel %vm206, %v1877, 0
    %v1895 = vsel %vm206, %v1878, 0
    %v1898 = vsel %vm206, %v1879, 0
    %v1901 = vsel %vm206, %v1880, 0
    %1903 = vmatprep.subr.mxu0 0.0
    %1904 = vmatpush1.msra.mxu0 0.0
    %1905 = vmatprep.subr.mxu0 0.0
    %1906 = vmatpush1.msra.mxu0 0.0
    %1907 = vmatprep.subr.mxu0 0.0
    %1908 = vmatpush1.msra.mxu0 0.0
    %1909 = vmatprep.subr.mxu0 0.0
    %1910 = vmatpush1.msra.mxu0 0.0
    %1911 = vmatprep.subr.mxu0 0.0
    %1912 = vmatpush1.msra.mxu0 0.0
    %1913 = vmatprep.subr.mxu0 0.0
    %1914 = vmatpush1.msra.mxu0 0.0
    %1915 = vmatprep.subr.mxu0 0.0
    %1916 = vmatpush1.msra.mxu0 0.0
    %1917 = vmatprep.subr.mxu0 0.0
    %1918 = vmatpush1.msra.mxu0 0.0
    %1919 = vmatprep.subr.mxu0 0.0
    %1920 = vmatpush1.msra.mxu0 0.0
    %1921 = vmatprep.subr.mxu0 0.0
    %1922 = vmatpush1.msra.mxu0 0.0
    %1923 = vmatprep.subr.mxu0 0.0
    %1924 = vmatpush1.msra.mxu0 0.0
    %1925 = vmatprep.subr.mxu0 0.0
    %1926 = vmatpush1.msra.mxu0 0.0
    %1927 = vmatprep.subr.mxu0 0.0
    %1928 = vmatpush1.msra.mxu0 %v1884
    %1929 = vmatprep.subr.mxu0 0.0
    %1930 = vmatpush1.msra.mxu0 %v1883
    %1931 = vmatprep.subr.mxu0 0.0
    %1932 = vmatpush1.msra.mxu0 %v1882
    %1933 = vmatprep.subr.mxu0 0.0
    %1934 = vmatpush1.msra.mxu0 %v1881
    %1935 = vmatprep.subr.mxu0 0.0
    %1936 = vmatpush2.msra.mxu0 0.0
    %1937 = vmatprep.subr.mxu0 0.0
    %1938 = vmatpush2.msra.mxu0 0.0
    %1939 = vmatprep.subr.mxu0 0.0
    %1940 = vmatpush2.msra.mxu0 0.0
    %1941 = vmatprep.subr.mxu0 0.0
    %1942 = vmatpush2.msra.mxu0 0.0
    %1943 = vmatprep.subr.mxu0 0.0
    %1944 = vmatpush2.msra.mxu0 0.0
    %1945 = vmatprep.subr.mxu0 0.0
    %1946 = vmatpush2.msra.mxu0 0.0
    %1947 = vmatprep.subr.mxu0 0.0
    %1948 = vmatpush2.msra.mxu0 0.0
    %1949 = vmatprep.subr.mxu0 0.0
    %1950 = vmatpush2.msra.mxu0 0.0
    %1951 = vmatprep.subr.mxu0 0.0
    %1952 = vmatpush2.msra.mxu0 0.0
    %1953 = vmatprep.subr.mxu0 0.0
    %1954 = vmatpush2.msra.mxu0 0.0
    %1955 = vmatprep.subr.mxu0 0.0
    %1956 = vmatpush2.msra.mxu0 0.0
    %1957 = vmatprep.subr.mxu0 0.0
    %1958 = vmatpush2.msra.mxu0 0.0
    %1959 = vmatprep.subr.mxu0 0.0
    %1960 = vmatpush2.msra.mxu0 0.0
    %1961 = vmatprep.subr.mxu0 0.0
    %1962 = vmatpush2.msra.mxu0 0.0
    %1963 = vmatprep.subr.mxu0 0.0
    %1964 = vmatpush2.msra.mxu0 0.0
    %1965 = vmatprep.subr.mxu0 0.0
    %1966 = vmatpush2.msra.mxu0 0.0
    %1967 = vmatprep.mubr.f32.mxu0 0.0
    %1968 = vmatmul.mubr.f32.gmra.mxu0 %v1886
    %v1969 = vpop.f32.mrf.mxu0
    %v1970 = vadd.f32 0.0, %v1969
    %v1971 = vpop.f32.mrf.mxu0
    %1972 = vmatprep.mubr.f32.mxu0 0.0
    %1973 = vmatmul.mubr.f32.gmra.mxu0 %v1889
    %v1974 = vpop.f32.mrf.mxu0
    %v1975 = vadd.f32 0.0, %v1974
    %v1976 = vpop.f32.mrf.mxu0
    %1977 = vmatprep.mubr.f32.mxu0 0.0
    %1978 = vmatmul.mubr.f32.gmra.mxu0 %v1892
    %v1979 = vpop.f32.mrf.mxu0
    %v1980 = vadd.f32 0.0, %v1979
    %v1981 = vpop.f32.mrf.mxu0
    %1982 = vmatprep.mubr.f32.mxu0 0.0
    %1983 = vmatmul.mubr.f32.gmra.mxu0 %v1895
    %v1984 = vpop.f32.mrf.mxu0
    %v1985 = vadd.f32 0.0, %v1984
    %v1986 = vpop.f32.mrf.mxu0
    %1987 = vmatprep.mubr.f32.mxu0 0.0
    %1988 = vmatmul.mubr.f32.gmra.mxu0 %v1898
    %v1989 = vpop.f32.mrf.mxu0
    %v1990 = vadd.f32 0.0, %v1989
    %v1991 = vpop.f32.mrf.mxu0
    %1992 = vmatprep.mubr.f32.mxu0 0.0
    %1993 = vmatmul.mubr.f32.gmra.mxu0 %v1901
    %v1994 = vpop.f32.mrf.mxu0
    %v1995 = vadd.f32 0.0, %v1994
    %v1996 = vpop.f32.mrf.mxu0
    %1997 = vdwg.mxu0
    %v1998 = vadd.f32 %v170, %v1970
    %v1999 = vadd.f32 %v175, %v1975
    %v2000 = vadd.f32 %v180, %v1980
    %v2001 = vadd.f32 %v185, %v1985
    %v2002 = vadd.f32 %v190, %v1990
    %v2003 = vadd.f32 %v195, %v1995
    %v2004 = vld [vmem:[%s9] sm:$0x1]
    %v2006 = vlaneseq
    %v2007 = vshrl.u32 %v2006, 7
    %v2008 = vsub.s32 0, %v2007
    %v2009 = vrot.slane %v2004, %v2008
    %v2011 = vadd.f32 %v1998, %v2009
    %v2012 = vadd.f32 %v1999, %v2009
    %v2013 = vadd.f32 %v2000, %v2009
    %v2014 = vadd.f32 %v2001, %v2009
    %v2015 = vadd.f32 %v2002, %v2009
    %v2016 = vadd.f32 %v2003, %v2009
    %v2017 = vld [vmem:[%s10] sm:$0x1]
    %v2018 = vld [vmem:[%s11] sm:$0x1]
    %v2019 = vsel %vm206, %v2011, 0.0
    %2020 = vadd.xlane.f32.xlu0 %v2019
    %v2021 = vpop.xlane.xlu0 %2020
    %v2022 = vsel %vm206, %v2012, 0.0
    %2023 = vadd.xlane.f32.xlu0 %v2022
    %v2024 = vpop.xlane.xlu0 %2023
    %v2025 = vsel %vm206, %v2013, 0.0
    %2026 = vadd.xlane.f32.xlu0 %v2025
    %v2027 = vpop.xlane.xlu0 %2026
    %v2028 = vsel %vm206, %v2014, 0.0
    %2029 = vadd.xlane.f32.xlu0 %v2028
    %v2030 = vpop.xlane.xlu0 %2029
    %v2031 = vsel %vm206, %v2015, 0.0
    %2032 = vadd.xlane.f32.xlu0 %v2031
    %v2033 = vpop.xlane.xlu0 %2032
    %v2034 = vsel %vm206, %v2016, 0.0
    %2035 = vadd.xlane.f32.xlu0 %v2034
    %v2036 = vpop.xlane.xlu0 %2035
    %v2037 = vmul.f32 %v2021, %v225
    %v2038 = vmul.f32 %v2024, %v225
    %v2039 = vmul.f32 %v2027, %v225
    %v2040 = vmul.f32 %v2030, %v225
    %v2041 = vmul.f32 %v2033, %v225
    %v2042 = vmul.f32 %v2036, %v225
    %v2043 = vsub.f32 %v2011, %v2037
    %v2044 = vsub.f32 %v2012, %v2038
    %v2045 = vsub.f32 %v2013, %v2039
    %v2046 = vsub.f32 %v2014, %v2040
    %v2047 = vsub.f32 %v2015, %v2041
    %v2048 = vsub.f32 %v2016, %v2042
    %v2049 = vmul.f32 %v2043, %v2043
    %v2050 = vmul.f32 %v2044, %v2044
    %v2051 = vmul.f32 %v2045, %v2045
    %v2052 = vmul.f32 %v2046, %v2046
    %v2053 = vmul.f32 %v2047, %v2047
    %v2054 = vmul.f32 %v2048, %v2048
    %v2055 = vsel %vm206, %v2049, 0.0
    %2056 = vadd.xlane.f32.xlu0 %v2055
    %v2057 = vpop.xlane.xlu0 %2056
    %v2058 = vsel %vm206, %v2050, 0.0
    %2059 = vadd.xlane.f32.xlu0 %v2058
    %v2060 = vpop.xlane.xlu0 %2059
    %v2061 = vsel %vm206, %v2051, 0.0
    %2062 = vadd.xlane.f32.xlu0 %v2061
    %v2063 = vpop.xlane.xlu0 %2062
    %v2064 = vsel %vm206, %v2052, 0.0
    %2065 = vadd.xlane.f32.xlu0 %v2064
    %v2066 = vpop.xlane.xlu0 %2065
    %v2067 = vsel %vm206, %v2053, 0.0
    %2068 = vadd.xlane.f32.xlu0 %v2067
    %v2069 = vpop.xlane.xlu0 %2068
    %v2070 = vsel %vm206, %v2054, 0.0
    %2071 = vadd.xlane.f32.xlu0 %v2070
    %v2072 = vpop.xlane.xlu0 %2071
    %v2073 = vmul.f32 %v2057, %v225
    %v2074 = vmul.f32 %v2060, %v225
    %v2075 = vmul.f32 %v2063, %v225
    %v2076 = vmul.f32 %v2066, %v225
    %v2077 = vmul.f32 %v2069, %v225
    %v2078 = vmul.f32 %v2072, %v225
    %v2079 = vadd.f32 %v2073, 1e-06
    %v2080 = vadd.f32 %v2074, 1e-06
    %v2081 = vadd.f32 %v2075, 1e-06
    %v2082 = vadd.f32 %v2076, 1e-06
    %v2083 = vadd.f32 %v2077, 1e-06
    %v2084 = vadd.f32 %v2078, 1e-06
    %v2085 = vrsqrt.pop %v2079
    %v2086 = vrsqrt.pop %v2080
    %v2087 = vrsqrt.pop %v2081
    %v2088 = vrsqrt.pop %v2082
    %v2089 = vrsqrt.pop %v2083
    %v2090 = vrsqrt.pop %v2084
    %v2091 = vmul.f32 %v2043, %v2085
    %v2092 = vmul.f32 %v2044, %v2086
    %v2093 = vmul.f32 %v2045, %v2087
    %v2094 = vmul.f32 %v2046, %v2088
    %v2095 = vmul.f32 %v2047, %v2089
    %v2096 = vmul.f32 %v2048, %v2090
    %v2098 = vlaneseq
    %v2099 = vshrl.u32 %v2098, 7
    %v2100 = vsub.s32 0, %v2099
    %v2101 = vrot.slane %v2017, %v2100
    %v2103 = vmul.f32 %v2091, %v2101
    %v2104 = vmul.f32 %v2092, %v2101
    %v2105 = vmul.f32 %v2093, %v2101
    %v2106 = vmul.f32 %v2094, %v2101
    %v2107 = vmul.f32 %v2095, %v2101
    %v2108 = vmul.f32 %v2096, %v2101
    %v2110 = vlaneseq
    %v2111 = vshrl.u32 %v2110, 7
    %v2112 = vsub.s32 0, %v2111
    %v2113 = vrot.slane %v2018, %v2112
    %v2115 = vadd.f32 %v2103, %v2113
    %v2116 = vadd.f32 %v2104, %v2113
    %v2117 = vadd.f32 %v2105, %v2113
    %v2118 = vadd.f32 %v2106, %v2113
    %v2119 = vadd.f32 %v2107, %v2113
    %v2120 = vadd.f32 %v2108, %v2113
    %v2121 = vld [vmem:[%s12] sm:$0xff]
    %v2122 = vld [vmem:[%s12 + $0x8] sm:$0xff]
    %v2123 = vld [vmem:[%s12 + $0x10] sm:$0xff]
    %v2124 = vld [vmem:[%s12 + $0x18] sm:$0xff]
    %v2125 = vld [vmem:[%s13] sm:$0x1]
    %v2127 = vlaneseq
    %v2128 = vshrl.u32 %v2127, 7
    %v2129 = vsub.s32 0, %v2128
    %v2130 = vrot.slane %v2125, %v2129
    %v2133 = vsel %vm206, %v2115, 0
    %v2136 = vsel %vm206, %v2116, 0
    %v2139 = vsel %vm206, %v2117, 0
    %v2142 = vsel %vm206, %v2118, 0
    %v2145 = vsel %vm206, %v2119, 0
    %v2148 = vsel %vm206, %v2120, 0
    %2150 = vmatprep.subr.mxu0 0.0
    %2151 = vmatpush1.msra.mxu0 0.0
    %2152 = vmatprep.subr.mxu0 0.0
    %2153 = vmatpush1.msra.mxu0 0.0
    %2154 = vmatprep.subr.mxu0 0.0
    %2155 = vmatpush1.msra.mxu0 0.0
    %2156 = vmatprep.subr.mxu0 0.0
    %2157 = vmatpush1.msra.mxu0 0.0
    %2158 = vmatprep.subr.mxu0 0.0
    %2159 = vmatpush1.msra.mxu0 0.0
    %2160 = vmatprep.subr.mxu0 0.0
    %2161 = vmatpush1.msra.mxu0 0.0
    %2162 = vmatprep.subr.mxu0 0.0
    %2163 = vmatpush1.msra.mxu0 0.0
    %2164 = vmatprep.subr.mxu0 0.0
    %2165 = vmatpush1.msra.mxu0 0.0
    %2166 = vmatprep.subr.mxu0 0.0
    %2167 = vmatpush1.msra.mxu0 0.0
    %2168 = vmatprep.subr.mxu0 0.0
    %2169 = vmatpush1.msra.mxu0 0.0
    %2170 = vmatprep.subr.mxu0 0.0
    %2171 = vmatpush1.msra.mxu0 0.0
    %2172 = vmatprep.subr.mxu0 0.0
    %2173 = vmatpush1.msra.mxu0 0.0
    %2174 = vmatprep.subr.mxu0 0.0
    %2175 = vmatpush1.msra.mxu0 %v2124
    %2176 = vmatprep.subr.mxu0 0.0
    %2177 = vmatpush1.msra.mxu0 %v2123
    %2178 = vmatprep.subr.mxu0 0.0
    %2179 = vmatpush1.msra.mxu0 %v2122
    %2180 = vmatprep.subr.mxu0 0.0
    %2181 = vmatpush1.msra.mxu0 %v2121
    %2182 = vmatprep.subr.mxu0 0.0
    %2183 = vmatpush2.msra.mxu0 0.0
    %2184 = vmatprep.subr.mxu0 0.0
    %2185 = vmatpush2.msra.mxu0 0.0
    %2186 = vmatprep.subr.mxu0 0.0
    %2187 = vmatpush2.msra.mxu0 0.0
    %2188 = vmatprep.subr.mxu0 0.0
    %2189 = vmatpush2.msra.mxu0 0.0
    %2190 = vmatprep.subr.mxu0 0.0
    %2191 = vmatpush2.msra.mxu0 0.0
    %2192 = vmatprep.subr.mxu0 0.0
    %2193 = vmatpush2.msra.mxu0 0.0
    %2194 = vmatprep.subr.mxu0 0.0
    %2195 = vmatpush2.msra.mxu0 0.0
    %2196 = vmatprep.subr.mxu0 0.0
    %2197 = vmatpush2.msra.mxu0 0.0
    %2198 = vmatprep.subr.mxu0 0.0
    %2199 = vmatpush2.msra.mxu0 0.0
    %2200 = vmatprep.subr.mxu0 0.0
    %2201 = vmatpush2.msra.mxu0 0.0
    %2202 = vmatprep.subr.mxu0 0.0
    %2203 = vmatpush2.msra.mxu0 0.0
    %2204 = vmatprep.subr.mxu0 0.0
    %2205 = vmatpush2.msra.mxu0 0.0
    %2206 = vmatprep.subr.mxu0 0.0
    %2207 = vmatpush2.msra.mxu0 0.0
    %2208 = vmatprep.subr.mxu0 0.0
    %2209 = vmatpush2.msra.mxu0 0.0
    %2210 = vmatprep.subr.mxu0 0.0
    %2211 = vmatpush2.msra.mxu0 0.0
    %2212 = vmatprep.subr.mxu0 0.0
    %2213 = vmatpush2.msra.mxu0 0.0
    %2214 = vmatprep.mubr.f32.mxu0 0.0
    %2215 = vmatmul.mubr.f32.gmra.mxu0 %v2133
    %v2216 = vpop.f32.mrf.mxu0
    %v2217 = vadd.f32 %v2130, %v2216
    %v2218 = vpop.f32.mrf.mxu0
    %2219 = vmatprep.mubr.f32.mxu0 0.0
    %2220 = vmatmul.mubr.f32.gmra.mxu0 %v2136
    %v2221 = vpop.f32.mrf.mxu0
    %v2222 = vadd.f32 %v2130, %v2221
    %v2223 = vpop.f32.mrf.mxu0
    %2224 = vmatprep.mubr.f32.mxu0 0.0
    %2225 = vmatmul.mubr.f32.gmra.mxu0 %v2139
    %v2226 = vpop.f32.mrf.mxu0
    %v2227 = vadd.f32 %v2130, %v2226
    %v2228 = vpop.f32.mrf.mxu0
    %2229 = vmatprep.mubr.f32.mxu0 0.0
    %2230 = vmatmul.mubr.f32.gmra.mxu0 %v2142
    %v2231 = vpop.f32.mrf.mxu0
    %v2232 = vadd.f32 %v2130, %v2231
    %v2233 = vpop.f32.mrf.mxu0
    %2234 = vmatprep.mubr.f32.mxu0 0.0
    %2235 = vmatmul.mubr.f32.gmra.mxu0 %v2145
    %v2236 = vpop.f32.mrf.mxu0
    %v2237 = vadd.f32 %v2130, %v2236
    %v2238 = vpop.f32.mrf.mxu0
    %2239 = vmatprep.mubr.f32.mxu0 0.0
    %2240 = vmatmul.mubr.f32.gmra.mxu0 %v2148
    %v2241 = vpop.f32.mrf.mxu0
    %v2242 = vadd.f32 %v2130, %v2241
    %v2243 = vpop.f32.mrf.mxu0
    %2244 = vdwg.mxu0
    %v2245 = vmul.f32 %v2217, %v2217
    %v2246 = vmul.f32 %v2222, %v2222
    %v2247 = vmul.f32 %v2227, %v2227
    %v2248 = vmul.f32 %v2232, %v2232
    %v2249 = vmul.f32 %v2237, %v2237
    %v2250 = vmul.f32 %v2242, %v2242
    %v2251 = vmul.f32 %v2217, %v2245
    %v2252 = vmul.f32 %v2222, %v2246
    %v2253 = vmul.f32 %v2227, %v2247
    %v2254 = vmul.f32 %v2232, %v2248
    %v2255 = vmul.f32 %v2237, %v2249
    %v2256 = vmul.f32 %v2242, %v2250
    %v2257 = vmul.f32 %v2251, 0.044715
    %v2258 = vmul.f32 %v2252, 0.044715
    %v2259 = vmul.f32 %v2253, 0.044715
    %v2260 = vmul.f32 %v2254, 0.044715
    %v2261 = vmul.f32 %v2255, 0.044715
    %v2262 = vmul.f32 %v2256, 0.044715
    %v2263 = vadd.f32 %v2217, %v2257
    %v2264 = vadd.f32 %v2222, %v2258
    %v2265 = vadd.f32 %v2227, %v2259
    %v2266 = vadd.f32 %v2232, %v2260
    %v2267 = vadd.f32 %v2237, %v2261
    %v2268 = vadd.f32 %v2242, %v2262
    %v2269 = vmul.f32 %v2263, 0.7978846
    %v2270 = vmul.f32 %v2264, 0.7978846
    %v2271 = vmul.f32 %v2265, 0.7978846
    %v2272 = vmul.f32 %v2266, 0.7978846
    %v2273 = vmul.f32 %v2267, 0.7978846
    %v2274 = vmul.f32 %v2268, 0.7978846
    %v2275 = vtanh.pop %v2269
    %v2276 = vtanh.pop %v2270
    %v2277 = vtanh.pop %v2271
    %v2278 = vtanh.pop %v2272
    %v2279 = vtanh.pop %v2273
    %v2280 = vtanh.pop %v2274
    %v2281 = vadd.f32 %v2275, 1.0
    %v2282 = vadd.f32 %v2276, 1.0
    %v2283 = vadd.f32 %v2277, 1.0
    %v2284 = vadd.f32 %v2278, 1.0
    %v2285 = vadd.f32 %v2279, 1.0
    %v2286 = vadd.f32 %v2280, 1.0
    %v2287 = vmul.f32 %v2281, 0.5
    %v2288 = vmul.f32 %v2282, 0.5
    %v2289 = vmul.f32 %v2283, 0.5
    %v2290 = vmul.f32 %v2284, 0.5
    %v2291 = vmul.f32 %v2285, 0.5
    %v2292 = vmul.f32 %v2286, 0.5
    %v2293 = vmul.f32 %v2217, %v2287
    %v2294 = vmul.f32 %v2222, %v2288
    %v2295 = vmul.f32 %v2227, %v2289
    %v2296 = vmul.f32 %v2232, %v2290
    %v2297 = vmul.f32 %v2237, %v2291
    %v2298 = vmul.f32 %v2242, %v2292
    %v2299 = vld [vmem:[%s14] sm:$0xff]
    %v2300 = vld [vmem:[%s14 + $0x8] sm:$0xff]
    %v2301 = vld [vmem:[%s14 + $0x10] sm:$0xff]
    %v2302 = vld [vmem:[%s14 + $0x18] sm:$0xff]
    %v2303 = vld [vmem:[%s14 + $0x20] sm:$0xff]
    %v2304 = vld [vmem:[%s14 + $0x28] sm:$0xff]
    %v2305 = vld [vmem:[%s14 + $0x30] sm:$0xff]
    %v2306 = vld [vmem:[%s14 + $0x38] sm:$0xff]
    %v2307 = vld [vmem:[%s14 + $0x40] sm:$0xff]
    %v2308 = vld [vmem:[%s14 + $0x48] sm:$0xff]
    %v2309 = vld [vmem:[%s14 + $0x50] sm:$0xff]
    %v2310 = vld [vmem:[%s14 + $0x58] sm:$0xff]
    %v2311 = vld [vmem:[%s14 + $0x60] sm:$0xff]
    %v2312 = vld [vmem:[%s14 + $0x68] sm:$0xff]
    %v2313 = vld [vmem:[%s14 + $0x70] sm:$0xff]
    %v2314 = vld [vmem:[%s14 + $0x78] sm:$0xff]
    %2315 = vmatprep.subr.mxu0 0.0
    %2316 = vmatpush1.msra.mxu0 %v2314
    %2317 = vmatprep.subr.mxu0 0.0
    %2318 = vmatpush1.msra.mxu0 %v2313
    %2319 = vmatprep.subr.mxu0 0.0
    %2320 = vmatpush1.msra.mxu0 %v2312
    %2321 = vmatprep.subr.mxu0 0.0
    %2322 = vmatpush1.msra.mxu0 %v2311
    %2323 = vmatprep.subr.mxu0 0.0
    %2324 = vmatpush1.msra.mxu0 %v2310
    %2325 = vmatprep.subr.mxu0 0.0
    %2326 = vmatpush1.msra.mxu0 %v2309
    %2327 = vmatprep.subr.mxu0 0.0
    %2328 = vmatpush1.msra.mxu0 %v2308
    %2329 = vmatprep.subr.mxu0 0.0
    %2330 = vmatpush1.msra.mxu0 %v2307
    %2331 = vmatprep.subr.mxu0 0.0
    %2332 = vmatpush1.msra.mxu0 %v2306
    %2333 = vmatprep.subr.mxu0 0.0
    %2334 = vmatpush1.msra.mxu0 %v2305
    %2335 = vmatprep.subr.mxu0 0.0
    %2336 = vmatpush1.msra.mxu0 %v2304
    %2337 = vmatprep.subr.mxu0 0.0
    %2338 = vmatpush1.msra.mxu0 %v2303
    %2339 = vmatprep.subr.mxu0 0.0
    %2340 = vmatpush1.msra.mxu0 %v2302
    %2341 = vmatprep.subr.mxu0 0.0
    %2342 = vmatpush1.msra.mxu0 %v2301
    %2343 = vmatprep.subr.mxu0 0.0
    %2344 = vmatpush1.msra.mxu0 %v2300
    %2345 = vmatprep.subr.mxu0 0.0
    %2346 = vmatpush1.msra.mxu0 %v2299
    %2347 = vmatprep.subr.mxu0 0.0
    %2348 = vmatpush2.msra.mxu0 0.0
    %2349 = vmatprep.subr.mxu0 0.0
    %2350 = vmatpush2.msra.mxu0 0.0
    %2351 = vmatprep.subr.mxu0 0.0
    %2352 = vmatpush2.msra.mxu0 0.0
    %2353 = vmatprep.subr.mxu0 0.0
    %2354 = vmatpush2.msra.mxu0 0.0
    %2355 = vmatprep.subr.mxu0 0.0
    %2356 = vmatpush2.msra.mxu0 0.0
    %2357 = vmatprep.subr.mxu0 0.0
    %2358 = vmatpush2.msra.mxu0 0.0
    %2359 = vmatprep.subr.mxu0 0.0
    %2360 = vmatpush2.msra.mxu0 0.0
    %2361 = vmatprep.subr.mxu0 0.0
    %2362 = vmatpush2.msra.mxu0 0.0
    %2363 = vmatprep.subr.mxu0 0.0
    %2364 = vmatpush2.msra.mxu0 0.0
    %2365 = vmatprep.subr.mxu0 0.0
    %2366 = vmatpush2.msra.mxu0 0.0
    %2367 = vmatprep.subr.mxu0 0.0
    %2368 = vmatpush2.msra.mxu0 0.0
    %2369 = vmatprep.subr.mxu0 0.0
    %2370 = vmatpush2.msra.mxu0 0.0
    %2371 = vmatprep.subr.mxu0 0.0
    %2372 = vmatpush2.msra.mxu0 0.0
    %2373 = vmatprep.subr.mxu0 0.0
    %2374 = vmatpush2.msra.mxu0 0.0
    %2375 = vmatprep.subr.mxu0 0.0
    %2376 = vmatpush2.msra.mxu0 0.0
    %2377 = vmatprep.subr.mxu0 0.0
    %2378 = vmatpush2.msra.mxu0 0.0
    %2379 = vmatprep.mubr.f32.mxu0 0.0
    %2380 = vmatmul.mubr.f32.gmra.mxu0 %v2293
    %v2381 = vpop.f32.mrf.mxu0
    %v2382 = vadd.f32 0.0, %v2381
    %v2383 = vpop.f32.mrf.mxu0
    %2384 = vmatprep.mubr.f32.mxu0 0.0
    %2385 = vmatmul.mubr.f32.gmra.mxu0 %v2294
    %v2386 = vpop.f32.mrf.mxu0
    %v2387 = vadd.f32 0.0, %v2386
    %v2388 = vpop.f32.mrf.mxu0
    %2389 = vmatprep.mubr.f32.mxu0 0.0
    %2390 = vmatmul.mubr.f32.gmra.mxu0 %v2295
    %v2391 = vpop.f32.mrf.mxu0
    %v2392 = vadd.f32 0.0, %v2391
    %v2393 = vpop.f32.mrf.mxu0
    %2394 = vmatprep.mubr.f32.mxu0 0.0
    %2395 = vmatmul.mubr.f32.gmra.mxu0 %v2296
    %v2396 = vpop.f32.mrf.mxu0
    %v2397 = vadd.f32 0.0, %v2396
    %v2398 = vpop.f32.mrf.mxu0
    %2399 = vmatprep.mubr.f32.mxu0 0.0
    %2400 = vmatmul.mubr.f32.gmra.mxu0 %v2297
    %v2401 = vpop.f32.mrf.mxu0
    %v2402 = vadd.f32 0.0, %v2401
    %v2403 = vpop.f32.mrf.mxu0
    %2404 = vmatprep.mubr.f32.mxu0 0.0
    %2405 = vmatmul.mubr.f32.gmra.mxu0 %v2298
    %v2406 = vpop.f32.mrf.mxu0
    %v2407 = vadd.f32 0.0, %v2406
    %v2408 = vpop.f32.mrf.mxu0
    %2409 = vdwg.mxu0
    %v2410 = vadd.f32 %v2011, %v2382
    %v2411 = vadd.f32 %v2012, %v2387
    %v2412 = vadd.f32 %v2013, %v2392
    %v2413 = vadd.f32 %v2014, %v2397
    %v2414 = vadd.f32 %v2015, %v2402
    %v2415 = vadd.f32 %v2016, %v2407
    %v2416 = vld [vmem:[%s15] sm:$0x1]
    %v2418 = vlaneseq
    %v2419 = vshrl.u32 %v2418, 7
    %v2420 = vsub.s32 0, %v2419
    %v2421 = vrot.slane %v2416, %v2420
    %v2423 = vadd.f32 %v2410, %v2421
    %v2424 = vadd.f32 %v2411, %v2421
    %v2425 = vadd.f32 %v2412, %v2421
    %v2426 = vadd.f32 %v2413, %v2421
    %v2427 = vadd.f32 %v2414, %v2421
    %v2428 = vadd.f32 %v2415, %v2421
    %s2429 = scalar_lea.vmem %s4, 1
    %v2430 = vld [vmem:[%s2429] sm:$0x1]
    %s2431 = scalar_lea.vmem %s5, 1
    %v2432 = vld [vmem:[%s2431] sm:$0x1]
    %v2433 = vsel %vm206, %v2423, 0.0
    %2434 = vadd.xlane.f32.xlu0 %v2433
    %v2435 = vpop.xlane.xlu0 %2434
    %v2436 = vsel %vm206, %v2424, 0.0
    %2437 = vadd.xlane.f32.xlu0 %v2436
    %v2438 = vpop.xlane.xlu0 %2437
    %v2439 = vsel %vm206, %v2425, 0.0
    %2440 = vadd.xlane.f32.xlu0 %v2439
    %v2441 = vpop.xlane.xlu0 %2440
    %v2442 = vsel %vm206, %v2426, 0.0
    %2443 = vadd.xlane.f32.xlu0 %v2442
    %v2444 = vpop.xlane.xlu0 %2443
    %v2445 = vsel %vm206, %v2427, 0.0
    %2446 = vadd.xlane.f32.xlu0 %v2445
    %v2447 = vpop.xlane.xlu0 %2446
    %v2448 = vsel %vm206, %v2428, 0.0
    %2449 = vadd.xlane.f32.xlu0 %v2448
    %v2450 = vpop.xlane.xlu0 %2449
    %v2451 = vmul.f32 %v2435, %v225
    %v2452 = vmul.f32 %v2438, %v225
    %v2453 = vmul.f32 %v2441, %v225
    %v2454 = vmul.f32 %v2444, %v225
    %v2455 = vmul.f32 %v2447, %v225
    %v2456 = vmul.f32 %v2450, %v225
    %v2457 = vsub.f32 %v2423, %v2451
    %v2458 = vsub.f32 %v2424, %v2452
    %v2459 = vsub.f32 %v2425, %v2453
    %v2460 = vsub.f32 %v2426, %v2454
    %v2461 = vsub.f32 %v2427, %v2455
    %v2462 = vsub.f32 %v2428, %v2456
    %v2463 = vmul.f32 %v2457, %v2457
    %v2464 = vmul.f32 %v2458, %v2458
    %v2465 = vmul.f32 %v2459, %v2459
    %v2466 = vmul.f32 %v2460, %v2460
    %v2467 = vmul.f32 %v2461, %v2461
    %v2468 = vmul.f32 %v2462, %v2462
    %v2469 = vsel %vm206, %v2463, 0.0
    %2470 = vadd.xlane.f32.xlu0 %v2469
    %v2471 = vpop.xlane.xlu0 %2470
    %v2472 = vsel %vm206, %v2464, 0.0
    %2473 = vadd.xlane.f32.xlu0 %v2472
    %v2474 = vpop.xlane.xlu0 %2473
    %v2475 = vsel %vm206, %v2465, 0.0
    %2476 = vadd.xlane.f32.xlu0 %v2475
    %v2477 = vpop.xlane.xlu0 %2476
    %v2478 = vsel %vm206, %v2466, 0.0
    %2479 = vadd.xlane.f32.xlu0 %v2478
    %v2480 = vpop.xlane.xlu0 %2479
    %v2481 = vsel %vm206, %v2467, 0.0
    %2482 = vadd.xlane.f32.xlu0 %v2481
    %v2483 = vpop.xlane.xlu0 %2482
    %v2484 = vsel %vm206, %v2468, 0.0
    %2485 = vadd.xlane.f32.xlu0 %v2484
    %v2486 = vpop.xlane.xlu0 %2485
    %v2487 = vmul.f32 %v2471, %v225
    %v2488 = vmul.f32 %v2474, %v225
    %v2489 = vmul.f32 %v2477, %v225
    %v2490 = vmul.f32 %v2480, %v225
    %v2491 = vmul.f32 %v2483, %v225
    %v2492 = vmul.f32 %v2486, %v225
    %v2493 = vadd.f32 %v2487, 1e-06
    %v2494 = vadd.f32 %v2488, 1e-06
    %v2495 = vadd.f32 %v2489, 1e-06
    %v2496 = vadd.f32 %v2490, 1e-06
    %v2497 = vadd.f32 %v2491, 1e-06
    %v2498 = vadd.f32 %v2492, 1e-06
    %v2499 = vrsqrt.pop %v2493
    %v2500 = vrsqrt.pop %v2494
    %v2501 = vrsqrt.pop %v2495
    %v2502 = vrsqrt.pop %v2496
    %v2503 = vrsqrt.pop %v2497
    %v2504 = vrsqrt.pop %v2498
    %v2505 = vmul.f32 %v2457, %v2499
    %v2506 = vmul.f32 %v2458, %v2500
    %v2507 = vmul.f32 %v2459, %v2501
    %v2508 = vmul.f32 %v2460, %v2502
    %v2509 = vmul.f32 %v2461, %v2503
    %v2510 = vmul.f32 %v2462, %v2504
    %v2512 = vlaneseq
    %v2513 = vshrl.u32 %v2512, 7
    %v2514 = vsub.s32 0, %v2513
    %v2515 = vrot.slane %v2430, %v2514
    %v2517 = vmul.f32 %v2505, %v2515
    %v2518 = vmul.f32 %v2506, %v2515
    %v2519 = vmul.f32 %v2507, %v2515
    %v2520 = vmul.f32 %v2508, %v2515
    %v2521 = vmul.f32 %v2509, %v2515
    %v2522 = vmul.f32 %v2510, %v2515
    %v2524 = vlaneseq
    %v2525 = vshrl.u32 %v2524, 7
    %v2526 = vsub.s32 0, %v2525
    %v2527 = vrot.slane %v2432, %v2526
    %v2529 = vadd.f32 %v2517, %v2527
    %v2530 = vadd.f32 %v2518, %v2527
    %v2531 = vadd.f32 %v2519, %v2527
    %v2532 = vadd.f32 %v2520, %v2527
    %v2533 = vadd.f32 %v2521, %v2527
    %v2534 = vadd.f32 %v2522, %v2527
    %s2535 = scalar_lea.vmem %s6, 32
    %v2536 = vld [vmem:[%s2535] sm:$0xff]
    %v2537 = vld [vmem:[%s2535 + $0x8] sm:$0xff]
    %v2538 = vld [vmem:[%s2535 + $0x10] sm:$0xff]
    %v2539 = vld [vmem:[%s2535 + $0x18] sm:$0xff]
    %s2540 = scalar_lea.vmem %s7, 1
    %v2541 = vld [vmem:[%s2540] sm:$0x1]
    %v2543 = vlaneseq
    %v2544 = vshrl.u32 %v2543, 7
    %v2545 = vsub.s32 0, %v2544
    %v2546 = vrot.slane %v2541, %v2545
    %v2549 = vsel %vm206, %v2529, 0
    %v2552 = vsel %vm206, %v2530, 0
    %v2555 = vsel %vm206, %v2531, 0
    %v2558 = vsel %vm206, %v2532, 0
    %v2561 = vsel %vm206, %v2533, 0
    %v2564 = vsel %vm206, %v2534, 0
    %2566 = vmatprep.subr.mxu0 0.0
    %2567 = vmatpush1.msra.mxu0 0.0
    %2568 = vmatprep.subr.mxu0 0.0
    %2569 = vmatpush1.msra.mxu0 0.0
    %2570 = vmatprep.subr.mxu0 0.0
    %2571 = vmatpush1.msra.mxu0 0.0
    %2572 = vmatprep.subr.mxu0 0.0
    %2573 = vmatpush1.msra.mxu0 0.0
    %2574 = vmatprep.subr.mxu0 0.0
    %2575 = vmatpush1.msra.mxu0 0.0
    %2576 = vmatprep.subr.mxu0 0.0
    %2577 = vmatpush1.msra.mxu0 0.0
    %2578 = vmatprep.subr.mxu0 0.0
    %2579 = vmatpush1.msra.mxu0 0.0
    %2580 = vmatprep.subr.mxu0 0.0
    %2581 = vmatpush1.msra.mxu0 0.0
    %2582 = vmatprep.subr.mxu0 0.0
    %2583 = vmatpush1.msra.mxu0 0.0
    %2584 = vmatprep.subr.mxu0 0.0
    %2585 = vmatpush1.msra.mxu0 0.0
    %2586 = vmatprep.subr.mxu0 0.0
    %2587 = vmatpush1.msra.mxu0 0.0
    %2588 = vmatprep.subr.mxu0 0.0
    %2589 = vmatpush1.msra.mxu0 0.0
    %2590 = vmatprep.subr.mxu0 0.0
    %2591 = vmatpush1.msra.mxu0 %v2539
    %2592 = vmatprep.subr.mxu0 0.0
    %2593 = vmatpush1.msra.mxu0 %v2538
    %2594 = vmatprep.subr.mxu0 0.0
    %2595 = vmatpush1.msra.mxu0 %v2537
    %2596 = vmatprep.subr.mxu0 0.0
    %2597 = vmatpush1.msra.mxu0 %v2536
    %2598 = vmatprep.subr.mxu0 0.0
    %2599 = vmatpush2.msra.mxu0 0.0
    %2600 = vmatprep.subr.mxu0 0.0
    %2601 = vmatpush2.msra.mxu0 0.0
    %2602 = vmatprep.subr.mxu0 0.0
    %2603 = vmatpush2.msra.mxu0 0.0
    %2604 = vmatprep.subr.mxu0 0.0
    %2605 = vmatpush2.msra.mxu0 0.0
    %2606 = vmatprep.subr.mxu0 0.0
    %2607 = vmatpush2.msra.mxu0 0.0
    %2608 = vmatprep.subr.mxu0 0.0
    %2609 = vmatpush2.msra.mxu0 0.0
    %2610 = vmatprep.subr.mxu0 0.0
    %2611 = vmatpush2.msra.mxu0 0.0
    %2612 = vmatprep.subr.mxu0 0.0
    %2613 = vmatpush2.msra.mxu0 0.0
    %2614 = vmatprep.subr.mxu0 0.0
    %2615 = vmatpush2.msra.mxu0 0.0
    %2616 = vmatprep.subr.mxu0 0.0
    %2617 = vmatpush2.msra.mxu0 0.0
    %2618 = vmatprep.subr.mxu0 0.0
    %2619 = vmatpush2.msra.mxu0 0.0
    %2620 = vmatprep.subr.mxu0 0.0
    %2621 = vmatpush2.msra.mxu0 0.0
    %2622 = vmatprep.subr.mxu0 0.0
    %2623 = vmatpush2.msra.mxu0 0.0
    %2624 = vmatprep.subr.mxu0 0.0
    %2625 = vmatpush2.msra.mxu0 0.0
    %2626 = vmatprep.subr.mxu0 0.0
    %2627 = vmatpush2.msra.mxu0 0.0
    %2628 = vmatprep.subr.mxu0 0.0
    %2629 = vmatpush2.msra.mxu0 0.0
    %2630 = vmatprep.mubr.f32.mxu0 0.0
    %2631 = vmatmul.mubr.f32.gmra.mxu0 %v2549
    %v2632 = vpop.f32.mrf.mxu0
    %v2633 = vadd.f32 %v2546, %v2632
    %v2634 = vpop.f32.mrf.mxu0
    %2635 = vmatprep.mubr.f32.mxu0 0.0
    %2636 = vmatmul.mubr.f32.gmra.mxu0 %v2552
    %v2637 = vpop.f32.mrf.mxu0
    %v2638 = vadd.f32 %v2546, %v2637
    %v2639 = vpop.f32.mrf.mxu0
    %2640 = vmatprep.mubr.f32.mxu0 0.0
    %2641 = vmatmul.mubr.f32.gmra.mxu0 %v2555
    %v2642 = vpop.f32.mrf.mxu0
    %v2643 = vadd.f32 %v2546, %v2642
    %v2644 = vpop.f32.mrf.mxu0
    %2645 = vmatprep.mubr.f32.mxu0 0.0
    %2646 = vmatmul.mubr.f32.gmra.mxu0 %v2558
    %v2647 = vpop.f32.mrf.mxu0
    %v2648 = vadd.f32 %v2546, %v2647
    %v2649 = vpop.f32.mrf.mxu0
    %2650 = vmatprep.mubr.f32.mxu0 0.0
    %2651 = vmatmul.mubr.f32.gmra.mxu0 %v2561
    %v2652 = vpop.f32.mrf.mxu0
    %v2653 = vadd.f32 %v2546, %v2652
    %v2654 = vpop.f32.mrf.mxu0
    %2655 = vmatprep.mubr.f32.mxu0 0.0
    %2656 = vmatmul.mubr.f32.gmra.mxu0 %v2564
    %v2657 = vpop.f32.mrf.mxu0
    %v2658 = vadd.f32 %v2546, %v2657
    %v2659 = vpop.f32.mrf.mxu0
    %2660 = vdwg.mxu0
    %2667 = vrot.lane.b32.xlu0 %v2633, 96
    %v2668 = vpop.permute.xlu0 %2667
    %2669 = vrot.lane.b32.xlu0 %v2638, 96
    %v2670 = vpop.permute.xlu0 %2669
    %2671 = vrot.lane.b32.xlu0 %v2643, 96
    %v2672 = vpop.permute.xlu0 %2671
    %2673 = vrot.lane.b32.xlu0 %v2648, 96
    %v2674 = vpop.permute.xlu0 %2673
    %2675 = vrot.lane.b32.xlu0 %v2653, 96
    %v2676 = vpop.permute.xlu0 %2675
    %2677 = vrot.lane.b32.xlu0 %v2658, 96
    %v2678 = vpop.permute.xlu0 %2677
    %v2679 = vsel %vm452, %v2633, 0
    %v2681 = vsel %vm452, %v2638, 0
    %v2683 = vsel %vm452, %v2643, 0
    %v2685 = vsel %vm452, %v2648, 0
    %v2687 = vsel %vm452, %v2653, 0
    %v2689 = vsel %vm452, %v2658, 0
    %v2691 = vsel %vm452, %v2668, 0
    %v2693 = vsel %vm452, %v2670, 0
    %v2695 = vsel %vm452, %v2672, 0
    %v2697 = vsel %vm452, %v2674, 0
    %v2699 = vsel %vm452, %v2676, 0
    %v2701 = vsel %vm452, %v2678, 0
    %2703 = vmatprep.subr.mxu0 0.0
    %2704 = vmatpush1.xpose.msra.mxu0 0.0
    %2705 = vmatprep.subr.mxu0 0.0
    %2706 = vmatpush1.xpose.msra.mxu0 0.0
    %2707 = vmatprep.subr.mxu0 0.0
    %2708 = vmatpush1.xpose.msra.mxu0 0.0
    %2709 = vmatprep.subr.mxu0 0.0
    %2710 = vmatpush1.xpose.msra.mxu0 0.0
    %2711 = vmatprep.subr.mxu0 0.0
    %2712 = vmatpush1.xpose.msra.mxu0 0.0
    %2713 = vmatprep.subr.mxu0 0.0
    %2714 = vmatpush1.xpose.msra.mxu0 0.0
    %2715 = vmatprep.subr.mxu0 0.0
    %2716 = vmatpush1.xpose.msra.mxu0 0.0
    %2717 = vmatprep.subr.mxu0 0.0
    %2718 = vmatpush1.xpose.msra.mxu0 0.0
    %2719 = vmatprep.subr.mxu0 0.0
    %2720 = vmatpush1.xpose.msra.mxu0 0.0
    %2721 = vmatprep.subr.mxu0 0.0
    %2722 = vmatpush1.xpose.msra.mxu0 0.0
    %2723 = vmatprep.subr.mxu0 0.0
    %2724 = vmatpush1.xpose.msra.mxu0 %v2701
    %2725 = vmatprep.subr.mxu0 0.0
    %2726 = vmatpush1.xpose.msra.mxu0 %v2699
    %2727 = vmatprep.subr.mxu0 0.0
    %2728 = vmatpush1.xpose.msra.mxu0 %v2697
    %2729 = vmatprep.subr.mxu0 0.0
    %2730 = vmatpush1.xpose.msra.mxu0 %v2695
    %2731 = vmatprep.subr.mxu0 0.0
    %2732 = vmatpush1.xpose.msra.mxu0 %v2693
    %2733 = vmatprep.subr.mxu0 0.0
    %2734 = vmatpush1.xpose.msra.mxu0 %v2691
    %2735 = vmatprep.subr.mxu0 0.0
    %2736 = vmatpush2.xpose.msra.mxu0 0.0
    %2737 = vmatprep.subr.mxu0 0.0
    %2738 = vmatpush2.xpose.msra.mxu0 0.0
    %2739 = vmatprep.subr.mxu0 0.0
    %2740 = vmatpush2.xpose.msra.mxu0 0.0
    %2741 = vmatprep.subr.mxu0 0.0
    %2742 = vmatpush2.xpose.msra.mxu0 0.0
    %2743 = vmatprep.subr.mxu0 0.0
    %2744 = vmatpush2.xpose.msra.mxu0 0.0
    %2745 = vmatprep.subr.mxu0 0.0
    %2746 = vmatpush2.xpose.msra.mxu0 0.0
    %2747 = vmatprep.subr.mxu0 0.0
    %2748 = vmatpush2.xpose.msra.mxu0 0.0
    %2749 = vmatprep.subr.mxu0 0.0
    %2750 = vmatpush2.xpose.msra.mxu0 0.0
    %2751 = vmatprep.subr.mxu0 0.0
    %2752 = vmatpush2.xpose.msra.mxu0 0.0
    %2753 = vmatprep.subr.mxu0 0.0
    %2754 = vmatpush2.xpose.msra.mxu0 0.0
    %2755 = vmatprep.subr.mxu0 0.0
    %2756 = vmatpush2.xpose.msra.mxu0 0.0
    %2757 = vmatprep.subr.mxu0 0.0
    %2758 = vmatpush2.xpose.msra.mxu0 0.0
    %2759 = vmatprep.subr.mxu0 0.0
    %2760 = vmatpush2.xpose.msra.mxu0 0.0
    %2761 = vmatprep.subr.mxu0 0.0
    %2762 = vmatpush2.xpose.msra.mxu0 0.0
    %2763 = vmatprep.subr.mxu0 0.0
    %2764 = vmatpush2.xpose.msra.mxu0 0.0
    %2765 = vmatprep.subr.mxu0 0.0
    %2766 = vmatpush2.xpose.msra.mxu0 0.0
    %2767 = vmatprep.mubr.f32.mxu0 0.0
    %2768 = vmatmul.mubr.f32.gmra.mxu0 %v2679
    %v2769 = vpop.f32.mrf.mxu0
    %v2770 = vadd.f32 %v198, %v2769
    %v2771 = vpop.f32.mrf.mxu0
    %2772 = vmatprep.mubr.f32.mxu0 0.0
    %2773 = vmatmul.mubr.f32.gmra.mxu0 %v2681
    %v2774 = vpop.f32.mrf.mxu0
    %v2775 = vadd.f32 %v199, %v2774
    %v2776 = vpop.f32.mrf.mxu0
    %2777 = vmatprep.mubr.f32.mxu0 0.0
    %2778 = vmatmul.mubr.f32.gmra.mxu0 %v2683
    %v2779 = vpop.f32.mrf.mxu0
    %v2780 = vadd.f32 %v200, %v2779
    %v2781 = vpop.f32.mrf.mxu0
    %2782 = vmatprep.mubr.f32.mxu0 0.0
    %2783 = vmatmul.mubr.f32.gmra.mxu0 %v2685
    %v2784 = vpop.f32.mrf.mxu0
    %v2785 = vadd.f32 %v201, %v2784
    %v2786 = vpop.f32.mrf.mxu0
    %2787 = vmatprep.mubr.f32.mxu0 0.0
    %2788 = vmatmul.mubr.f32.gmra.mxu0 %v2687
    %v2789 = vpop.f32.mrf.mxu0
    %v2790 = vadd.f32 %v202, %v2789
    %v2791 = vpop.f32.mrf.mxu0
    %2792 = vmatprep.mubr.f32.mxu0 0.0
    %2793 = vmatmul.mubr.f32.gmra.mxu0 %v2689
    %v2794 = vpop.f32.mrf.mxu0
    %v2795 = vadd.f32 %v203, %v2794
    %v2796 = vpop.f32.mrf.mxu0
    %2797 = vdwg.mxu0
    %v2798 = vsel %vm84, %v2770, -inf
    %2799 = vmax.xlane.f32.xlu0 %v2798
    %v2800 = vpop.xlane.xlu0 %2799
    %v2801 = vsel %vm84, %v2775, -inf
    %2802 = vmax.xlane.f32.xlu0 %v2801
    %v2803 = vpop.xlane.xlu0 %2802
    %v2804 = vsel %vm84, %v2780, -inf
    %2805 = vmax.xlane.f32.xlu0 %v2804
    %v2806 = vpop.xlane.xlu0 %2805
    %v2807 = vsel %vm84, %v2785, -inf
    %2808 = vmax.xlane.f32.xlu0 %v2807
    %v2809 = vpop.xlane.xlu0 %2808
    %v2810 = vsel %vm84, %v2790, -inf
    %2811 = vmax.xlane.f32.xlu0 %v2810
    %v2812 = vpop.xlane.xlu0 %2811
    %v2813 = vsel %vm84, %v2795, -inf
    %2814 = vmax.xlane.f32.xlu0 %v2813
    %v2815 = vpop.xlane.xlu0 %2814
    %v2816 = vsub.f32 %v2770, %v2800
    %v2817 = vsub.f32 %v2775, %v2803
    %v2818 = vsub.f32 %v2780, %v2806
    %v2819 = vsub.f32 %v2785, %v2809
    %v2820 = vsub.f32 %v2790, %v2812
    %v2821 = vsub.f32 %v2795, %v2815
    %v2822 = vmul.f32 %v2816, 1.442695
    %v2823 = vpow.pop %v2822
    %v2824 = vmul.f32 %v2817, 1.442695
    %v2825 = vpow.pop %v2824
    %v2826 = vmul.f32 %v2818, 1.442695
    %v2827 = vpow.pop %v2826
    %v2828 = vmul.f32 %v2819, 1.442695
    %v2829 = vpow.pop %v2828
    %v2830 = vmul.f32 %v2820, 1.442695
    %v2831 = vpow.pop %v2830
    %v2832 = vmul.f32 %v2821, 1.442695
    %v2833 = vpow.pop %v2832
    %v2834 = vsel %vm84, %v2823, 0.0
    %2835 = vadd.xlane.f32.xlu0 %v2834
    %v2836 = vpop.xlane.xlu0 %2835
    %v2837 = vsel %vm84, %v2825, 0.0
    %2838 = vadd.xlane.f32.xlu0 %v2837
    %v2839 = vpop.xlane.xlu0 %2838
    %v2840 = vsel %vm84, %v2827, 0.0
    %2841 = vadd.xlane.f32.xlu0 %v2840
    %v2842 = vpop.xlane.xlu0 %2841
    %v2843 = vsel %vm84, %v2829, 0.0
    %2844 = vadd.xlane.f32.xlu0 %v2843
    %v2845 = vpop.xlane.xlu0 %2844
    %v2846 = vsel %vm84, %v2831, 0.0
    %2847 = vadd.xlane.f32.xlu0 %v2846
    %v2848 = vpop.xlane.xlu0 %2847
    %v2849 = vsel %vm84, %v2833, 0.0
    %2850 = vadd.xlane.f32.xlu0 %v2849
    %v2851 = vpop.xlane.xlu0 %2850
    %v2852 = vrcp.pop %v2836
    %v2853 = vrcp.pop %v2839
    %v2854 = vrcp.pop %v2842
    %v2855 = vrcp.pop %v2845
    %v2856 = vrcp.pop %v2848
    %v2857 = vrcp.pop %v2851
    %v2858 = vmul.f32 %v2823, %v2852
    %v2859 = vmul.f32 %v2825, %v2853
    %v2860 = vmul.f32 %v2827, %v2854
    %v2861 = vmul.f32 %v2829, %v2855
    %v2862 = vmul.f32 %v2831, %v2856
    %v2863 = vmul.f32 %v2833, %v2857
    %2864 = vrot.lane.b32.xlu0 %v2633, 64
    %v2865 = vpop.permute.xlu0 %2864
    %2866 = vrot.lane.b32.xlu0 %v2638, 64
    %v2867 = vpop.permute.xlu0 %2866
    %2868 = vrot.lane.b32.xlu0 %v2643, 64
    %v2869 = vpop.permute.xlu0 %2868
    %2870 = vrot.lane.b32.xlu0 %v2648, 64
    %v2871 = vpop.permute.xlu0 %2870
    %2872 = vrot.lane.b32.xlu0 %v2653, 64
    %v2873 = vpop.permute.xlu0 %2872
    %2874 = vrot.lane.b32.xlu0 %v2658, 64
    %v2875 = vpop.permute.xlu0 %2874
    %v2883 = vsel %vm84, %v2858, 0
    %v2886 = vsel %vm84, %v2859, 0
    %v2889 = vsel %vm84, %v2860, 0
    %v2892 = vsel %vm84, %v2861, 0
    %v2895 = vsel %vm84, %v2862, 0
    %v2898 = vsel %vm84, %v2863, 0
    %2900 = vmatprep.subr.mxu0 0.0
    %2901 = vmatpush1.msra.mxu0 0.0
    %2902 = vmatprep.subr.mxu0 0.0
    %2903 = vmatpush1.msra.mxu0 0.0
    %2904 = vmatprep.subr.mxu0 0.0
    %2905 = vmatpush1.msra.mxu0 0.0
    %2906 = vmatprep.subr.mxu0 0.0
    %2907 = vmatpush1.msra.mxu0 0.0
    %2908 = vmatprep.subr.mxu0 0.0
    %2909 = vmatpush1.msra.mxu0 0.0
    %2910 = vmatprep.subr.mxu0 0.0
    %2911 = vmatpush1.msra.mxu0 0.0
    %2912 = vmatprep.subr.mxu0 0.0
    %2913 = vmatpush1.msra.mxu0 0.0
    %2914 = vmatprep.subr.mxu0 0.0
    %2915 = vmatpush1.msra.mxu0 0.0
    %2916 = vmatprep.subr.mxu0 0.0
    %2917 = vmatpush1.msra.mxu0 0.0
    %2918 = vmatprep.subr.mxu0 0.0
    %2919 = vmatpush1.msra.mxu0 0.0
    %2920 = vmatprep.subr.mxu0 0.0
    %2921 = vmatpush1.msra.mxu0 %v2875
    %2922 = vmatprep.subr.mxu0 0.0
    %2923 = vmatpush1.msra.mxu0 %v2873
    %2924 = vmatprep.subr.mxu0 0.0
    %2925 = vmatpush1.msra.mxu0 %v2871
    %2926 = vmatprep.subr.mxu0 0.0
    %2927 = vmatpush1.msra.mxu0 %v2869
    %2928 = vmatprep.subr.mxu0 0.0
    %2929 = vmatpush1.msra.mxu0 %v2867
    %2930 = vmatprep.subr.mxu0 0.0
    %2931 = vmatpush1.msra.mxu0 %v2865
    %2932 = vmatprep.subr.mxu0 0.0
    %2933 = vmatpush2.msra.mxu0 0.0
    %2934 = vmatprep.subr.mxu0 0.0
    %2935 = vmatpush2.msra.mxu0 0.0
    %2936 = vmatprep.subr.mxu0 0.0
    %2937 = vmatpush2.msra.mxu0 0.0
    %2938 = vmatprep.subr.mxu0 0.0
    %2939 = vmatpush2.msra.mxu0 0.0
    %2940 = vmatprep.subr.mxu0 0.0
    %2941 = vmatpush2.msra.mxu0 0.0
    %2942 = vmatprep.subr.mxu0 0.0
    %2943 = vmatpush2.msra.mxu0 0.0
    %2944 = vmatprep.subr.mxu0 0.0
    %2945 = vmatpush2.msra.mxu0 0.0
    %2946 = vmatprep.subr.mxu0 0.0
    %2947 = vmatpush2.msra.mxu0 0.0
    %2948 = vmatprep.subr.mxu0 0.0
    %2949 = vmatpush2.msra.mxu0 0.0
    %2950 = vmatprep.subr.mxu0 0.0
    %2951 = vmatpush2.msra.mxu0 0.0
    %2952 = vmatprep.subr.mxu0 0.0
    %2953 = vmatpush2.msra.mxu0 0.0
    %2954 = vmatprep.subr.mxu0 0.0
    %2955 = vmatpush2.msra.mxu0 0.0
    %2956 = vmatprep.subr.mxu0 0.0
    %2957 = vmatpush2.msra.mxu0 0.0
    %2958 = vmatprep.subr.mxu0 0.0
    %2959 = vmatpush2.msra.mxu0 0.0
    %2960 = vmatprep.subr.mxu0 0.0
    %2961 = vmatpush2.msra.mxu0 0.0
    %2962 = vmatprep.subr.mxu0 0.0
    %2963 = vmatpush2.msra.mxu0 0.0
    %2964 = vmatprep.mubr.f32.mxu0 0.0
    %2965 = vmatmul.mubr.f32.gmra.mxu0 %v2883
    %v2966 = vpop.f32.mrf.mxu0
    %v2967 = vadd.f32 0.0, %v2966
    %v2968 = vpop.f32.mrf.mxu0
    %2969 = vmatprep.mubr.f32.mxu0 0.0
    %2970 = vmatmul.mubr.f32.gmra.mxu0 %v2886
    %v2971 = vpop.f32.mrf.mxu0
    %v2972 = vadd.f32 0.0, %v2971
    %v2973 = vpop.f32.mrf.mxu0
    %2974 = vmatprep.mubr.f32.mxu0 0.0
    %2975 = vmatmul.mubr.f32.gmra.mxu0 %v2889
    %v2976 = vpop.f32.mrf.mxu0
    %v2977 = vadd.f32 0.0, %v2976
    %v2978 = vpop.f32.mrf.mxu0
    %2979 = vmatprep.mubr.f32.mxu0 0.0
    %2980 = vmatmul.mubr.f32.gmra.mxu0 %v2892
    %v2981 = vpop.f32.mrf.mxu0
    %v2982 = vadd.f32 0.0, %v2981
    %v2983 = vpop.f32.mrf.mxu0
    %2984 = vmatprep.mubr.f32.mxu0 0.0
    %2985 = vmatmul.mubr.f32.gmra.mxu0 %v2895
    %v2986 = vpop.f32.mrf.mxu0
    %v2987 = vadd.f32 0.0, %v2986
    %v2988 = vpop.f32.mrf.mxu0
    %2989 = vmatprep.mubr.f32.mxu0 0.0
    %2990 = vmatmul.mubr.f32.gmra.mxu0 %v2898
    %v2991 = vpop.f32.mrf.mxu0
    %v2992 = vadd.f32 0.0, %v2991
    %v2993 = vpop.f32.mrf.mxu0
    %2994 = vdwg.mxu0
    %2995 = vrot.lane.b32.xlu0 %v2633, 120
    %v2996 = vpop.permute.xlu0 %2995
    %2997 = vrot.lane.b32.xlu0 %v2638, 120
    %v2998 = vpop.permute.xlu0 %2997
    %2999 = vrot.lane.b32.xlu0 %v2643, 120
    %v3000 = vpop.permute.xlu0 %2999
    %3001 = vrot.lane.b32.xlu0 %v2648, 120
    %v3002 = vpop.permute.xlu0 %3001
    %3003 = vrot.lane.b32.xlu0 %v2653, 120
    %v3004 = vpop.permute.xlu0 %3003
    %3005 = vrot.lane.b32.xlu0 %v2658, 120
    %v3006 = vpop.permute.xlu0 %3005
    %3007 = vrot.lane.b32.xlu0 %v2633, 88
    %v3008 = vpop.permute.xlu0 %3007
    %3009 = vrot.lane.b32.xlu0 %v2638, 88
    %v3010 = vpop.permute.xlu0 %3009
    %3011 = vrot.lane.b32.xlu0 %v2643, 88
    %v3012 = vpop.permute.xlu0 %3011
    %3013 = vrot.lane.b32.xlu0 %v2648, 88
    %v3014 = vpop.permute.xlu0 %3013
    %3015 = vrot.lane.b32.xlu0 %v2653, 88
    %v3016 = vpop.permute.xlu0 %3015
    %3017 = vrot.lane.b32.xlu0 %v2658, 88
    %v3018 = vpop.permute.xlu0 %3017
    %v3019 = vsel %vm452, %v2996, 0
    %v3021 = vsel %vm452, %v2998, 0
    %v3023 = vsel %vm452, %v3000, 0
    %v3025 = vsel %vm452, %v3002, 0
    %v3027 = vsel %vm452, %v3004, 0
    %v3029 = vsel %vm452, %v3006, 0
    %v3031 = vsel %vm452, %v3008, 0
    %v3033 = vsel %vm452, %v3010, 0
    %v3035 = vsel %vm452, %v3012, 0
    %v3037 = vsel %vm452, %v3014, 0
    %v3039 = vsel %vm452, %v3016, 0
    %v3041 = vsel %vm452, %v3018, 0
    %3043 = vmatprep.subr.mxu0 0.0
    %3044 = vmatpush1.xpose.msra.mxu0 0.0
    %3045 = vmatprep.subr.mxu0 0.0
    %3046 = vmatpush1.xpose.msra.mxu0 0.0
    %3047 = vmatprep.subr.mxu0 0.0
    %3048 = vmatpush1.xpose.msra.mxu0 0.0
    %3049 = vmatprep.subr.mxu0 0.0
    %3050 = vmatpush1.xpose.msra.mxu0 0.0
    %3051 = vmatprep.subr.mxu0 0.0
    %3052 = vmatpush1.xpose.msra.mxu0 0.0
    %3053 = vmatprep.subr.mxu0 0.0
    %3054 = vmatpush1.xpose.msra.mxu0 0.0
    %3055 = vmatprep.subr.mxu0 0.0
    %3056 = vmatpush1.xpose.msra.mxu0 0.0
    %3057 = vmatprep.subr.mxu0 0.0
    %3058 = vmatpush1.xpose.msra.mxu0 0.0
    %3059 = vmatprep.subr.mxu0 0.0
    %3060 = vmatpush1.xpose.msra.mxu0 0.0
    %3061 = vmatprep.subr.mxu0 0.0
    %3062 = vmatpush1.xpose.msra.mxu0 0.0
    %3063 = vmatprep.subr.mxu0 0.0
    %3064 = vmatpush1.xpose.msra.mxu0 %v3041
    %3065 = vmatprep.subr.mxu0 0.0
    %3066 = vmatpush1.xpose.msra.mxu0 %v3039
    %3067 = vmatprep.subr.mxu0 0.0
    %3068 = vmatpush1.xpose.msra.mxu0 %v3037
    %3069 = vmatprep.subr.mxu0 0.0
    %3070 = vmatpush1.xpose.msra.mxu0 %v3035
    %3071 = vmatprep.subr.mxu0 0.0
    %3072 = vmatpush1.xpose.msra.mxu0 %v3033
    %3073 = vmatprep.subr.mxu0 0.0
    %3074 = vmatpush1.xpose.msra.mxu0 %v3031
    %3075 = vmatprep.subr.mxu0 0.0
    %3076 = vmatpush2.xpose.msra.mxu0 0.0
    %3077 = vmatprep.subr.mxu0 0.0
    %3078 = vmatpush2.xpose.msra.mxu0 0.0
    %3079 = vmatprep.subr.mxu0 0.0
    %3080 = vmatpush2.xpose.msra.mxu0 0.0
    %3081 = vmatprep.subr.mxu0 0.0
    %3082 = vmatpush2.xpose.msra.mxu0 0.0
    %3083 = vmatprep.subr.mxu0 0.0
    %3084 = vmatpush2.xpose.msra.mxu0 0.0
    %3085 = vmatprep.subr.mxu0 0.0
    %3086 = vmatpush2.xpose.msra.mxu0 0.0
    %3087 = vmatprep.subr.mxu0 0.0
    %3088 = vmatpush2.xpose.msra.mxu0 0.0
    %3089 = vmatprep.subr.mxu0 0.0
    %3090 = vmatpush2.xpose.msra.mxu0 0.0
    %3091 = vmatprep.subr.mxu0 0.0
    %3092 = vmatpush2.xpose.msra.mxu0 0.0
    %3093 = vmatprep.subr.mxu0 0.0
    %3094 = vmatpush2.xpose.msra.mxu0 0.0
    %3095 = vmatprep.subr.mxu0 0.0
    %3096 = vmatpush2.xpose.msra.mxu0 0.0
    %3097 = vmatprep.subr.mxu0 0.0
    %3098 = vmatpush2.xpose.msra.mxu0 0.0
    %3099 = vmatprep.subr.mxu0 0.0
    %3100 = vmatpush2.xpose.msra.mxu0 0.0
    %3101 = vmatprep.subr.mxu0 0.0
    %3102 = vmatpush2.xpose.msra.mxu0 0.0
    %3103 = vmatprep.subr.mxu0 0.0
    %3104 = vmatpush2.xpose.msra.mxu0 0.0
    %3105 = vmatprep.subr.mxu0 0.0
    %3106 = vmatpush2.xpose.msra.mxu0 0.0
    %3107 = vmatprep.mubr.f32.mxu0 0.0
    %3108 = vmatmul.mubr.f32.gmra.mxu0 %v3019
    %v3109 = vpop.f32.mrf.mxu0
    %v3110 = vadd.f32 %v198, %v3109
    %v3111 = vpop.f32.mrf.mxu0
    %3112 = vmatprep.mubr.f32.mxu0 0.0
    %3113 = vmatmul.mubr.f32.gmra.mxu0 %v3021
    %v3114 = vpop.f32.mrf.mxu0
    %v3115 = vadd.f32 %v199, %v3114
    %v3116 = vpop.f32.mrf.mxu0
    %3117 = vmatprep.mubr.f32.mxu0 0.0
    %3118 = vmatmul.mubr.f32.gmra.mxu0 %v3023
    %v3119 = vpop.f32.mrf.mxu0
    %v3120 = vadd.f32 %v200, %v3119
    %v3121 = vpop.f32.mrf.mxu0
    %3122 = vmatprep.mubr.f32.mxu0 0.0
    %3123 = vmatmul.mubr.f32.gmra.mxu0 %v3025
    %v3124 = vpop.f32.mrf.mxu0
    %v3125 = vadd.f32 %v201, %v3124
    %v3126 = vpop.f32.mrf.mxu0
    %3127 = vmatprep.mubr.f32.mxu0 0.0
    %3128 = vmatmul.mubr.f32.gmra.mxu0 %v3027
    %v3129 = vpop.f32.mrf.mxu0
    %v3130 = vadd.f32 %v202, %v3129
    %v3131 = vpop.f32.mrf.mxu0
    %3132 = vmatprep.mubr.f32.mxu0 0.0
    %3133 = vmatmul.mubr.f32.gmra.mxu0 %v3029
    %v3134 = vpop.f32.mrf.mxu0
    %v3135 = vadd.f32 %v203, %v3134
    %v3136 = vpop.f32.mrf.mxu0
    %3137 = vdwg.mxu0
    %v3138 = vsel %vm84, %v3110, -inf
    %3139 = vmax.xlane.f32.xlu0 %v3138
    %v3140 = vpop.xlane.xlu0 %3139
    %v3141 = vsel %vm84, %v3115, -inf
    %3142 = vmax.xlane.f32.xlu0 %v3141
    %v3143 = vpop.xlane.xlu0 %3142
    %v3144 = vsel %vm84, %v3120, -inf
    %3145 = vmax.xlane.f32.xlu0 %v3144
    %v3146 = vpop.xlane.xlu0 %3145
    %v3147 = vsel %vm84, %v3125, -inf
    %3148 = vmax.xlane.f32.xlu0 %v3147
    %v3149 = vpop.xlane.xlu0 %3148
    %v3150 = vsel %vm84, %v3130, -inf
    %3151 = vmax.xlane.f32.xlu0 %v3150
    %v3152 = vpop.xlane.xlu0 %3151
    %v3153 = vsel %vm84, %v3135, -inf
    %3154 = vmax.xlane.f32.xlu0 %v3153
    %v3155 = vpop.xlane.xlu0 %3154
    %v3156 = vsub.f32 %v3110, %v3140
    %v3157 = vsub.f32 %v3115, %v3143
    %v3158 = vsub.f32 %v3120, %v3146
    %v3159 = vsub.f32 %v3125, %v3149
    %v3160 = vsub.f32 %v3130, %v3152
    %v3161 = vsub.f32 %v3135, %v3155
    %v3162 = vmul.f32 %v3156, 1.442695
    %v3163 = vpow.pop %v3162
    %v3164 = vmul.f32 %v3157, 1.442695
    %v3165 = vpow.pop %v3164
    %v3166 = vmul.f32 %v3158, 1.442695
    %v3167 = vpow.pop %v3166
    %v3168 = vmul.f32 %v3159, 1.442695
    %v3169 = vpow.pop %v3168
    %v3170 = vmul.f32 %v3160, 1.442695
    %v3171 = vpow.pop %v3170
    %v3172 = vmul.f32 %v3161, 1.442695
    %v3173 = vpow.pop %v3172
    %v3174 = vsel %vm84, %v3163, 0.0
    %3175 = vadd.xlane.f32.xlu0 %v3174
    %v3176 = vpop.xlane.xlu0 %3175
    %v3177 = vsel %vm84, %v3165, 0.0
    %3178 = vadd.xlane.f32.xlu0 %v3177
    %v3179 = vpop.xlane.xlu0 %3178
    %v3180 = vsel %vm84, %v3167, 0.0
    %3181 = vadd.xlane.f32.xlu0 %v3180
    %v3182 = vpop.xlane.xlu0 %3181
    %v3183 = vsel %vm84, %v3169, 0.0
    %3184 = vadd.xlane.f32.xlu0 %v3183
    %v3185 = vpop.xlane.xlu0 %3184
    %v3186 = vsel %vm84, %v3171, 0.0
    %3187 = vadd.xlane.f32.xlu0 %v3186
    %v3188 = vpop.xlane.xlu0 %3187
    %v3189 = vsel %vm84, %v3173, 0.0
    %3190 = vadd.xlane.f32.xlu0 %v3189
    %v3191 = vpop.xlane.xlu0 %3190
    %v3192 = vrcp.pop %v3176
    %v3193 = vrcp.pop %v3179
    %v3194 = vrcp.pop %v3182
    %v3195 = vrcp.pop %v3185
    %v3196 = vrcp.pop %v3188
    %v3197 = vrcp.pop %v3191
    %v3198 = vmul.f32 %v3163, %v3192
    %v3199 = vmul.f32 %v3165, %v3193
    %v3200 = vmul.f32 %v3167, %v3194
    %v3201 = vmul.f32 %v3169, %v3195
    %v3202 = vmul.f32 %v3171, %v3196
    %v3203 = vmul.f32 %v3173, %v3197
    %3204 = vrot.lane.b32.xlu0 %v2633, 56
    %v3205 = vpop.permute.xlu0 %3204
    %3206 = vrot.lane.b32.xlu0 %v2638, 56
    %v3207 = vpop.permute.xlu0 %3206
    %3208 = vrot.lane.b32.xlu0 %v2643, 56
    %v3209 = vpop.permute.xlu0 %3208
    %3210 = vrot.lane.b32.xlu0 %v2648, 56
    %v3211 = vpop.permute.xlu0 %3210
    %3212 = vrot.lane.b32.xlu0 %v2653, 56
    %v3213 = vpop.permute.xlu0 %3212
    %3214 = vrot.lane.b32.xlu0 %v2658, 56
    %v3215 = vpop.permute.xlu0 %3214
    %v3223 = vsel %vm84, %v3198, 0
    %v3226 = vsel %vm84, %v3199, 0
    %v3229 = vsel %vm84, %v3200, 0
    %v3232 = vsel %vm84, %v3201, 0
    %v3235 = vsel %vm84, %v3202, 0
    %v3238 = vsel %vm84, %v3203, 0
    %3240 = vmatprep.subr.mxu0 0.0
    %3241 = vmatpush1.msra.mxu0 0.0
    %3242 = vmatprep.subr.mxu0 0.0
    %3243 = vmatpush1.msra.mxu0 0.0
    %3244 = vmatprep.subr.mxu0 0.0
    %3245 = vmatpush1.msra.mxu0 0.0
    %3246 = vmatprep.subr.mxu0 0.0
    %3247 = vmatpush1.msra.mxu0 0.0
    %3248 = vmatprep.subr.mxu0 0.0
    %3249 = vmatpush1.msra.mxu0 0.0
    %3250 = vmatprep.subr.mxu0 0.0
    %3251 = vmatpush1.msra.mxu0 0.0
    %3252 = vmatprep.subr.mxu0 0.0
    %3253 = vmatpush1.msra.mxu0 0.0
    %3254 = vmatprep.subr.mxu0 0.0
    %3255 = vmatpush1.msra.mxu0 0.0
    %3256 = vmatprep.subr.mxu0 0.0
    %3257 = vmatpush1.msra.mxu0 0.0
    %3258 = vmatprep.subr.mxu0 0.0
    %3259 = vmatpush1.msra.mxu0 0.0
    %3260 = vmatprep.subr.mxu0 0.0
    %3261 = vmatpush1.msra.mxu0 %v3215
    %3262 = vmatprep.subr.mxu0 0.0
    %3263 = vmatpush1.msra.mxu0 %v3213
    %3264 = vmatprep.subr.mxu0 0.0
    %3265 = vmatpush1.msra.mxu0 %v3211
    %3266 = vmatprep.subr.mxu0 0.0
    %3267 = vmatpush1.msra.mxu0 %v3209
    %3268 = vmatprep.subr.mxu0 0.0
    %3269 = vmatpush1.msra.mxu0 %v3207
    %3270 = vmatprep.subr.mxu0 0.0
    %3271 = vmatpush1.msra.mxu0 %v3205
    %3272 = vmatprep.subr.mxu0 0.0
    %3273 = vmatpush2.msra.mxu0 0.0
    %3274 = vmatprep.subr.mxu0 0.0
    %3275 = vmatpush2.msra.mxu0 0.0
    %3276 = vmatprep.subr.mxu0 0.0
    %3277 = vmatpush2.msra.mxu0 0.0
    %3278 = vmatprep.subr.mxu0 0.0
    %3279 = vmatpush2.msra.mxu0 0.0
    %3280 = vmatprep.subr.mxu0 0.0
    %3281 = vmatpush2.msra.mxu0 0.0
    %3282 = vmatprep.subr.mxu0 0.0
    %3283 = vmatpush2.msra.mxu0 0.0
    %3284 = vmatprep.subr.mxu0 0.0
    %3285 = vmatpush2.msra.mxu0 0.0
    %3286 = vmatprep.subr.mxu0 0.0
    %3287 = vmatpush2.msra.mxu0 0.0
    %3288 = vmatprep.subr.mxu0 0.0
    %3289 = vmatpush2.msra.mxu0 0.0
    %3290 = vmatprep.subr.mxu0 0.0
    %3291 = vmatpush2.msra.mxu0 0.0
    %3292 = vmatprep.subr.mxu0 0.0
    %3293 = vmatpush2.msra.mxu0 0.0
    %3294 = vmatprep.subr.mxu0 0.0
    %3295 = vmatpush2.msra.mxu0 0.0
    %3296 = vmatprep.subr.mxu0 0.0
    %3297 = vmatpush2.msra.mxu0 0.0
    %3298 = vmatprep.subr.mxu0 0.0
    %3299 = vmatpush2.msra.mxu0 0.0
    %3300 = vmatprep.subr.mxu0 0.0
    %3301 = vmatpush2.msra.mxu0 0.0
    %3302 = vmatprep.subr.mxu0 0.0
    %3303 = vmatpush2.msra.mxu0 0.0
    %3304 = vmatprep.mubr.f32.mxu0 0.0
    %3305 = vmatmul.mubr.f32.gmra.mxu0 %v3223
    %v3306 = vpop.f32.mrf.mxu0
    %v3307 = vadd.f32 0.0, %v3306
    %v3308 = vpop.f32.mrf.mxu0
    %3309 = vmatprep.mubr.f32.mxu0 0.0
    %3310 = vmatmul.mubr.f32.gmra.mxu0 %v3226
    %v3311 = vpop.f32.mrf.mxu0
    %v3312 = vadd.f32 0.0, %v3311
    %v3313 = vpop.f32.mrf.mxu0
    %3314 = vmatprep.mubr.f32.mxu0 0.0
    %3315 = vmatmul.mubr.f32.gmra.mxu0 %v3229
    %v3316 = vpop.f32.mrf.mxu0
    %v3317 = vadd.f32 0.0, %v3316
    %v3318 = vpop.f32.mrf.mxu0
    %3319 = vmatprep.mubr.f32.mxu0 0.0
    %3320 = vmatmul.mubr.f32.gmra.mxu0 %v3232
    %v3321 = vpop.f32.mrf.mxu0
    %v3322 = vadd.f32 0.0, %v3321
    %v3323 = vpop.f32.mrf.mxu0
    %3324 = vmatprep.mubr.f32.mxu0 0.0
    %3325 = vmatmul.mubr.f32.gmra.mxu0 %v3235
    %v3326 = vpop.f32.mrf.mxu0
    %v3327 = vadd.f32 0.0, %v3326
    %v3328 = vpop.f32.mrf.mxu0
    %3329 = vmatprep.mubr.f32.mxu0 0.0
    %3330 = vmatmul.mubr.f32.gmra.mxu0 %v3238
    %v3331 = vpop.f32.mrf.mxu0
    %v3332 = vadd.f32 0.0, %v3331
    %v3333 = vpop.f32.mrf.mxu0
    %3334 = vdwg.mxu0
    %3335 = vrot.lane.b32.xlu0 %v2633, 112
    %v3336 = vpop.permute.xlu0 %3335
    %3337 = vrot.lane.b32.xlu0 %v2638, 112
    %v3338 = vpop.permute.xlu0 %3337
    %3339 = vrot.lane.b32.xlu0 %v2643, 112
    %v3340 = vpop.permute.xlu0 %3339
    %3341 = vrot.lane.b32.xlu0 %v2648, 112
    %v3342 = vpop.permute.xlu0 %3341
    %3343 = vrot.lane.b32.xlu0 %v2653, 112
    %v3344 = vpop.permute.xlu0 %3343
    %3345 = vrot.lane.b32.xlu0 %v2658, 112
    %v3346 = vpop.permute.xlu0 %3345
    %3347 = vrot.lane.b32.xlu0 %v2633, 80
    %v3348 = vpop.permute.xlu0 %3347
    %3349 = vrot.lane.b32.xlu0 %v2638, 80
    %v3350 = vpop.permute.xlu0 %3349
    %3351 = vrot.lane.b32.xlu0 %v2643, 80
    %v3352 = vpop.permute.xlu0 %3351
    %3353 = vrot.lane.b32.xlu0 %v2648, 80
    %v3354 = vpop.permute.xlu0 %3353
    %3355 = vrot.lane.b32.xlu0 %v2653, 80
    %v3356 = vpop.permute.xlu0 %3355
    %3357 = vrot.lane.b32.xlu0 %v2658, 80
    %v3358 = vpop.permute.xlu0 %3357
    %v3359 = vsel %vm452, %v3336, 0
    %v3361 = vsel %vm452, %v3338, 0
    %v3363 = vsel %vm452, %v3340, 0
    %v3365 = vsel %vm452, %v3342, 0
    %v3367 = vsel %vm452, %v3344, 0
    %v3369 = vsel %vm452, %v3346, 0
    %v3371 = vsel %vm452, %v3348, 0
    %v3373 = vsel %vm452, %v3350, 0
    %v3375 = vsel %vm452, %v3352, 0
    %v3377 = vsel %vm452, %v3354, 0
    %v3379 = vsel %vm452, %v3356, 0
    %v3381 = vsel %vm452, %v3358, 0
    %3383 = vmatprep.subr.mxu0 0.0
    %3384 = vmatpush1.xpose.msra.mxu0 0.0
    %3385 = vmatprep.subr.mxu0 0.0
    %3386 = vmatpush1.xpose.msra.mxu0 0.0
    %3387 = vmatprep.subr.mxu0 0.0
    %3388 = vmatpush1.xpose.msra.mxu0 0.0
    %3389 = vmatprep.subr.mxu0 0.0
    %3390 = vmatpush1.xpose.msra.mxu0 0.0
    %3391 = vmatprep.subr.mxu0 0.0
    %3392 = vmatpush1.xpose.msra.mxu0 0.0
    %3393 = vmatprep.subr.mxu0 0.0
    %3394 = vmatpush1.xpose.msra.mxu0 0.0
    %3395 = vmatprep.subr.mxu0 0.0
    %3396 = vmatpush1.xpose.msra.mxu0 0.0
    %3397 = vmatprep.subr.mxu0 0.0
    %3398 = vmatpush1.xpose.msra.mxu0 0.0
    %3399 = vmatprep.subr.mxu0 0.0
    %3400 = vmatpush1.xpose.msra.mxu0 0.0
    %3401 = vmatprep.subr.mxu0 0.0
    %3402 = vmatpush1.xpose.msra.mxu0 0.0
    %3403 = vmatprep.subr.mxu0 0.0
    %3404 = vmatpush1.xpose.msra.mxu0 %v3381
    %3405 = vmatprep.subr.mxu0 0.0
    %3406 = vmatpush1.xpose.msra.mxu0 %v3379
    %3407 = vmatprep.subr.mxu0 0.0
    %3408 = vmatpush1.xpose.msra.mxu0 %v3377
    %3409 = vmatprep.subr.mxu0 0.0
    %3410 = vmatpush1.xpose.msra.mxu0 %v3375
    %3411 = vmatprep.subr.mxu0 0.0
    %3412 = vmatpush1.xpose.msra.mxu0 %v3373
    %3413 = vmatprep.subr.mxu0 0.0
    %3414 = vmatpush1.xpose.msra.mxu0 %v3371
    %3415 = vmatprep.subr.mxu0 0.0
    %3416 = vmatpush2.xpose.msra.mxu0 0.0
    %3417 = vmatprep.subr.mxu0 0.0
    %3418 = vmatpush2.xpose.msra.mxu0 0.0
    %3419 = vmatprep.subr.mxu0 0.0
    %3420 = vmatpush2.xpose.msra.mxu0 0.0
    %3421 = vmatprep.subr.mxu0 0.0
    %3422 = vmatpush2.xpose.msra.mxu0 0.0
    %3423 = vmatprep.subr.mxu0 0.0
    %3424 = vmatpush2.xpose.msra.mxu0 0.0
    %3425 = vmatprep.subr.mxu0 0.0
    %3426 = vmatpush2.xpose.msra.mxu0 0.0
    %3427 = vmatprep.subr.mxu0 0.0
    %3428 = vmatpush2.xpose.msra.mxu0 0.0
    %3429 = vmatprep.subr.mxu0 0.0
    %3430 = vmatpush2.xpose.msra.mxu0 0.0
    %3431 = vmatprep.subr.mxu0 0.0
    %3432 = vmatpush2.xpose.msra.mxu0 0.0
    %3433 = vmatprep.subr.mxu0 0.0
    %3434 = vmatpush2.xpose.msra.mxu0 0.0
    %3435 = vmatprep.subr.mxu0 0.0
    %3436 = vmatpush2.xpose.msra.mxu0 0.0
    %3437 = vmatprep.subr.mxu0 0.0
    %3438 = vmatpush2.xpose.msra.mxu0 0.0
    %3439 = vmatprep.subr.mxu0 0.0
    %3440 = vmatpush2.xpose.msra.mxu0 0.0
    %3441 = vmatprep.subr.mxu0 0.0
    %3442 = vmatpush2.xpose.msra.mxu0 0.0
    %3443 = vmatprep.subr.mxu0 0.0
    %3444 = vmatpush2.xpose.msra.mxu0 0.0
    %3445 = vmatprep.subr.mxu0 0.0
    %3446 = vmatpush2.xpose.msra.mxu0 0.0
    %3447 = vmatprep.mubr.f32.mxu0 0.0
    %3448 = vmatmul.mubr.f32.gmra.mxu0 %v3359
    %v3449 = vpop.f32.mrf.mxu0
    %v3450 = vadd.f32 %v198, %v3449
    %v3451 = vpop.f32.mrf.mxu0
    %3452 = vmatprep.mubr.f32.mxu0 0.0
    %3453 = vmatmul.mubr.f32.gmra.mxu0 %v3361
    %v3454 = vpop.f32.mrf.mxu0
    %v3455 = vadd.f32 %v199, %v3454
    %v3456 = vpop.f32.mrf.mxu0
    %3457 = vmatprep.mubr.f32.mxu0 0.0
    %3458 = vmatmul.mubr.f32.gmra.mxu0 %v3363
    %v3459 = vpop.f32.mrf.mxu0
    %v3460 = vadd.f32 %v200, %v3459
    %v3461 = vpop.f32.mrf.mxu0
    %3462 = vmatprep.mubr.f32.mxu0 0.0
    %3463 = vmatmul.mubr.f32.gmra.mxu0 %v3365
    %v3464 = vpop.f32.mrf.mxu0
    %v3465 = vadd.f32 %v201, %v3464
    %v3466 = vpop.f32.mrf.mxu0
    %3467 = vmatprep.mubr.f32.mxu0 0.0
    %3468 = vmatmul.mubr.f32.gmra.mxu0 %v3367
    %v3469 = vpop.f32.mrf.mxu0
    %v3470 = vadd.f32 %v202, %v3469
    %v3471 = vpop.f32.mrf.mxu0
    %3472 = vmatprep.mubr.f32.mxu0 0.0
    %3473 = vmatmul.mubr.f32.gmra.mxu0 %v3369
    %v3474 = vpop.f32.mrf.mxu0
    %v3475 = vadd.f32 %v203, %v3474
    %v3476 = vpop.f32.mrf.mxu0
    %3477 = vdwg.mxu0
    %v3478 = vsel %vm84, %v3450, -inf
    %3479 = vmax.xlane.f32.xlu0 %v3478
    %v3480 = vpop.xlane.xlu0 %3479
    %v3481 = vsel %vm84, %v3455, -inf
    %3482 = vmax.xlane.f32.xlu0 %v3481
    %v3483 = vpop.xlane.xlu0 %3482
    %v3484 = vsel %vm84, %v3460, -inf
    %3485 = vmax.xlane.f32.xlu0 %v3484
    %v3486 = vpop.xlane.xlu0 %3485
    %v3487 = vsel %vm84, %v3465, -inf
    %3488 = vmax.xlane.f32.xlu0 %v3487
    %v3489 = vpop.xlane.xlu0 %3488
    %v3490 = vsel %vm84, %v3470, -inf
    %3491 = vmax.xlane.f32.xlu0 %v3490
    %v3492 = vpop.xlane.xlu0 %3491
    %v3493 = vsel %vm84, %v3475, -inf
    %3494 = vmax.xlane.f32.xlu0 %v3493
    %v3495 = vpop.xlane.xlu0 %3494
    %v3496 = vsub.f32 %v3450, %v3480
    %v3497 = vsub.f32 %v3455, %v3483
    %v3498 = vsub.f32 %v3460, %v3486
    %v3499 = vsub.f32 %v3465, %v3489
    %v3500 = vsub.f32 %v3470, %v3492
    %v3501 = vsub.f32 %v3475, %v3495
    %v3502 = vmul.f32 %v3496, 1.442695
    %v3503 = vpow.pop %v3502
    %v3504 = vmul.f32 %v3497, 1.442695
    %v3505 = vpow.pop %v3504
    %v3506 = vmul.f32 %v3498, 1.442695
    %v3507 = vpow.pop %v3506
    %v3508 = vmul.f32 %v3499, 1.442695
    %v3509 = vpow.pop %v3508
    %v3510 = vmul.f32 %v3500, 1.442695
    %v3511 = vpow.pop %v3510
    %v3512 = vmul.f32 %v3501, 1.442695
    %v3513 = vpow.pop %v3512
    %v3514 = vsel %vm84, %v3503, 0.0
    %3515 = vadd.xlane.f32.xlu0 %v3514
    %v3516 = vpop.xlane.xlu0 %3515
    %v3517 = vsel %vm84, %v3505, 0.0
    %3518 = vadd.xlane.f32.xlu0 %v3517
    %v3519 = vpop.xlane.xlu0 %3518
    %v3520 = vsel %vm84, %v3507, 0.0
    %3521 = vadd.xlane.f32.xlu0 %v3520
    %v3522 = vpop.xlane.xlu0 %3521
    %v3523 = vsel %vm84, %v3509, 0.0
    %3524 = vadd.xlane.f32.xlu0 %v3523
    %v3525 = vpop.xlane.xlu0 %3524
    %v3526 = vsel %vm84, %v3511, 0.0
    %3527 = vadd.xlane.f32.xlu0 %v3526
    %v3528 = vpop.xlane.xlu0 %3527
    %v3529 = vsel %vm84, %v3513, 0.0
    %3530 = vadd.xlane.f32.xlu0 %v3529
    %v3531 = vpop.xlane.xlu0 %3530
    %v3532 = vrcp.pop %v3516
    %v3533 = vrcp.pop %v3519
    %v3534 = vrcp.pop %v3522
    %v3535 = vrcp.pop %v3525
    %v3536 = vrcp.pop %v3528
    %v3537 = vrcp.pop %v3531
    %v3538 = vmul.f32 %v3503, %v3532
    %v3539 = vmul.f32 %v3505, %v3533
    %v3540 = vmul.f32 %v3507, %v3534
    %v3541 = vmul.f32 %v3509, %v3535
    %v3542 = vmul.f32 %v3511, %v3536
    %v3543 = vmul.f32 %v3513, %v3537
    %3544 = vrot.lane.b32.xlu0 %v2633, 48
    %v3545 = vpop.permute.xlu0 %3544
    %3546 = vrot.lane.b32.xlu0 %v2638, 48
    %v3547 = vpop.permute.xlu0 %3546
    %3548 = vrot.lane.b32.xlu0 %v2643, 48
    %v3549 = vpop.permute.xlu0 %3548
    %3550 = vrot.lane.b32.xlu0 %v2648, 48
    %v3551 = vpop.permute.xlu0 %3550
    %3552 = vrot.lane.b32.xlu0 %v2653, 48
    %v3553 = vpop.permute.xlu0 %3552
    %3554 = vrot.lane.b32.xlu0 %v2658, 48
    %v3555 = vpop.permute.xlu0 %3554
    %v3563 = vsel %vm84, %v3538, 0
    %v3566 = vsel %vm84, %v3539, 0
    %v3569 = vsel %vm84, %v3540, 0
    %v3572 = vsel %vm84, %v3541, 0
    %v3575 = vsel %vm84, %v3542, 0
    %v3578 = vsel %vm84, %v3543, 0
    %3580 = vmatprep.subr.mxu0 0.0
    %3581 = vmatpush1.msra.mxu0 0.0
    %3582 = vmatprep.subr.mxu0 0.0
    %3583 = vmatpush1.msra.mxu0 0.0
    %3584 = vmatprep.subr.mxu0 0.0
    %3585 = vmatpush1.msra.mxu0 0.0
    %3586 = vmatprep.subr.mxu0 0.0
    %3587 = vmatpush1.msra.mxu0 0.0
    %3588 = vmatprep.subr.mxu0 0.0
    %3589 = vmatpush1.msra.mxu0 0.0
    %3590 = vmatprep.subr.mxu0 0.0
    %3591 = vmatpush1.msra.mxu0 0.0
    %3592 = vmatprep.subr.mxu0 0.0
    %3593 = vmatpush1.msra.mxu0 0.0
    %3594 = vmatprep.subr.mxu0 0.0
    %3595 = vmatpush1.msra.mxu0 0.0
    %3596 = vmatprep.subr.mxu0 0.0
    %3597 = vmatpush1.msra.mxu0 0.0
    %3598 = vmatprep.subr.mxu0 0.0
    %3599 = vmatpush1.msra.mxu0 0.0
    %3600 = vmatprep.subr.mxu0 0.0
    %3601 = vmatpush1.msra.mxu0 %v3555
    %3602 = vmatprep.subr.mxu0 0.0
    %3603 = vmatpush1.msra.mxu0 %v3553
    %3604 = vmatprep.subr.mxu0 0.0
    %3605 = vmatpush1.msra.mxu0 %v3551
    %3606 = vmatprep.subr.mxu0 0.0
    %3607 = vmatpush1.msra.mxu0 %v3549
    %3608 = vmatprep.subr.mxu0 0.0
    %3609 = vmatpush1.msra.mxu0 %v3547
    %3610 = vmatprep.subr.mxu0 0.0
    %3611 = vmatpush1.msra.mxu0 %v3545
    %3612 = vmatprep.subr.mxu0 0.0
    %3613 = vmatpush2.msra.mxu0 0.0
    %3614 = vmatprep.subr.mxu0 0.0
    %3615 = vmatpush2.msra.mxu0 0.0
    %3616 = vmatprep.subr.mxu0 0.0
    %3617 = vmatpush2.msra.mxu0 0.0
    %3618 = vmatprep.subr.mxu0 0.0
    %3619 = vmatpush2.msra.mxu0 0.0
    %3620 = vmatprep.subr.mxu0 0.0
    %3621 = vmatpush2.msra.mxu0 0.0
    %3622 = vmatprep.subr.mxu0 0.0
    %3623 = vmatpush2.msra.mxu0 0.0
    %3624 = vmatprep.subr.mxu0 0.0
    %3625 = vmatpush2.msra.mxu0 0.0
    %3626 = vmatprep.subr.mxu0 0.0
    %3627 = vmatpush2.msra.mxu0 0.0
    %3628 = vmatprep.subr.mxu0 0.0
    %3629 = vmatpush2.msra.mxu0 0.0
    %3630 = vmatprep.subr.mxu0 0.0
    %3631 = vmatpush2.msra.mxu0 0.0
    %3632 = vmatprep.subr.mxu0 0.0
    %3633 = vmatpush2.msra.mxu0 0.0
    %3634 = vmatprep.subr.mxu0 0.0
    %3635 = vmatpush2.msra.mxu0 0.0
    %3636 = vmatprep.subr.mxu0 0.0
    %3637 = vmatpush2.msra.mxu0 0.0
    %3638 = vmatprep.subr.mxu0 0.0
    %3639 = vmatpush2.msra.mxu0 0.0
    %3640 = vmatprep.subr.mxu0 0.0
    %3641 = vmatpush2.msra.mxu0 0.0
    %3642 = vmatprep.subr.mxu0 0.0
    %3643 = vmatpush2.msra.mxu0 0.0
    %3644 = vmatprep.mubr.f32.mxu0 0.0
    %3645 = vmatmul.mubr.f32.gmra.mxu0 %v3563
    %v3646 = vpop.f32.mrf.mxu0
    %v3647 = vadd.f32 0.0, %v3646
    %v3648 = vpop.f32.mrf.mxu0
    %3649 = vmatprep.mubr.f32.mxu0 0.0
    %3650 = vmatmul.mubr.f32.gmra.mxu0 %v3566
    %v3651 = vpop.f32.mrf.mxu0
    %v3652 = vadd.f32 0.0, %v3651
    %v3653 = vpop.f32.mrf.mxu0
    %3654 = vmatprep.mubr.f32.mxu0 0.0
    %3655 = vmatmul.mubr.f32.gmra.mxu0 %v3569
    %v3656 = vpop.f32.mrf.mxu0
    %v3657 = vadd.f32 0.0, %v3656
    %v3658 = vpop.f32.mrf.mxu0
    %3659 = vmatprep.mubr.f32.mxu0 0.0
    %3660 = vmatmul.mubr.f32.gmra.mxu0 %v3572
    %v3661 = vpop.f32.mrf.mxu0
    %v3662 = vadd.f32 0.0, %v3661
    %v3663 = vpop.f32.mrf.mxu0
    %3664 = vmatprep.mubr.f32.mxu0 0.0
    %3665 = vmatmul.mubr.f32.gmra.mxu0 %v3575
    %v3666 = vpop.f32.mrf.mxu0
    %v3667 = vadd.f32 0.0, %v3666
    %v3668 = vpop.f32.mrf.mxu0
    %3669 = vmatprep.mubr.f32.mxu0 0.0
    %3670 = vmatmul.mubr.f32.gmra.mxu0 %v3578
    %v3671 = vpop.f32.mrf.mxu0
    %v3672 = vadd.f32 0.0, %v3671
    %v3673 = vpop.f32.mrf.mxu0
    %3674 = vdwg.mxu0
    %3675 = vrot.lane.b32.xlu0 %v2633, 104
    %v3676 = vpop.permute.xlu0 %3675
    %3677 = vrot.lane.b32.xlu0 %v2638, 104
    %v3678 = vpop.permute.xlu0 %3677
    %3679 = vrot.lane.b32.xlu0 %v2643, 104
    %v3680 = vpop.permute.xlu0 %3679
    %3681 = vrot.lane.b32.xlu0 %v2648, 104
    %v3682 = vpop.permute.xlu0 %3681
    %3683 = vrot.lane.b32.xlu0 %v2653, 104
    %v3684 = vpop.permute.xlu0 %3683
    %3685 = vrot.lane.b32.xlu0 %v2658, 104
    %v3686 = vpop.permute.xlu0 %3685
    %3687 = vrot.lane.b32.xlu0 %v2633, 72
    %v3688 = vpop.permute.xlu0 %3687
    %3689 = vrot.lane.b32.xlu0 %v2638, 72
    %v3690 = vpop.permute.xlu0 %3689
    %3691 = vrot.lane.b32.xlu0 %v2643, 72
    %v3692 = vpop.permute.xlu0 %3691
    %3693 = vrot.lane.b32.xlu0 %v2648, 72
    %v3694 = vpop.permute.xlu0 %3693
    %3695 = vrot.lane.b32.xlu0 %v2653, 72
    %v3696 = vpop.permute.xlu0 %3695
    %3697 = vrot.lane.b32.xlu0 %v2658, 72
    %v3698 = vpop.permute.xlu0 %3697
    %v3699 = vsel %vm452, %v3676, 0
    %v3701 = vsel %vm452, %v3678, 0
    %v3703 = vsel %vm452, %v3680, 0
    %v3705 = vsel %vm452, %v3682, 0
    %v3707 = vsel %vm452, %v3684, 0
    %v3709 = vsel %vm452, %v3686, 0
    %v3711 = vsel %vm452, %v3688, 0
    %v3713 = vsel %vm452, %v3690, 0
    %v3715 = vsel %vm452, %v3692, 0
    %v3717 = vsel %vm452, %v3694, 0
    %v3719 = vsel %vm452, %v3696, 0
    %v3721 = vsel %vm452, %v3698, 0
    %3723 = vmatprep.subr.mxu0 0.0
    %3724 = vmatpush1.xpose.msra.mxu0 0.0
    %3725 = vmatprep.subr.mxu0 0.0
    %3726 = vmatpush1.xpose.msra.mxu0 0.0
    %3727 = vmatprep.subr.mxu0 0.0
    %3728 = vmatpush1.xpose.msra.mxu0 0.0
    %3729 = vmatprep.subr.mxu0 0.0
    %3730 = vmatpush1.xpose.msra.mxu0 0.0
    %3731 = vmatprep.subr.mxu0 0.0
    %3732 = vmatpush1.xpose.msra.mxu0 0.0
    %3733 = vmatprep.subr.mxu0 0.0
    %3734 = vmatpush1.xpose.msra.mxu0 0.0
    %3735 = vmatprep.subr.mxu0 0.0
    %3736 = vmatpush1.xpose.msra.mxu0 0.0
    %3737 = vmatprep.subr.mxu0 0.0
    %3738 = vmatpush1.xpose.msra.mxu0 0.0
    %3739 = vmatprep.subr.mxu0 0.0
    %3740 = vmatpush1.xpose.msra.mxu0 0.0
    %3741 = vmatprep.subr.mxu0 0.0
    %3742 = vmatpush1.xpose.msra.mxu0 0.0
    %3743 = vmatprep.subr.mxu0 0.0
    %3744 = vmatpush1.xpose.msra.mxu0 %v3721
    %3745 = vmatprep.subr.mxu0 0.0
    %3746 = vmatpush1.xpose.msra.mxu0 %v3719
    %3747 = vmatprep.subr.mxu0 0.0
    %3748 = vmatpush1.xpose.msra.mxu0 %v3717
    %3749 = vmatprep.subr.mxu0 0.0
    %3750 = vmatpush1.xpose.msra.mxu0 %v3715
    %3751 = vmatprep.subr.mxu0 0.0
    %3752 = vmatpush1.xpose.msra.mxu0 %v3713
    %3753 = vmatprep.subr.mxu0 0.0
    %3754 = vmatpush1.xpose.msra.mxu0 %v3711
    %3755 = vmatprep.subr.mxu0 0.0
    %3756 = vmatpush2.xpose.msra.mxu0 0.0
    %3757 = vmatprep.subr.mxu0 0.0
    %3758 = vmatpush2.xpose.msra.mxu0 0.0
    %3759 = vmatprep.subr.mxu0 0.0
    %3760 = vmatpush2.xpose.msra.mxu0 0.0
    %3761 = vmatprep.subr.mxu0 0.0
    %3762 = vmatpush2.xpose.msra.mxu0 0.0
    %3763 = vmatprep.subr.mxu0 0.0
    %3764 = vmatpush2.xpose.msra.mxu0 0.0
    %3765 = vmatprep.subr.mxu0 0.0
    %3766 = vmatpush2.xpose.msra.mxu0 0.0
    %3767 = vmatprep.subr.mxu0 0.0
    %3768 = vmatpush2.xpose.msra.mxu0 0.0
    %3769 = vmatprep.subr.mxu0 0.0
    %3770 = vmatpush2.xpose.msra.mxu0 0.0
    %3771 = vmatprep.subr.mxu0 0.0
    %3772 = vmatpush2.xpose.msra.mxu0 0.0
    %3773 = vmatprep.subr.mxu0 0.0
    %3774 = vmatpush2.xpose.msra.mxu0 0.0
    %3775 = vmatprep.subr.mxu0 0.0
    %3776 = vmatpush2.xpose.msra.mxu0 0.0
    %3777 = vmatprep.subr.mxu0 0.0
    %3778 = vmatpush2.xpose.msra.mxu0 0.0
    %3779 = vmatprep.subr.mxu0 0.0
    %3780 = vmatpush2.xpose.msra.mxu0 0.0
    %3781 = vmatprep.subr.mxu0 0.0
    %3782 = vmatpush2.xpose.msra.mxu0 0.0
    %3783 = vmatprep.subr.mxu0 0.0
    %3784 = vmatpush2.xpose.msra.mxu0 0.0
    %3785 = vmatprep.subr.mxu0 0.0
    %3786 = vmatpush2.xpose.msra.mxu0 0.0
    %3787 = vmatprep.mubr.f32.mxu0 0.0
    %3788 = vmatmul.mubr.f32.gmra.mxu0 %v3699
    %v3789 = vpop.f32.mrf.mxu0
    %v3790 = vadd.f32 %v198, %v3789
    %v3791 = vpop.f32.mrf.mxu0
    %3792 = vmatprep.mubr.f32.mxu0 0.0
    %3793 = vmatmul.mubr.f32.gmra.mxu0 %v3701
    %v3794 = vpop.f32.mrf.mxu0
    %v3795 = vadd.f32 %v199, %v3794
    %v3796 = vpop.f32.mrf.mxu0
    %3797 = vmatprep.mubr.f32.mxu0 0.0
    %3798 = vmatmul.mubr.f32.gmra.mxu0 %v3703
    %v3799 = vpop.f32.mrf.mxu0
    %v3800 = vadd.f32 %v200, %v3799
    %v3801 = vpop.f32.mrf.mxu0
    %3802 = vmatprep.mubr.f32.mxu0 0.0
    %3803 = vmatmul.mubr.f32.gmra.mxu0 %v3705
    %v3804 = vpop.f32.mrf.mxu0
    %v3805 = vadd.f32 %v201, %v3804
    %v3806 = vpop.f32.mrf.mxu0
    %3807 = vmatprep.mubr.f32.mxu0 0.0
    %3808 = vmatmul.mubr.f32.gmra.mxu0 %v3707
    %v3809 = vpop.f32.mrf.mxu0
    %v3810 = vadd.f32 %v202, %v3809
    %v3811 = vpop.f32.mrf.mxu0
    %3812 = vmatprep.mubr.f32.mxu0 0.0
    %3813 = vmatmul.mubr.f32.gmra.mxu0 %v3709
    %v3814 = vpop.f32.mrf.mxu0
    %v3815 = vadd.f32 %v203, %v3814
    %v3816 = vpop.f32.mrf.mxu0
    %3817 = vdwg.mxu0
    %v3818 = vsel %vm84, %v3790, -inf
    %3819 = vmax.xlane.f32.xlu0 %v3818
    %v3820 = vpop.xlane.xlu0 %3819
    %v3821 = vsel %vm84, %v3795, -inf
    %3822 = vmax.xlane.f32.xlu0 %v3821
    %v3823 = vpop.xlane.xlu0 %3822
    %v3824 = vsel %vm84, %v3800, -inf
    %3825 = vmax.xlane.f32.xlu0 %v3824
    %v3826 = vpop.xlane.xlu0 %3825
    %v3827 = vsel %vm84, %v3805, -inf
    %3828 = vmax.xlane.f32.xlu0 %v3827
    %v3829 = vpop.xlane.xlu0 %3828
    %v3830 = vsel %vm84, %v3810, -inf
    %3831 = vmax.xlane.f32.xlu0 %v3830
    %v3832 = vpop.xlane.xlu0 %3831
    %v3833 = vsel %vm84, %v3815, -inf
    %3834 = vmax.xlane.f32.xlu0 %v3833
    %v3835 = vpop.xlane.xlu0 %3834
    %v3836 = vsub.f32 %v3790, %v3820
    %v3837 = vsub.f32 %v3795, %v3823
    %v3838 = vsub.f32 %v3800, %v3826
    %v3839 = vsub.f32 %v3805, %v3829
    %v3840 = vsub.f32 %v3810, %v3832
    %v3841 = vsub.f32 %v3815, %v3835
    %v3842 = vmul.f32 %v3836, 1.442695
    %v3843 = vpow.pop %v3842
    %v3844 = vmul.f32 %v3837, 1.442695
    %v3845 = vpow.pop %v3844
    %v3846 = vmul.f32 %v3838, 1.442695
    %v3847 = vpow.pop %v3846
    %v3848 = vmul.f32 %v3839, 1.442695
    %v3849 = vpow.pop %v3848
    %v3850 = vmul.f32 %v3840, 1.442695
    %v3851 = vpow.pop %v3850
    %v3852 = vmul.f32 %v3841, 1.442695
    %v3853 = vpow.pop %v3852
    %v3854 = vsel %vm84, %v3843, 0.0
    %3855 = vadd.xlane.f32.xlu0 %v3854
    %v3856 = vpop.xlane.xlu0 %3855
    %v3857 = vsel %vm84, %v3845, 0.0
    %3858 = vadd.xlane.f32.xlu0 %v3857
    %v3859 = vpop.xlane.xlu0 %3858
    %v3860 = vsel %vm84, %v3847, 0.0
    %3861 = vadd.xlane.f32.xlu0 %v3860
    %v3862 = vpop.xlane.xlu0 %3861
    %v3863 = vsel %vm84, %v3849, 0.0
    %3864 = vadd.xlane.f32.xlu0 %v3863
    %v3865 = vpop.xlane.xlu0 %3864
    %v3866 = vsel %vm84, %v3851, 0.0
    %3867 = vadd.xlane.f32.xlu0 %v3866
    %v3868 = vpop.xlane.xlu0 %3867
    %v3869 = vsel %vm84, %v3853, 0.0
    %3870 = vadd.xlane.f32.xlu0 %v3869
    %v3871 = vpop.xlane.xlu0 %3870
    %v3872 = vrcp.pop %v3856
    %v3873 = vrcp.pop %v3859
    %v3874 = vrcp.pop %v3862
    %v3875 = vrcp.pop %v3865
    %v3876 = vrcp.pop %v3868
    %v3877 = vrcp.pop %v3871
    %v3878 = vmul.f32 %v3843, %v3872
    %v3879 = vmul.f32 %v3845, %v3873
    %v3880 = vmul.f32 %v3847, %v3874
    %v3881 = vmul.f32 %v3849, %v3875
    %v3882 = vmul.f32 %v3851, %v3876
    %v3883 = vmul.f32 %v3853, %v3877
    %3884 = vrot.lane.b32.xlu0 %v2633, 40
    %v3885 = vpop.permute.xlu0 %3884
    %3886 = vrot.lane.b32.xlu0 %v2638, 40
    %v3887 = vpop.permute.xlu0 %3886
    %3888 = vrot.lane.b32.xlu0 %v2643, 40
    %v3889 = vpop.permute.xlu0 %3888
    %3890 = vrot.lane.b32.xlu0 %v2648, 40
    %v3891 = vpop.permute.xlu0 %3890
    %3892 = vrot.lane.b32.xlu0 %v2653, 40
    %v3893 = vpop.permute.xlu0 %3892
    %3894 = vrot.lane.b32.xlu0 %v2658, 40
    %v3895 = vpop.permute.xlu0 %3894
    %v3903 = vsel %vm84, %v3878, 0
    %v3906 = vsel %vm84, %v3879, 0
    %v3909 = vsel %vm84, %v3880, 0
    %v3912 = vsel %vm84, %v3881, 0
    %v3915 = vsel %vm84, %v3882, 0
    %v3918 = vsel %vm84, %v3883, 0
    %3920 = vmatprep.subr.mxu0 0.0
    %3921 = vmatpush1.msra.mxu0 0.0
    %3922 = vmatprep.subr.mxu0 0.0
    %3923 = vmatpush1.msra.mxu0 0.0
    %3924 = vmatprep.subr.mxu0 0.0
    %3925 = vmatpush1.msra.mxu0 0.0
    %3926 = vmatprep.subr.mxu0 0.0
    %3927 = vmatpush1.msra.mxu0 0.0
    %3928 = vmatprep.subr.mxu0 0.0
    %3929 = vmatpush1.msra.mxu0 0.0
    %3930 = vmatprep.subr.mxu0 0.0
    %3931 = vmatpush1.msra.mxu0 0.0
    %3932 = vmatprep.subr.mxu0 0.0
    %3933 = vmatpush1.msra.mxu0 0.0
    %3934 = vmatprep.subr.mxu0 0.0
    %3935 = vmatpush1.msra.mxu0 0.0
    %3936 = vmatprep.subr.mxu0 0.0
    %3937 = vmatpush1.msra.mxu0 0.0
    %3938 = vmatprep.subr.mxu0 0.0
    %3939 = vmatpush1.msra.mxu0 0.0
    %3940 = vmatprep.subr.mxu0 0.0
    %3941 = vmatpush1.msra.mxu0 %v3895
    %3942 = vmatprep.subr.mxu0 0.0
    %3943 = vmatpush1.msra.mxu0 %v3893
    %3944 = vmatprep.subr.mxu0 0.0
    %3945 = vmatpush1.msra.mxu0 %v3891
    %3946 = vmatprep.subr.mxu0 0.0
    %3947 = vmatpush1.msra.mxu0 %v3889
    %3948 = vmatprep.subr.mxu0 0.0
    %3949 = vmatpush1.msra.mxu0 %v3887
    %3950 = vmatprep.subr.mxu0 0.0
    %3951 = vmatpush1.msra.mxu0 %v3885
    %3952 = vmatprep.subr.mxu0 0.0
    %3953 = vmatpush2.msra.mxu0 0.0
    %3954 = vmatprep.subr.mxu0 0.0
    %3955 = vmatpush2.msra.mxu0 0.0
    %3956 = vmatprep.subr.mxu0 0.0
    %3957 = vmatpush2.msra.mxu0 0.0
    %3958 = vmatprep.subr.mxu0 0.0
    %3959 = vmatpush2.msra.mxu0 0.0
    %3960 = vmatprep.subr.mxu0 0.0
    %3961 = vmatpush2.msra.mxu0 0.0
    %3962 = vmatprep.subr.mxu0 0.0
    %3963 = vmatpush2.msra.mxu0 0.0
    %3964 = vmatprep.subr.mxu0 0.0
    %3965 = vmatpush2.msra.mxu0 0.0
    %3966 = vmatprep.subr.mxu0 0.0
    %3967 = vmatpush2.msra.mxu0 0.0
    %3968 = vmatprep.subr.mxu0 0.0
    %3969 = vmatpush2.msra.mxu0 0.0
    %3970 = vmatprep.subr.mxu0 0.0
    %3971 = vmatpush2.msra.mxu0 0.0
    %3972 = vmatprep.subr.mxu0 0.0
    %3973 = vmatpush2.msra.mxu0 0.0
    %3974 = vmatprep.subr.mxu0 0.0
    %3975 = vmatpush2.msra.mxu0 0.0
    %3976 = vmatprep.subr.mxu0 0.0
    %3977 = vmatpush2.msra.mxu0 0.0
    %3978 = vmatprep.subr.mxu0 0.0
    %3979 = vmatpush2.msra.mxu0 0.0
    %3980 = vmatprep.subr.mxu0 0.0
    %3981 = vmatpush2.msra.mxu0 0.0
    %3982 = vmatprep.subr.mxu0 0.0
    %3983 = vmatpush2.msra.mxu0 0.0
    %3984 = vmatprep.mubr.f32.mxu0 0.0
    %3985 = vmatmul.mubr.f32.gmra.mxu0 %v3903
    %v3986 = vpop.f32.mrf.mxu0
    %v3987 = vadd.f32 0.0, %v3986
    %v3988 = vpop.f32.mrf.mxu0
    %3989 = vmatprep.mubr.f32.mxu0 0.0
    %3990 = vmatmul.mubr.f32.gmra.mxu0 %v3906
    %v3991 = vpop.f32.mrf.mxu0
    %v3992 = vadd.f32 0.0, %v3991
    %v3993 = vpop.f32.mrf.mxu0
    %3994 = vmatprep.mubr.f32.mxu0 0.0
    %3995 = vmatmul.mubr.f32.gmra.mxu0 %v3909
    %v3996 = vpop.f32.mrf.mxu0
    %v3997 = vadd.f32 0.0, %v3996
    %v3998 = vpop.f32.mrf.mxu0
    %3999 = vmatprep.mubr.f32.mxu0 0.0
    %4000 = vmatmul.mubr.f32.gmra.mxu0 %v3912
    %v4001 = vpop.f32.mrf.mxu0
    %v4002 = vadd.f32 0.0, %v4001
    %v4003 = vpop.f32.mrf.mxu0
    %4004 = vmatprep.mubr.f32.mxu0 0.0
    %4005 = vmatmul.mubr.f32.gmra.mxu0 %v3915
    %v4006 = vpop.f32.mrf.mxu0
    %v4007 = vadd.f32 0.0, %v4006
    %v4008 = vpop.f32.mrf.mxu0
    %4009 = vmatprep.mubr.f32.mxu0 0.0
    %4010 = vmatmul.mubr.f32.gmra.mxu0 %v3918
    %v4011 = vpop.f32.mrf.mxu0
    %v4012 = vadd.f32 0.0, %v4011
    %v4013 = vpop.f32.mrf.mxu0
    %4014 = vdwg.mxu0
    %4021 = vrot.lane.b32.xlu0 %v3307, 8
    %v4022 = vpop.permute.xlu0 %4021
    %4023 = vrot.lane.b32.xlu0 %v3312, 8
    %v4024 = vpop.permute.xlu0 %4023
    %4025 = vrot.lane.b32.xlu0 %v3317, 8
    %v4026 = vpop.permute.xlu0 %4025
    %4027 = vrot.lane.b32.xlu0 %v3322, 8
    %v4028 = vpop.permute.xlu0 %4027
    %4029 = vrot.lane.b32.xlu0 %v3327, 8
    %v4030 = vpop.permute.xlu0 %4029
    %4031 = vrot.lane.b32.xlu0 %v3332, 8
    %v4032 = vpop.permute.xlu0 %4031
    %4045 = vrot.lane.b32.xlu0 %v3647, 16
    %v4046 = vpop.permute.xlu0 %4045
    %4047 = vrot.lane.b32.xlu0 %v3652, 16
    %v4048 = vpop.permute.xlu0 %4047
    %4049 = vrot.lane.b32.xlu0 %v3657, 16
    %v4050 = vpop.permute.xlu0 %4049
    %4051 = vrot.lane.b32.xlu0 %v3662, 16
    %v4052 = vpop.permute.xlu0 %4051
    %4053 = vrot.lane.b32.xlu0 %v3667, 16
    %v4054 = vpop.permute.xlu0 %4053
    %4055 = vrot.lane.b32.xlu0 %v3672, 16
    %v4056 = vpop.permute.xlu0 %4055
    %4069 = vrot.lane.b32.xlu0 %v3987, 24
    %v4070 = vpop.permute.xlu0 %4069
    %4071 = vrot.lane.b32.xlu0 %v3992, 24
    %v4072 = vpop.permute.xlu0 %4071
    %4073 = vrot.lane.b32.xlu0 %v3997, 24
    %v4074 = vpop.permute.xlu0 %4073
    %4075 = vrot.lane.b32.xlu0 %v4002, 24
    %v4076 = vpop.permute.xlu0 %4075
    %4077 = vrot.lane.b32.xlu0 %v4007, 24
    %v4078 = vpop.permute.xlu0 %4077
    %4079 = vrot.lane.b32.xlu0 %v4012, 24
    %v4080 = vpop.permute.xlu0 %4079
    %v4087 = vsel %vm452, %v2967, %v4022
    %v4088 = vsel %vm452, %v2972, %v4024
    %v4089 = vsel %vm452, %v2977, %v4026
    %v4090 = vsel %vm452, %v2982, %v4028
    %v4091 = vsel %vm452, %v2987, %v4030
    %v4092 = vsel %vm452, %v2992, %v4032
    %v4093 = vsel %vm1867, %v4087, %v4046
    %v4094 = vsel %vm1867, %v4088, %v4048
    %v4095 = vsel %vm1867, %v4089, %v4050
    %v4096 = vsel %vm1867, %v4090, %v4052
    %v4097 = vsel %vm1867, %v4091, %v4054
    %v4098 = vsel %vm1867, %v4092, %v4056
    %v4099 = vsel %vm1874, %v4093, %v4070
    %v4100 = vsel %vm1874, %v4094, %v4072
    %v4101 = vsel %vm1874, %v4095, %v4074
    %v4102 = vsel %vm1874, %v4096, %v4076
    %v4103 = vsel %vm1874, %v4097, %v4078
    %v4104 = vsel %vm1874, %v4098, %v4080
    %s4105 = scalar_lea.vmem %s8, 32
    %v4106 = vld [vmem:[%s4105] sm:$0xff]
    %v4107 = vld [vmem:[%s4105 + $0x8] sm:$0xff]
    %v4108 = vld [vmem:[%s4105 + $0x10] sm:$0xff]
    %v4109 = vld [vmem:[%s4105 + $0x18] sm:$0xff]
    %v4111 = vsel %vm206, %v4099, 0
    %v4114 = vsel %vm206, %v4100, 0
    %v4117 = vsel %vm206, %v4101, 0
    %v4120 = vsel %vm206, %v4102, 0
    %v4123 = vsel %vm206, %v4103, 0
    %v4126 = vsel %vm206, %v4104, 0
    %4128 = vmatprep.subr.mxu0 0.0
    %4129 = vmatpush1.msra.mxu0 0.0
    %4130 = vmatprep.subr.mxu0 0.0
    %4131 = vmatpush1.msra.mxu0 0.0
    %4132 = vmatprep.subr.mxu0 0.0
    %4133 = vmatpush1.msra.mxu0 0.0
    %4134 = vmatprep.subr.mxu0 0.0
    %4135 = vmatpush1.msra.mxu0 0.0
    %4136 = vmatprep.subr.mxu0 0.0
    %4137 = vmatpush1.msra.mxu0 0.0
    %4138 = vmatprep.subr.mxu0 0.0
    %4139 = vmatpush1.msra.mxu0 0.0
    %4140 = vmatprep.subr.mxu0 0.0
    %4141 = vmatpush1.msra.mxu0 0.0
    %4142 = vmatprep.subr.mxu0 0.0
    %4143 = vmatpush1.msra.mxu0 0.0
    %4144 = vmatprep.subr.mxu0 0.0
    %4145 = vmatpush1.msra.mxu0 0.0
    %4146 = vmatprep.subr.mxu0 0.0
    %4147 = vmatpush1.msra.mxu0 0.0
    %4148 = vmatprep.subr.mxu0 0.0
    %4149 = vmatpush1.msra.mxu0 0.0
    %4150 = vmatprep.subr.mxu0 0.0
    %4151 = vmatpush1.msra.mxu0 0.0
    %4152 = vmatprep.subr.mxu0 0.0
    %4153 = vmatpush1.msra.mxu0 %v4109
    %4154 = vmatprep.subr.mxu0 0.0
    %4155 = vmatpush1.msra.mxu0 %v4108
    %4156 = vmatprep.subr.mxu0 0.0
    %4157 = vmatpush1.msra.mxu0 %v4107
    %4158 = vmatprep.subr.mxu0 0.0
    %4159 = vmatpush1.msra.mxu0 %v4106
    %4160 = vmatprep.subr.mxu0 0.0
    %4161 = vmatpush2.msra.mxu0 0.0
    %4162 = vmatprep.subr.mxu0 0.0
    %4163 = vmatpush2.msra.mxu0 0.0
    %4164 = vmatprep.subr.mxu0 0.0
    %4165 = vmatpush2.msra.mxu0 0.0
    %4166 = vmatprep.subr.mxu0 0.0
    %4167 = vmatpush2.msra.mxu0 0.0
    %4168 = vmatprep.subr.mxu0 0.0
    %4169 = vmatpush2.msra.mxu0 0.0
    %4170 = vmatprep.subr.mxu0 0.0
    %4171 = vmatpush2.msra.mxu0 0.0
    %4172 = vmatprep.subr.mxu0 0.0
    %4173 = vmatpush2.msra.mxu0 0.0
    %4174 = vmatprep.subr.mxu0 0.0
    %4175 = vmatpush2.msra.mxu0 0.0
    %4176 = vmatprep.subr.mxu0 0.0
    %4177 = vmatpush2.msra.mxu0 0.0
    %4178 = vmatprep.subr.mxu0 0.0
    %4179 = vmatpush2.msra.mxu0 0.0
    %4180 = vmatprep.subr.mxu0 0.0
    %4181 = vmatpush2.msra.mxu0 0.0
    %4182 = vmatprep.subr.mxu0 0.0
    %4183 = vmatpush2.msra.mxu0 0.0
    %4184 = vmatprep.subr.mxu0 0.0
    %4185 = vmatpush2.msra.mxu0 0.0
    %4186 = vmatprep.subr.mxu0 0.0
    %4187 = vmatpush2.msra.mxu0 0.0
    %4188 = vmatprep.subr.mxu0 0.0
    %4189 = vmatpush2.msra.mxu0 0.0
    %4190 = vmatprep.subr.mxu0 0.0
    %4191 = vmatpush2.msra.mxu0 0.0
    %4192 = vmatprep.mubr.f32.mxu0 0.0
    %4193 = vmatmul.mubr.f32.gmra.mxu0 %v4111
    %v4194 = vpop.f32.mrf.mxu0
    %v4195 = vadd.f32 0.0, %v4194
    %v4196 = vpop.f32.mrf.mxu0
    %4197 = vmatprep.mubr.f32.mxu0 0.0
    %4198 = vmatmul.mubr.f32.gmra.mxu0 %v4114
    %v4199 = vpop.f32.mrf.mxu0
    %v4200 = vadd.f32 0.0, %v4199
    %v4201 = vpop.f32.mrf.mxu0
    %4202 = vmatprep.mubr.f32.mxu0 0.0
    %4203 = vmatmul.mubr.f32.gmra.mxu0 %v4117
    %v4204 = vpop.f32.mrf.mxu0
    %v4205 = vadd.f32 0.0, %v4204
    %v4206 = vpop.f32.mrf.mxu0
    %4207 = vmatprep.mubr.f32.mxu0 0.0
    %4208 = vmatmul.mubr.f32.gmra.mxu0 %v4120
    %v4209 = vpop.f32.mrf.mxu0
    %v4210 = vadd.f32 0.0, %v4209
    %v4211 = vpop.f32.mrf.mxu0
    %4212 = vmatprep.mubr.f32.mxu0 0.0
    %4213 = vmatmul.mubr.f32.gmra.mxu0 %v4123
    %v4214 = vpop.f32.mrf.mxu0
    %v4215 = vadd.f32 0.0, %v4214
    %v4216 = vpop.f32.mrf.mxu0
    %4217 = vmatprep.mubr.f32.mxu0 0.0
    %4218 = vmatmul.mubr.f32.gmra.mxu0 %v4126
    %v4219 = vpop.f32.mrf.mxu0
    %v4220 = vadd.f32 0.0, %v4219
    %v4221 = vpop.f32.mrf.mxu0
    %4222 = vdwg.mxu0
    %v4223 = vadd.f32 %v2423, %v4195
    %v4224 = vadd.f32 %v2424, %v4200
    %v4225 = vadd.f32 %v2425, %v4205
    %v4226 = vadd.f32 %v2426, %v4210
    %v4227 = vadd.f32 %v2427, %v4215
    %v4228 = vadd.f32 %v2428, %v4220
    %s4229 = scalar_lea.vmem %s9, 1
    %v4230 = vld [vmem:[%s4229] sm:$0x1]
    %v4232 = vlaneseq
    %v4233 = vshrl.u32 %v4232, 7
    %v4234 = vsub.s32 0, %v4233
    %v4235 = vrot.slane %v4230, %v4234
    %v4237 = vadd.f32 %v4223, %v4235
    %v4238 = vadd.f32 %v4224, %v4235
    %v4239 = vadd.f32 %v4225, %v4235
    %v4240 = vadd.f32 %v4226, %v4235
    %v4241 = vadd.f32 %v4227, %v4235
    %v4242 = vadd.f32 %v4228, %v4235
    %s4243 = scalar_lea.vmem %s10, 1
    %v4244 = vld [vmem:[%s4243] sm:$0x1]
    %s4245 = scalar_lea.vmem %s11, 1
    %v4246 = vld [vmem:[%s4245] sm:$0x1]
    %v4247 = vsel %vm206, %v4237, 0.0
    %4248 = vadd.xlane.f32.xlu0 %v4247
    %v4249 = vpop.xlane.xlu0 %4248
    %v4250 = vsel %vm206, %v4238, 0.0
    %4251 = vadd.xlane.f32.xlu0 %v4250
    %v4252 = vpop.xlane.xlu0 %4251
    %v4253 = vsel %vm206, %v4239, 0.0
    %4254 = vadd.xlane.f32.xlu0 %v4253
    %v4255 = vpop.xlane.xlu0 %4254
    %v4256 = vsel %vm206, %v4240, 0.0
    %4257 = vadd.xlane.f32.xlu0 %v4256
    %v4258 = vpop.xlane.xlu0 %4257
    %v4259 = vsel %vm206, %v4241, 0.0
    %4260 = vadd.xlane.f32.xlu0 %v4259
    %v4261 = vpop.xlane.xlu0 %4260
    %v4262 = vsel %vm206, %v4242, 0.0
    %4263 = vadd.xlane.f32.xlu0 %v4262
    %v4264 = vpop.xlane.xlu0 %4263
    %v4265 = vmul.f32 %v4249, %v225
    %v4266 = vmul.f32 %v4252, %v225
    %v4267 = vmul.f32 %v4255, %v225
    %v4268 = vmul.f32 %v4258, %v225
    %v4269 = vmul.f32 %v4261, %v225
    %v4270 = vmul.f32 %v4264, %v225
    %v4271 = vsub.f32 %v4237, %v4265
    %v4272 = vsub.f32 %v4238, %v4266
    %v4273 = vsub.f32 %v4239, %v4267
    %v4274 = vsub.f32 %v4240, %v4268
    %v4275 = vsub.f32 %v4241, %v4269
    %v4276 = vsub.f32 %v4242, %v4270
    %v4277 = vmul.f32 %v4271, %v4271
    %v4278 = vmul.f32 %v4272, %v4272
    %v4279 = vmul.f32 %v4273, %v4273
    %v4280 = vmul.f32 %v4274, %v4274
    %v4281 = vmul.f32 %v4275, %v4275
    %v4282 = vmul.f32 %v4276, %v4276
    %v4283 = vsel %vm206, %v4277, 0.0
    %4284 = vadd.xlane.f32.xlu0 %v4283
    %v4285 = vpop.xlane.xlu0 %4284
    %v4286 = vsel %vm206, %v4278, 0.0
    %4287 = vadd.xlane.f32.xlu0 %v4286
    %v4288 = vpop.xlane.xlu0 %4287
    %v4289 = vsel %vm206, %v4279, 0.0
    %4290 = vadd.xlane.f32.xlu0 %v4289
    %v4291 = vpop.xlane.xlu0 %4290
    %v4292 = vsel %vm206, %v4280, 0.0
    %4293 = vadd.xlane.f32.xlu0 %v4292
    %v4294 = vpop.xlane.xlu0 %4293
    %v4295 = vsel %vm206, %v4281, 0.0
    %4296 = vadd.xlane.f32.xlu0 %v4295
    %v4297 = vpop.xlane.xlu0 %4296
    %v4298 = vsel %vm206, %v4282, 0.0
    %4299 = vadd.xlane.f32.xlu0 %v4298
    %v4300 = vpop.xlane.xlu0 %4299
    %v4301 = vmul.f32 %v4285, %v225
    %v4302 = vmul.f32 %v4288, %v225
    %v4303 = vmul.f32 %v4291, %v225
    %v4304 = vmul.f32 %v4294, %v225
    %v4305 = vmul.f32 %v4297, %v225
    %v4306 = vmul.f32 %v4300, %v225
    %v4307 = vadd.f32 %v4301, 1e-06
    %v4308 = vadd.f32 %v4302, 1e-06
    %v4309 = vadd.f32 %v4303, 1e-06
    %v4310 = vadd.f32 %v4304, 1e-06
    %v4311 = vadd.f32 %v4305, 1e-06
    %v4312 = vadd.f32 %v4306, 1e-06
    %v4313 = vrsqrt.pop %v4307
    %v4314 = vrsqrt.pop %v4308
    %v4315 = vrsqrt.pop %v4309
    %v4316 = vrsqrt.pop %v4310
    %v4317 = vrsqrt.pop %v4311
    %v4318 = vrsqrt.pop %v4312
    %v4319 = vmul.f32 %v4271, %v4313
    %v4320 = vmul.f32 %v4272, %v4314
    %v4321 = vmul.f32 %v4273, %v4315
    %v4322 = vmul.f32 %v4274, %v4316
    %v4323 = vmul.f32 %v4275, %v4317
    %v4324 = vmul.f32 %v4276, %v4318
    %v4326 = vlaneseq
    %v4327 = vshrl.u32 %v4326, 7
    %v4328 = vsub.s32 0, %v4327
    %v4329 = vrot.slane %v4244, %v4328
    %v4331 = vmul.f32 %v4319, %v4329
    %v4332 = vmul.f32 %v4320, %v4329
    %v4333 = vmul.f32 %v4321, %v4329
    %v4334 = vmul.f32 %v4322, %v4329
    %v4335 = vmul.f32 %v4323, %v4329
    %v4336 = vmul.f32 %v4324, %v4329
    %v4338 = vlaneseq
    %v4339 = vshrl.u32 %v4338, 7
    %v4340 = vsub.s32 0, %v4339
    %v4341 = vrot.slane %v4246, %v4340
    %v4343 = vadd.f32 %v4331, %v4341
    %v4344 = vadd.f32 %v4332, %v4341
    %v4345 = vadd.f32 %v4333, %v4341
    %v4346 = vadd.f32 %v4334, %v4341
    %v4347 = vadd.f32 %v4335, %v4341
    %v4348 = vadd.f32 %v4336, %v4341
    %s4349 = scalar_lea.vmem %s12, 32
    %v4350 = vld [vmem:[%s4349] sm:$0xff]
    %v4351 = vld [vmem:[%s4349 + $0x8] sm:$0xff]
    %v4352 = vld [vmem:[%s4349 + $0x10] sm:$0xff]
    %v4353 = vld [vmem:[%s4349 + $0x18] sm:$0xff]
    %s4354 = scalar_lea.vmem %s13, 1
    %v4355 = vld [vmem:[%s4354] sm:$0x1]
    %v4357 = vlaneseq
    %v4358 = vshrl.u32 %v4357, 7
    %v4359 = vsub.s32 0, %v4358
    %v4360 = vrot.slane %v4355, %v4359
    %v4363 = vsel %vm206, %v4343, 0
    %v4366 = vsel %vm206, %v4344, 0
    %v4369 = vsel %vm206, %v4345, 0
    %v4372 = vsel %vm206, %v4346, 0
    %v4375 = vsel %vm206, %v4347, 0
    %v4378 = vsel %vm206, %v4348, 0
    %4380 = vmatprep.subr.mxu0 0.0
    %4381 = vmatpush1.msra.mxu0 0.0
    %4382 = vmatprep.subr.mxu0 0.0
    %4383 = vmatpush1.msra.mxu0 0.0
    %4384 = vmatprep.subr.mxu0 0.0
    %4385 = vmatpush1.msra.mxu0 0.0
    %4386 = vmatprep.subr.mxu0 0.0
    %4387 = vmatpush1.msra.mxu0 0.0
    %4388 = vmatprep.subr.mxu0 0.0
    %4389 = vmatpush1.msra.mxu0 0.0
    %4390 = vmatprep.subr.mxu0 0.0
    %4391 = vmatpush1.msra.mxu0 0.0
    %4392 = vmatprep.subr.mxu0 0.0
    %4393 = vmatpush1.msra.mxu0 0.0
    %4394 = vmatprep.subr.mxu0 0.0
    %4395 = vmatpush1.msra.mxu0 0.0
    %4396 = vmatprep.subr.mxu0 0.0
    %4397 = vmatpush1.msra.mxu0 0.0
    %4398 = vmatprep.subr.mxu0 0.0
    %4399 = vmatpush1.msra.mxu0 0.0
    %4400 = vmatprep.subr.mxu0 0.0
    %4401 = vmatpush1.msra.mxu0 0.0
    %4402 = vmatprep.subr.mxu0 0.0
    %4403 = vmatpush1.msra.mxu0 0.0
    %4404 = vmatprep.subr.mxu0 0.0
    %4405 = vmatpush1.msra.mxu0 %v4353
    %4406 = vmatprep.subr.mxu0 0.0
    %4407 = vmatpush1.msra.mxu0 %v4352
    %4408 = vmatprep.subr.mxu0 0.0
    %4409 = vmatpush1.msra.mxu0 %v4351
    %4410 = vmatprep.subr.mxu0 0.0
    %4411 = vmatpush1.msra.mxu0 %v4350
    %4412 = vmatprep.subr.mxu0 0.0
    %4413 = vmatpush2.msra.mxu0 0.0
    %4414 = vmatprep.subr.mxu0 0.0
    %4415 = vmatpush2.msra.mxu0 0.0
    %4416 = vmatprep.subr.mxu0 0.0
    %4417 = vmatpush2.msra.mxu0 0.0
    %4418 = vmatprep.subr.mxu0 0.0
    %4419 = vmatpush2.msra.mxu0 0.0
    %4420 = vmatprep.subr.mxu0 0.0
    %4421 = vmatpush2.msra.mxu0 0.0
    %4422 = vmatprep.subr.mxu0 0.0
    %4423 = vmatpush2.msra.mxu0 0.0
    %4424 = vmatprep.subr.mxu0 0.0
    %4425 = vmatpush2.msra.mxu0 0.0
    %4426 = vmatprep.subr.mxu0 0.0
    %4427 = vmatpush2.msra.mxu0 0.0
    %4428 = vmatprep.subr.mxu0 0.0
    %4429 = vmatpush2.msra.mxu0 0.0
    %4430 = vmatprep.subr.mxu0 0.0
    %4431 = vmatpush2.msra.mxu0 0.0
    %4432 = vmatprep.subr.mxu0 0.0
    %4433 = vmatpush2.msra.mxu0 0.0
    %4434 = vmatprep.subr.mxu0 0.0
    %4435 = vmatpush2.msra.mxu0 0.0
    %4436 = vmatprep.subr.mxu0 0.0
    %4437 = vmatpush2.msra.mxu0 0.0
    %4438 = vmatprep.subr.mxu0 0.0
    %4439 = vmatpush2.msra.mxu0 0.0
    %4440 = vmatprep.subr.mxu0 0.0
    %4441 = vmatpush2.msra.mxu0 0.0
    %4442 = vmatprep.subr.mxu0 0.0
    %4443 = vmatpush2.msra.mxu0 0.0
    %4444 = vmatprep.mubr.f32.mxu0 0.0
    %4445 = vmatmul.mubr.f32.gmra.mxu0 %v4363
    %v4446 = vpop.f32.mrf.mxu0
    %v4447 = vadd.f32 %v4360, %v4446
    %v4448 = vpop.f32.mrf.mxu0
    %4449 = vmatprep.mubr.f32.mxu0 0.0
    %4450 = vmatmul.mubr.f32.gmra.mxu0 %v4366
    %v4451 = vpop.f32.mrf.mxu0
    %v4452 = vadd.f32 %v4360, %v4451
    %v4453 = vpop.f32.mrf.mxu0
    %4454 = vmatprep.mubr.f32.mxu0 0.0
    %4455 = vmatmul.mubr.f32.gmra.mxu0 %v4369
    %v4456 = vpop.f32.mrf.mxu0
    %v4457 = vadd.f32 %v4360, %v4456
    %v4458 = vpop.f32.mrf.mxu0
    %4459 = vmatprep.mubr.f32.mxu0 0.0
    %4460 = vmatmul.mubr.f32.gmra.mxu0 %v4372
    %v4461 = vpop.f32.mrf.mxu0
    %v4462 = vadd.f32 %v4360, %v4461
    %v4463 = vpop.f32.mrf.mxu0
    %4464 = vmatprep.mubr.f32.mxu0 0.0
    %4465 = vmatmul.mubr.f32.gmra.mxu0 %v4375
    %v4466 = vpop.f32.mrf.mxu0
    %v4467 = vadd.f32 %v4360, %v4466
    %v4468 = vpop.f32.mrf.mxu0
    %4469 = vmatprep.mubr.f32.mxu0 0.0
    %4470 = vmatmul.mubr.f32.gmra.mxu0 %v4378
    %v4471 = vpop.f32.mrf.mxu0
    %v4472 = vadd.f32 %v4360, %v4471
    %v4473 = vpop.f32.mrf.mxu0
    %4474 = vdwg.mxu0
    %v4475 = vmul.f32 %v4447, %v4447
    %v4476 = vmul.f32 %v4452, %v4452
    %v4477 = vmul.f32 %v4457, %v4457
    %v4478 = vmul.f32 %v4462, %v4462
    %v4479 = vmul.f32 %v4467, %v4467
    %v4480 = vmul.f32 %v4472, %v4472
    %v4481 = vmul.f32 %v4447, %v4475
    %v4482 = vmul.f32 %v4452, %v4476
    %v4483 = vmul.f32 %v4457, %v4477
    %v4484 = vmul.f32 %v4462, %v4478
    %v4485 = vmul.f32 %v4467, %v4479
    %v4486 = vmul.f32 %v4472, %v4480
    %v4487 = vmul.f32 %v4481, 0.044715
    %v4488 = vmul.f32 %v4482, 0.044715
    %v4489 = vmul.f32 %v4483, 0.044715
    %v4490 = vmul.f32 %v4484, 0.044715
    %v4491 = vmul.f32 %v4485, 0.044715
    %v4492 = vmul.f32 %v4486, 0.044715
    %v4493 = vadd.f32 %v4447, %v4487
    %v4494 = vadd.f32 %v4452, %v4488
    %v4495 = vadd.f32 %v4457, %v4489
    %v4496 = vadd.f32 %v4462, %v4490
    %v4497 = vadd.f32 %v4467, %v4491
    %v4498 = vadd.f32 %v4472, %v4492
    %v4499 = vmul.f32 %v4493, 0.7978846
    %v4500 = vmul.f32 %v4494, 0.7978846
    %v4501 = vmul.f32 %v4495, 0.7978846
    %v4502 = vmul.f32 %v4496, 0.7978846
    %v4503 = vmul.f32 %v4497, 0.7978846
    %v4504 = vmul.f32 %v4498, 0.7978846
    %v4505 = vtanh.pop %v4499
    %v4506 = vtanh.pop %v4500
    %v4507 = vtanh.pop %v4501
    %v4508 = vtanh.pop %v4502
    %v4509 = vtanh.pop %v4503
    %v4510 = vtanh.pop %v4504
    %v4511 = vadd.f32 %v4505, 1.0
    %v4512 = vadd.f32 %v4506, 1.0
    %v4513 = vadd.f32 %v4507, 1.0
    %v4514 = vadd.f32 %v4508, 1.0
    %v4515 = vadd.f32 %v4509, 1.0
    %v4516 = vadd.f32 %v4510, 1.0
    %v4517 = vmul.f32 %v4511, 0.5
    %v4518 = vmul.f32 %v4512, 0.5
    %v4519 = vmul.f32 %v4513, 0.5
    %v4520 = vmul.f32 %v4514, 0.5
    %v4521 = vmul.f32 %v4515, 0.5
    %v4522 = vmul.f32 %v4516, 0.5
    %v4523 = vmul.f32 %v4447, %v4517
    %v4524 = vmul.f32 %v4452, %v4518
    %v4525 = vmul.f32 %v4457, %v4519
    %v4526 = vmul.f32 %v4462, %v4520
    %v4527 = vmul.f32 %v4467, %v4521
    %v4528 = vmul.f32 %v4472, %v4522
    %s4529 = scalar_lea.vmem %s14, 128
    %v4530 = vld [vmem:[%s4529] sm:$0xff]
    %v4531 = vld [vmem:[%s4529 + $0x8] sm:$0xff]
    %v4532 = vld [vmem:[%s4529 + $0x10] sm:$0xff]
    %v4533 = vld [vmem:[%s4529 + $0x18] sm:$0xff]
    %v4534 = vld [vmem:[%s4529 + $0x20] sm:$0xff]
    %v4535 = vld [vmem:[%s4529 + $0x28] sm:$0xff]
    %v4536 = vld [vmem:[%s4529 + $0x30] sm:$0xff]
    %v4537 = vld [vmem:[%s4529 + $0x38] sm:$0xff]
    %v4538 = vld [vmem:[%s4529 + $0x40] sm:$0xff]
    %v4539 = vld [vmem:[%s4529 + $0x48] sm:$0xff]
    %v4540 = vld [vmem:[%s4529 + $0x50] sm:$0xff]
    %v4541 = vld [vmem:[%s4529 + $0x58] sm:$0xff]
    %v4542 = vld [vmem:[%s4529 + $0x60] sm:$0xff]
    %v4543 = vld [vmem:[%s4529 + $0x68] sm:$0xff]
    %v4544 = vld [vmem:[%s4529 + $0x70] sm:$0xff]
    %v4545 = vld [vmem:[%s4529 + $0x78] sm:$0xff]
    %4546 = vmatprep.subr.mxu0 0.0
    %4547 = vmatpush1.msra.mxu0 %v4545
    %4548 = vmatprep.subr.mxu0 0.0
    %4549 = vmatpush1.msra.mxu0 %v4544
    %4550 = vmatprep.subr.mxu0 0.0
    %4551 = vmatpush1.msra.mxu0 %v4543
    %4552 = vmatprep.subr.mxu0 0.0
    %4553 = vmatpush1.msra.mxu0 %v4542
    %4554 = vmatprep.subr.mxu0 0.0
    %4555 = vmatpush1.msra.mxu0 %v4541
    %4556 = vmatprep.subr.mxu0 0.0
    %4557 = vmatpush1.msra.mxu0 %v4540
    %4558 = vmatprep.subr.mxu0 0.0
    %4559 = vmatpush1.msra.mxu0 %v4539
    %4560 = vmatprep.subr.mxu0 0.0
    %4561 = vmatpush1.msra.mxu0 %v4538
    %4562 = vmatprep.subr.mxu0 0.0
    %4563 = vmatpush1.msra.mxu0 %v4537
    %4564 = vmatprep.subr.mxu0 0.0
    %4565 = vmatpush1.msra.mxu0 %v4536
    %4566 = vmatprep.subr.mxu0 0.0
    %4567 = vmatpush1.msra.mxu0 %v4535
    %4568 = vmatprep.subr.mxu0 0.0
    %4569 = vmatpush1.msra.mxu0 %v4534
    %4570 = vmatprep.subr.mxu0 0.0
    %4571 = vmatpush1.msra.mxu0 %v4533
    %4572 = vmatprep.subr.mxu0 0.0
    %4573 = vmatpush1.msra.mxu0 %v4532
    %4574 = vmatprep.subr.mxu0 0.0
    %4575 = vmatpush1.msra.mxu0 %v4531
    %4576 = vmatprep.subr.mxu0 0.0
    %4577 = vmatpush1.msra.mxu0 %v4530
    %4578 = vmatprep.subr.mxu0 0.0
    %4579 = vmatpush2.msra.mxu0 0.0
    %4580 = vmatprep.subr.mxu0 0.0
    %4581 = vmatpush2.msra.mxu0 0.0
    %4582 = vmatprep.subr.mxu0 0.0
    %4583 = vmatpush2.msra.mxu0 0.0
    %4584 = vmatprep.subr.mxu0 0.0
    %4585 = vmatpush2.msra.mxu0 0.0
    %4586 = vmatprep.subr.mxu0 0.0
    %4587 = vmatpush2.msra.mxu0 0.0
    %4588 = vmatprep.subr.mxu0 0.0
    %4589 = vmatpush2.msra.mxu0 0.0
    %4590 = vmatprep.subr.mxu0 0.0
    %4591 = vmatpush2.msra.mxu0 0.0
    %4592 = vmatprep.subr.mxu0 0.0
    %4593 = vmatpush2.msra.mxu0 0.0
    %4594 = vmatprep.subr.mxu0 0.0
    %4595 = vmatpush2.msra.mxu0 0.0
    %4596 = vmatprep.subr.mxu0 0.0
    %4597 = vmatpush2.msra.mxu0 0.0
    %4598 = vmatprep.subr.mxu0 0.0
    %4599 = vmatpush2.msra.mxu0 0.0
    %4600 = vmatprep.subr.mxu0 0.0
    %4601 = vmatpush2.msra.mxu0 0.0
    %4602 = vmatprep.subr.mxu0 0.0
    %4603 = vmatpush2.msra.mxu0 0.0
    %4604 = vmatprep.subr.mxu0 0.0
    %4605 = vmatpush2.msra.mxu0 0.0
    %4606 = vmatprep.subr.mxu0 0.0
    %4607 = vmatpush2.msra.mxu0 0.0
    %4608 = vmatprep.subr.mxu0 0.0
    %4609 = vmatpush2.msra.mxu0 0.0
    %4610 = vmatprep.mubr.f32.mxu0 0.0
    %4611 = vmatmul.mubr.f32.gmra.mxu0 %v4523
    %v4612 = vpop.f32.mrf.mxu0
    %v4613 = vadd.f32 0.0, %v4612
    %v4614 = vpop.f32.mrf.mxu0
    %4615 = vmatprep.mubr.f32.mxu0 0.0
    %4616 = vmatmul.mubr.f32.gmra.mxu0 %v4524
    %v4617 = vpop.f32.mrf.mxu0
    %v4618 = vpop.f32.mrf.mxu0
    %4619 = vmatprep.mubr.f32.mxu0 0.0
    %4620 = vmatmul.mubr.f32.gmra.mxu0 %v4525
    %v4621 = vpop.f32.mrf.mxu0
    %v4622 = vpop.f32.mrf.mxu0
    %4623 = vmatprep.mubr.f32.mxu0 0.0
    %4624 = vmatmul.mubr.f32.gmra.mxu0 %v4526
    %v4625 = vpop.f32.mrf.mxu0
    %v4626 = vadd.f32 0.0, %v4625
    %v4627 = vpop.f32.mrf.mxu0
    %4628 = vmatprep.mubr.f32.mxu0 0.0
    %4629 = vmatmul.mubr.f32.gmra.mxu0 %v4527
    %v4630 = vpop.f32.mrf.mxu0
    %v4631 = vpop.f32.mrf.mxu0
    %4632 = vmatprep.mubr.f32.mxu0 0.0
    %4633 = vmatmul.mubr.f32.gmra.mxu0 %v4528
    %v4634 = vpop.f32.mrf.mxu0
    %v4635 = vpop.f32.mrf.mxu0
    %4636 = vdwg.mxu0
    %v4637 = vadd.f32 %v4237, %v4613
    %v4638 = vadd.f32 %v4240, %v4626
    %s4639 = scalar_lea.vmem %s15, 1
    %v4640 = vld [vmem:[%s4639] sm:$0x1]
    %v4642 = vlaneseq
    %v4643 = vshrl.u32 %v4642, 7
    %v4644 = vsub.s32 0, %v4643
    %v4645 = vrot.slane %v4640, %v4644
    %v4647 = vadd.f32 %v4637, %v4645
    %v4648 = vadd.f32 %v4638, %v4645
    %v4650 = vrot.slane %v4648, 7
    %vm4652 = vcmask 1040384
    %v4653 = vsel %vm4652, %v4647, %v4650
    %v4654 = vld [vmem:[%s16] sm:$0x1]
    %v4655 = vld [vmem:[%s17] sm:$0x1]
    %vm4656 = vcmask 254976
    %v4657 = vsel %vm4656, %v4653, 0.0
    %4658 = vadd.xlane.f32.xlu0 %v4657
    %v4659 = vpop.xlane.xlu0 %4658
    %v4660 = vmul.f32 %v4659, %v225
    %v4661 = vsub.f32 %v4653, %v4660
    %v4662 = vmul.f32 %v4661, %v4661
    %v4663 = vsel %vm4656, %v4662, 0.0
    %4664 = vadd.xlane.f32.xlu0 %v4663
    %v4665 = vpop.xlane.xlu0 %4664
    %v4666 = vmul.f32 %v4665, %v225
    %v4667 = vadd.f32 %v4666, 1e-06
    %v4668 = vrsqrt.pop %v4667
    %v4669 = vmul.f32 %v4661, %v4668
    %v4671 = vlaneseq
    %v4672 = vshrl.u32 %v4671, 7
    %v4673 = vsub.s32 0, %v4672
    %v4674 = vrot.slane %v4654, %v4673
    %v4676 = vmul.f32 %v4669, %v4674
    %v4678 = vlaneseq
    %v4679 = vshrl.u32 %v4678, 7
    %v4680 = vsub.s32 0, %v4679
    %v4681 = vrot.slane %v4655, %v4680
    %v4683 = vadd.f32 %v4676, %v4681
    %v4684 = vld [vmem:[%s18] sm:$0xff]
    %v4685 = vld [vmem:[%s18 + $0x8] sm:$0xff]
    %v4686 = vld [vmem:[%s18 + $0x10] sm:$0xff]
    %v4687 = vld [vmem:[%s18 + $0x18] sm:$0xff]
    %v4688 = vld [vmem:[%s19] sm:$0x1]
    %v4690 = vlaneseq
    %v4691 = vshrl.u32 %v4690, 7
    %v4692 = vsub.s32 0, %v4691
    %v4693 = vrot.slane %v4688, %v4692
    %v4696 = vsel %vm206, %v4683, 0
    %4698 = vmatprep.subr.mxu0 0.0
    %4699 = vmatpush1.msra.mxu0 0.0
    %4700 = vmatprep.subr.mxu0 0.0
    %4701 = vmatpush1.msra.mxu0 0.0
    %4702 = vmatprep.subr.mxu0 0.0
    %4703 = vmatpush1.msra.mxu0 0.0
    %4704 = vmatprep.subr.mxu0 0.0
    %4705 = vmatpush1.msra.mxu0 0.0
    %4706 = vmatprep.subr.mxu0 0.0
    %4707 = vmatpush1.msra.mxu0 0.0
    %4708 = vmatprep.subr.mxu0 0.0
    %4709 = vmatpush1.msra.mxu0 0.0
    %4710 = vmatprep.subr.mxu0 0.0
    %4711 = vmatpush1.msra.mxu0 0.0
    %4712 = vmatprep.subr.mxu0 0.0
    %4713 = vmatpush1.msra.mxu0 0.0
    %4714 = vmatprep.subr.mxu0 0.0
    %4715 = vmatpush1.msra.mxu0 0.0
    %4716 = vmatprep.subr.mxu0 0.0
    %4717 = vmatpush1.msra.mxu0 0.0
    %4718 = vmatprep.subr.mxu0 0.0
    %4719 = vmatpush1.msra.mxu0 0.0
    %4720 = vmatprep.subr.mxu0 0.0
    %4721 = vmatpush1.msra.mxu0 0.0
    %4722 = vmatprep.subr.mxu0 0.0
    %4723 = vmatpush1.msra.mxu0 %v4687
    %4724 = vmatprep.subr.mxu0 0.0
    %4725 = vmatpush1.msra.mxu0 %v4686
    %4726 = vmatprep.subr.mxu0 0.0
    %4727 = vmatpush1.msra.mxu0 %v4685
    %4728 = vmatprep.subr.mxu0 0.0
    %4729 = vmatpush1.msra.mxu0 %v4684
    %4730 = vmatprep.subr.mxu0 0.0
    %4731 = vmatpush2.msra.mxu0 0.0
    %4732 = vmatprep.subr.mxu0 0.0
    %4733 = vmatpush2.msra.mxu0 0.0
    %4734 = vmatprep.subr.mxu0 0.0
    %4735 = vmatpush2.msra.mxu0 0.0
    %4736 = vmatprep.subr.mxu0 0.0
    %4737 = vmatpush2.msra.mxu0 0.0
    %4738 = vmatprep.subr.mxu0 0.0
    %4739 = vmatpush2.msra.mxu0 0.0
    %4740 = vmatprep.subr.mxu0 0.0
    %4741 = vmatpush2.msra.mxu0 0.0
    %4742 = vmatprep.subr.mxu0 0.0
    %4743 = vmatpush2.msra.mxu0 0.0
    %4744 = vmatprep.subr.mxu0 0.0
    %4745 = vmatpush2.msra.mxu0 0.0
    %4746 = vmatprep.subr.mxu0 0.0
    %4747 = vmatpush2.msra.mxu0 0.0
    %4748 = vmatprep.subr.mxu0 0.0
    %4749 = vmatpush2.msra.mxu0 0.0
    %4750 = vmatprep.subr.mxu0 0.0
    %4751 = vmatpush2.msra.mxu0 0.0
    %4752 = vmatprep.subr.mxu0 0.0
    %4753 = vmatpush2.msra.mxu0 0.0
    %4754 = vmatprep.subr.mxu0 0.0
    %4755 = vmatpush2.msra.mxu0 0.0
    %4756 = vmatprep.subr.mxu0 0.0
    %4757 = vmatpush2.msra.mxu0 0.0
    %4758 = vmatprep.subr.mxu0 0.0
    %4759 = vmatpush2.msra.mxu0 0.0
    %4760 = vmatprep.subr.mxu0 0.0
    %4761 = vmatpush2.msra.mxu0 0.0
    %4762 = vmatprep.mubr.f32.mxu0 0.0
    %4763 = vmatmul.mubr.f32.gmra.mxu0 %v4696
    %v4764 = vpop.f32.mrf.mxu0
    %v4765 = vadd.f32 %v4693, %v4764
    %v4766 = vpop.f32.mrf.mxu0
    %4767 = vdwg.mxu0
    %4768 = vst [vmem:[#allocation2] sm:$0x3] %v4765
    // Predicated region
    $region82: #{vit_forward.1} parent=1 // pred_check
      _
    $region83: #{vit_forward.1} parent=1 // pred_check_branch
      %4770 = sbr.rel (0) target = $region85
    $region84: #{vit_forward.1} parent=1 // pred_region
      %s4772 = ssub.s32 32, 32
      %4773 = vsyncadd [#allocation3], %s4772
      %s4775 = sshll.u32 [#allocation2], 4
      %s4776 = int_to_ptr.vmem [resolvable:$true] %s4775
      %4778 = dma.vmem_to_hbm [thread:$0]  %s4776, 32, %s20, [#allocation3]
    $region85: #{vit_forward.1} parent=1 // pred_fallthru
      _
    // Predicated region
    $region86: #{vit_forward.1} parent=1 // pred_check
      _
    $region87: #{vit_forward.1} parent=1 // pred_check_branch
      %4780 = sbr.rel (0) target = $region89
    $region88: #{vit_forward.1} parent=1 // pred_region
      %4781 = dma.done [#allocation3], 32
    $region89: #{vit_forward.1} parent=1 // pred_fallthru
      _
    %4782 = vsyncpa [#allocation3], 1

</llo_original>
